<compile_context>
chip_gen: v5e
topology: v5e:2x2
jax: 0.10.0
libtpu: 0.0.40
codegen_flags: <defaults>
</compile_context>

<pallas_src>
import functools

import numpy as np
import jax
import jax.numpy as jnp
from jax.experimental import pallas as pl
from jax.experimental.pallas import tpu as pltpu


# ----------------------------------------------------------------------------
# Module config (mirrors the PyTorch FlexibleConv1DAutoencoder config dict)
# ----------------------------------------------------------------------------
CONFIG = {
    "input_channels": 4,
    "input_length": 64,
    "encoder_layers": [
        dict(out_channels=8, kernel_size=3, stride=2, padding=1, activation="relu"),
        dict(out_channels=16, kernel_size=3, stride=2, padding=1, activation="relu"),
    ],
    "bottleneck_layers": [
        dict(out_channels=16, kernel_size=3, stride=1, padding=1, activation="relu"),
    ],
    "decoder_layers": [
        dict(out_channels=8, kernel_size=3, stride=2, padding=1,
             output_padding=1, activation="relu"),
        dict(out_channels=4, kernel_size=3, stride=2, padding=1,
             output_padding=1, activation=None),
    ],
    "target_length": 200,
}


def _round_up(x, m):
    return ((x + m - 1) // m) * m


# ----------------------------------------------------------------------------
# Deterministic parameters (torch-style uniform init, PyTorch weight layouts)
# ----------------------------------------------------------------------------
def init_params(config, key):
    params = {"encoder": [], "decoder": []}
    in_ch = config["input_channels"]
    enc_cfgs = list(config["encoder_layers"]) + list(config.get("bottleneck_layers", []))
    for cfg in enc_cfgs:
        key, kw, kb = jax.random.split(key, 3)
        k, out_ch = cfg["kernel_size"], cfg["out_channels"]
        bound = 1.0 / np.sqrt(in_ch * k)
        w = jax.random.uniform(kw, (out_ch, in_ch, k), jnp.float32, -bound, bound)
        b = jax.random.uniform(kb, (out_ch,), jnp.float32, -bound, bound)
        params["encoder"].append((w, b))
        in_ch = out_ch
    for cfg in config["decoder_layers"]:
        key, kw, kb = jax.random.split(key, 3)
        k, out_ch = cfg["kernel_size"], cfg["out_channels"]
        bound = 1.0 / np.sqrt(in_ch * k)
        w = jax.random.uniform(kw, (in_ch, out_ch, k), jnp.float32, -bound, bound)
        b = jax.random.uniform(kb, (out_ch,), jnp.float32, -bound, bound)
        params["decoder"].append((w, b))
        in_ch = out_ch
    return params


# ----------------------------------------------------------------------------
# One-time parameter prep: lower each layer to a dense (A, b) operator on the
# channels-last flattened activation vector (flat index = l * C + c).
# ----------------------------------------------------------------------------
def _conv1d_operator(w, b, L_in, stride, padding):
    """torch Conv1d weight (C_out, C_in, k) -> dense (L_in*C_in, L_out*C_out)."""
    C_out, C_in, k = w.shape
    L_out = (L_in + 2 * padding - k) // stride + 1
    A = np.zeros((L_in * C_in, L_out * C_out), np.float32)
    for j in range(L_out):
        for t in range(k):
            l = j * stride + t - padding
            if 0 <= l < L_in:
                A[l * C_in:(l + 1) * C_in, j * C_out:(j + 1) * C_out] += w[:, :, t].T
    return A, np.tile(b, L_out), L_out


def _conv_transpose1d_operator(w, b, L_in, stride, padding, output_padding):
    """torch ConvTranspose1d weight (C_in, C_out, k) -> dense operator."""
    C_in, C_out, k = w.shape
    L_out = (L_in - 1) * stride - 2 * padding + k + output_padding
    A = np.zeros((L_in * C_in, L_out * C_out), np.float32)
    for i in range(L_in):
        for t in range(k):
            j = i * stride - padding + t
            if 0 <= j < L_out:
                A[i * C_in:(i + 1) * C_in, j * C_out:(j + 1) * C_out] += w[:, :, t]
    return A, np.tile(b, L_out), L_out


def _adaptive_avg_pool_operator(L_in, T, C):
    """PyTorch AdaptiveAvgPool1d(T) as a dense (L_in*C, T*C) channels-last op."""
    A = np.zeros((L_in * C, T * C), np.float32)
    for j in range(T):
        start = (j * L_in) // T
        end = -((-(j + 1) * L_in) // T)          # ceil((j+1)*L_in/T)
        v = 1.0 / (end - start)
        for l in range(start, end):
            for c in range(C):
                A[l * C + c, j * C + c] = v
    return A


def build_operators(config, params):
    """Return ([(A, b_row, activation)], out_len, out_channels), pool folded,
    operator widths zero-padded to MXU/lane-friendly multiples."""
    layers = []
    L = config["input_length"]
    C = config["input_channels"]
    enc_cfgs = list(config["encoder_layers"]) + list(config.get("bottleneck_layers", []))
    for cfg, (w, b) in zip(enc_cfgs, params["encoder"]):
        A, bf, L = _conv1d_operator(np.asarray(w, np.float32), np.asarray(b, np.float32),
                                    L, cfg["stride"], cfg.get("padding", 0))
        layers.append([A, bf, cfg.get("activation")])
        C = cfg["out_channels"]
    for cfg, (w, b) in zip(config["decoder_layers"], params["decoder"]):
        A, bf, L = _conv_transpose1d_operator(
            np.asarray(w, np.float32), np.asarray(b, np.float32),
            L, cfg["stride"], cfg.get("padding", 0), cfg.get("output_padding", 0))
        layers.append([A, bf, cfg.get("activation")])
        C = cfg["out_channels"]

    T = 200  # the PyTorch module hard-codes AdaptiveAvgPool1d(200)
    P = _adaptive_avg_pool_operator(L, T, C)
    if layers and layers[-1][2] is None:
        # Last layer is linear -> fold the pool: (h @ A + b) @ P == h @ (A @ P) + b @ P
        A, bf, act = layers[-1]
        layers[-1] = [A @ P, bf @ P, act]
    else:
        layers.append([P, np.zeros(T * C, np.float32), None])

    # --- Lane-density / MXU-width zero-padding (exact semantics) -------------
    # Final output width 800 -> 1024 so the last MXU pass is full 256-wide and
    # the output store is an unmasked full-vreg vst; intermediate widths to a
    # 128-lane multiple.  Padded activation columns are exactly zero (zero bias,
    # act(0)=0 for relu/tanh/None), so zero-padded rows of the next operator
    # preserve semantics.
    n = len(layers)
    for i in range(n):
        A, bf, act = layers[i]
        K, N = A.shape
        N_pad = _round_up(N, 256 if i == n - 1 else 128)
        if N_pad != N:
            A = np.pad(A, ((0, 0), (0, N_pad - N)))
            bf = np.pad(bf, (0, N_pad - N))
            layers[i] = [A, bf, act]
        if i + 1 < n:
            A2, b2, a2 = layers[i + 1]
            if A2.shape[0] != N_pad:
                A2 = np.pad(A2, ((0, N_pad - A2.shape[0]), (0, 0)))
                layers[i + 1] = [A2, b2, a2]
    # Pad the first operator's rows (flattened input width) to a 128 multiple;
    # the wrapper zero-pads x columns to match.
    K0 = layers[0][0].shape[0]
    K0_pad = _round_up(K0, 128)
    if K0_pad != K0:
        layers[0][0] = np.pad(layers[0][0], ((0, K0_pad - K0), (0, 0)))

    ops = [(jnp.asarray(A), jnp.asarray(bf).reshape(1, -1), act) for A, bf, act in layers]
    return ops, T, C


# ----------------------------------------------------------------------------
# Single fused Pallas kernel: whole autoencoder for one (TM, D_in) batch tile.
# ----------------------------------------------------------------------------
def _fused_autoencoder_kernel(x_ref, *refs, activations):
    # x_ref: (TM, D_in);  refs = [A_0, b_0, ..., A_{n-1}, b_{n-1}, o_ref]
    o_ref = refs[-1]
    wrefs = refs[:-1]
    h = x_ref[...]                                 # (TM, D_in) f32
    for li, act in enumerate(activations):
        A = wrefs[2 * li][...]                     # (K, N) VMEM-resident weights
        b = wrefs[2 * li + 1][...]                 # (1, N)
        h = jnp.dot(h, A, preferred_element_type=jnp.float32) + b
        if act == "relu":
            h = jnp.maximum(h, 0.0)
        elif act == "tanh":
            h = jnp.tanh(h)
    o_ref[...] = h.astype(o_ref.dtype)


def _pick_tm(batch):
    # Batch (M) tile: 256-aligned so MXU passes are full-height on v6e/v7x
    # (2x256x256 MXU) and v5e (4x128x128).  Go to 512 only for large batches
    # (still >= several grid steps so both v7x TensorCores get work) while
    # keeping double-buffered (TM, 1024) activation tiles well inside the
    # scoped-VMEM defaults on every generation (v5e 16 MiB, v7x 32 of 64 MiB).
    return 512 if batch >= 2048 else 256


def _fused_forward(x, layer_arrays, *, activations, out_len, out_channels):
    """x: (B, L_in, C_in) channels-last  ->  (B, out_len, out_channels)."""
    B, L_in, C_in = x.shape
    D_in = L_in * C_in
    D_in_pad = layer_arrays[0].shape[0]            # rows of first operator
    D_out = out_len * out_channels
    D_out_pad = layer_arrays[-2].shape[1]          # padded cols of last operator

    TM = _pick_tm(B)
    B_pad = _round_up(B, TM)

    x2 = x.reshape(B, D_in)                        # pure reshape, no transpose
    x2 = jnp.pad(x2, ((0, B_pad - B), (0, D_in_pad - D_in)))

    # Grid-invariant weights/biases: single-buffered (their index_map never
    # moves, so double-buffering only wastes VMEM).
    def invariant(shape):
        return pl.BlockSpec(shape, lambda i: (0, 0), pipeline_mode=pl.Buffered(1))

    in_specs = [pl.BlockSpec((TM, D_in_pad), lambda i: (i, 0))]
    for idx in range(0, len(layer_arrays), 2):
        K, N = layer_arrays[idx].shape
        in_specs.append(invariant((K, N)))
        in_specs.append(invariant((1, N)))

    kernel = functools.partial(_fused_autoencoder_kernel, activations=activations)
    out = pl.pallas_call(
        kernel,
        out_shape=jax.ShapeDtypeStruct((B_pad, D_out_pad), jnp.float32),
        grid=(B_pad // TM,),
        in_specs=in_specs,
        out_specs=pl.BlockSpec((TM, D_out_pad), lambda i: (i, 0)),
        compiler_params=pltpu.CompilerParams(
            dimension_semantics=("parallel",),
            vmem_limit_bytes=32 * 1024 * 1024),
    )(x2, *layer_arrays)
    return out[:B, :D_out].reshape(B, out_len, out_channels)


def make_forward(config, params):
    ops, out_len, out_channels = build_operators(config, params)
    activations = tuple(act for _, _, act in ops)
    layer_arrays = []
    for A, b, _ in ops:
        layer_arrays += [A, b]
    fwd = jax.jit(functools.partial(
        _fused_forward, activations=activations,
        out_len=out_len, out_channels=out_channels))
    return fwd, tuple(layer_arrays)


# ----------------------------------------------------------------------------
# Pure-JAX reference (im2col conv, zero-dilated deconv, pool matrix) for checking
# ----------------------------------------------------------------------------
def _reference_forward(x, params, config):
    HI = jax.lax.Precision.HIGHEST

    def act_fn(y, act):
        if act == "relu":
            return jnp.maximum(y, 0.0)
        if act == "tanh":
            return jnp.tanh(y)
        return y

    def conv(x, w, b, stride, pad, act):
        C_out, C_in, k = w.shape
        B, L, _ = x.shape
        xp = jnp.pad(x, ((0, 0), (pad, pad), (0, 0)))
        L_out = (L + 2 * pad - k) // stride + 1
        idx = jnp.arange(L_out)[:, None] * stride + jnp.arange(k)[None, :]
        patches = xp[:, idx, :].reshape(B, L_out, k * C_in)
        wm = jnp.transpose(w, (2, 1, 0)).reshape(k * C_in, C_out)
        return act_fn(jnp.matmul(patches, wm, precision=HI) + b, act)

    def deconv(x, w, b, stride, pad, opad, act):
        C_in, C_out, k = w.shape
        B, L, _ = x.shape
        if stride > 1:
            xd = jnp.zeros((B, (L - 1) * stride + 1, C_in), x.dtype)
            xd = xd.at[:, ::stride, :].set(x)
        else:
            xd = x
        xp = jnp.pad(xd, ((0, 0), (k - 1 - pad, k - 1 - pad + opad), (0, 0)))
        L_out = xp.shape[1] - k + 1
        idx = jnp.arange(L_out)[:, None] + jnp.arange(k)[None, :]
        patches = xp[:, idx, :].reshape(B, L_out, k * C_in)
        wm = jnp.transpose(jnp.flip(w, 2), (2, 0, 1)).reshape(k * C_in, C_out)
        return act_fn(jnp.matmul(patches, wm, precision=HI) + b, act)

    h = x
    enc_cfgs = list(config["encoder_layers"]) + list(config.get("bottleneck_layers", []))
    for cfg, (w, b) in zip(enc_cfgs, params["encoder"]):
        h = conv(h, w, b, cfg["stride"], cfg.get("padding", 0), cfg.get("activation"))
    for cfg, (w, b) in zip(config["decoder_layers"], params["decoder"]):
        h = deconv(h, w, b, cfg["stride"], cfg.get("padding", 0),
                   cfg.get("output_padding", 0), cfg.get("activation"))
    L, C = h.shape[1], h.shape[2]
    T = 200
    P = np.zeros((T, L), np.float32)
    for j in range(T):
        s = (j * L) // T
        e = -((-(j + 1) * L) // T)
        P[j, s:e] = 1.0 / (e - s)
    return jnp.einsum("tl,blc->btc", jnp.asarray(P), h, precision=HI)


# ----------------------------------------------------------------------------
if __name__ == "__main__":
    key = jax.random.PRNGKey(0)
    kx, kp = jax.random.split(key)
    B = 2
    x = jax.random.normal(
        kx, (B, CONFIG["input_length"], CONFIG["input_channels"]), jnp.float32)
    params = init_params(CONFIG, kp)

    fwd, layer_arrays = make_forward(CONFIG, params)
    out = jax.block_until_ready(fwd(x, layer_arrays))

    C_out = CONFIG["decoder_layers"][-1]["out_channels"]
    assert out.shape == (B, 200, C_out), out.shape
    assert out.dtype == jnp.float32

    ref = _reference_forward(x, params, CONFIG)
    err = float(jnp.max(jnp.abs(out - ref)))
    assert err < 2e-3, f"max abs error vs reference: {err}"

    print("KERNEL_OK")
</pallas_src>

<mosaic_0001>
module attributes {stable_mosaic.version = 11 : i64} {
  func.func @_fused_autoencoder_kernel(%arg0: i32, %arg1: memref<256x256xf32, #tpu.memory_space<vmem>>, %arg2: memref<256x256xf32, #tpu.memory_space<vmem>>, %arg3: memref<1x256xf32, #tpu.memory_space<vmem>>, %arg4: memref<256x256xf32, #tpu.memory_space<vmem>>, %arg5: memref<1x256xf32, #tpu.memory_space<vmem>>, %arg6: memref<256x256xf32, #tpu.memory_space<vmem>>, %arg7: memref<1x256xf32, #tpu.memory_space<vmem>>, %arg8: memref<256x256xf32, #tpu.memory_space<vmem>>, %arg9: memref<1x256xf32, #tpu.memory_space<vmem>>, %arg10: memref<256x1024xf32, #tpu.memory_space<vmem>>, %arg11: memref<1x1024xf32, #tpu.memory_space<vmem>>, %arg12: memref<256x1024xf32, #tpu.memory_space<vmem>>) attributes {dimension_semantics = [#tpu.dimension_semantics<parallel>], iteration_bounds = array<i64: 1>, scalar_prefetch = 0 : i64, scratch_operands = 0 : i64, tpu.core_type = #tpu.core_type<tc>, window_params = [{transform_indices = @transform_0, window_bounds = array<i64: 256, 256>}, {pipeline_mode = #tpu.pipeline_mode<synchronous>, transform_indices = @transform_1, window_bounds = array<i64: 256, 256>}, {pipeline_mode = #tpu.pipeline_mode<synchronous>, transform_indices = @transform_2, window_bounds = array<i64: 1, 256>}, {pipeline_mode = #tpu.pipeline_mode<synchronous>, transform_indices = @transform_3, window_bounds = array<i64: 256, 256>}, {pipeline_mode = #tpu.pipeline_mode<synchronous>, transform_indices = @transform_4, window_bounds = array<i64: 1, 256>}, {pipeline_mode = #tpu.pipeline_mode<synchronous>, transform_indices = @transform_5, window_bounds = array<i64: 256, 256>}, {pipeline_mode = #tpu.pipeline_mode<synchronous>, transform_indices = @transform_6, window_bounds = array<i64: 1, 256>}, {pipeline_mode = #tpu.pipeline_mode<synchronous>, transform_indices = @transform_7, window_bounds = array<i64: 256, 256>}, {pipeline_mode = #tpu.pipeline_mode<synchronous>, transform_indices = @transform_8, window_bounds = array<i64: 1, 256>}, {pipeline_mode = #tpu.pipeline_mode<synchronous>, transform_indices = @transform_9, window_bounds = array<i64: 256, 1024>}, {pipeline_mode = #tpu.pipeline_mode<synchronous>, transform_indices = @transform_10, window_bounds = array<i64: 1, 1024>}, {transform_indices = @transform_11, window_bounds = array<i64: 256, 1024>}]} {
    %c0 = arith.constant 0 : index
    %c0_0 = arith.constant 0 : index
    %0 = vector.load %arg1[%c0, %c0_0] : memref<256x256xf32, #tpu.memory_space<vmem>>, vector<256x256xf32>
    %c0_1 = arith.constant 0 : index
    %c0_2 = arith.constant 0 : index
    %1 = vector.load %arg2[%c0_1, %c0_2] : memref<256x256xf32, #tpu.memory_space<vmem>>, vector<256x256xf32>
    %c0_3 = arith.constant 0 : index
    %c0_4 = arith.constant 0 : index
    %2 = vector.load %arg3[%c0_3, %c0_4] : memref<1x256xf32, #tpu.memory_space<vmem>>, vector<1x256xf32>
    %cst = arith.constant dense<0.000000e+00> : vector<256x256xf32>
    %3 = tpu.matmul %0, %1, %cst {dimension_numbers = #tpu.dot_dimension_numbers<[1], [0], [0], [1], [0, 0, 1, 1], [], []>} : vector<256x256xf32>, vector<256x256xf32>, vector<256x256xf32> -> vector<256x256xf32>
    %4 = vector.broadcast %2 : vector<1x256xf32> to vector<256x256xf32>
    %5 = arith.addf %3, %4 : vector<256x256xf32>
    %cst_5 = arith.constant 0.000000e+00 : f32
    %6 = vector.broadcast %cst_5 : f32 to vector<256x256xf32>
    %7 = arith.maximumf %5, %6 : vector<256x256xf32>
    %c0_6 = arith.constant 0 : index
    %c0_7 = arith.constant 0 : index
    %8 = vector.load %arg4[%c0_6, %c0_7] : memref<256x256xf32, #tpu.memory_space<vmem>>, vector<256x256xf32>
    %c0_8 = arith.constant 0 : index
    %c0_9 = arith.constant 0 : index
    %9 = vector.load %arg5[%c0_8, %c0_9] : memref<1x256xf32, #tpu.memory_space<vmem>>, vector<1x256xf32>
    %cst_10 = arith.constant dense<0.000000e+00> : vector<256x256xf32>
    %10 = tpu.matmul %7, %8, %cst_10 {dimension_numbers = #tpu.dot_dimension_numbers<[1], [0], [0], [1], [0, 0, 1, 1], [], []>} : vector<256x256xf32>, vector<256x256xf32>, vector<256x256xf32> -> vector<256x256xf32>
    %11 = vector.broadcast %9 : vector<1x256xf32> to vector<256x256xf32>
    %12 = arith.addf %10, %11 : vector<256x256xf32>
    %cst_11 = arith.constant 0.000000e+00 : f32
    %13 = vector.broadcast %cst_11 : f32 to vector<256x256xf32>
    %14 = arith.maximumf %12, %13 : vector<256x256xf32>
    %c0_12 = arith.constant 0 : index
    %c0_13 = arith.constant 0 : index
    %15 = vector.load %arg6[%c0_12, %c0_13] : memref<256x256xf32, #tpu.memory_space<vmem>>, vector<256x256xf32>
    %c0_14 = arith.constant 0 : index
    %c0_15 = arith.constant 0 : index
    %16 = vector.load %arg7[%c0_14, %c0_15] : memref<1x256xf32, #tpu.memory_space<vmem>>, vector<1x256xf32>
    %cst_16 = arith.constant dense<0.000000e+00> : vector<256x256xf32>
    %17 = tpu.matmul %14, %15, %cst_16 {dimension_numbers = #tpu.dot_dimension_numbers<[1], [0], [0], [1], [0, 0, 1, 1], [], []>} : vector<256x256xf32>, vector<256x256xf32>, vector<256x256xf32> -> vector<256x256xf32>
    %18 = vector.broadcast %16 : vector<1x256xf32> to vector<256x256xf32>
    %19 = arith.addf %17, %18 : vector<256x256xf32>
    %cst_17 = arith.constant 0.000000e+00 : f32
    %20 = vector.broadcast %cst_17 : f32 to vector<256x256xf32>
    %21 = arith.maximumf %19, %20 : vector<256x256xf32>
    %c0_18 = arith.constant 0 : index
    %c0_19 = arith.constant 0 : index
    %22 = vector.load %arg8[%c0_18, %c0_19] : memref<256x256xf32, #tpu.memory_space<vmem>>, vector<256x256xf32>
    %c0_20 = arith.constant 0 : index
    %c0_21 = arith.constant 0 : index
    %23 = vector.load %arg9[%c0_20, %c0_21] : memref<1x256xf32, #tpu.memory_space<vmem>>, vector<1x256xf32>
    %cst_22 = arith.constant dense<0.000000e+00> : vector<256x256xf32>
    %24 = tpu.matmul %21, %22, %cst_22 {dimension_numbers = #tpu.dot_dimension_numbers<[1], [0], [0], [1], [0, 0, 1, 1], [], []>} : vector<256x256xf32>, vector<256x256xf32>, vector<256x256xf32> -> vector<256x256xf32>
    %25 = vector.broadcast %23 : vector<1x256xf32> to vector<256x256xf32>
    %26 = arith.addf %24, %25 : vector<256x256xf32>
    %cst_23 = arith.constant 0.000000e+00 : f32
    %27 = vector.broadcast %cst_23 : f32 to vector<256x256xf32>
    %28 = arith.maximumf %26, %27 : vector<256x256xf32>
    %c0_24 = arith.constant 0 : index
    %c0_25 = arith.constant 0 : index
    %29 = vector.load %arg10[%c0_24, %c0_25] : memref<256x1024xf32, #tpu.memory_space<vmem>>, vector<256x1024xf32>
    %c0_26 = arith.constant 0 : index
    %c0_27 = arith.constant 0 : index
    %30 = vector.load %arg11[%c0_26, %c0_27] : memref<1x1024xf32, #tpu.memory_space<vmem>>, vector<1x1024xf32>
    %cst_28 = arith.constant dense<0.000000e+00> : vector<256x1024xf32>
    %31 = tpu.matmul %28, %29, %cst_28 {dimension_numbers = #tpu.dot_dimension_numbers<[1], [0], [0], [1], [0, 0, 1, 1], [], []>} : vector<256x256xf32>, vector<256x1024xf32>, vector<256x1024xf32> -> vector<256x1024xf32>
    %32 = vector.broadcast %30 : vector<1x1024xf32> to vector<256x1024xf32>
    %33 = arith.addf %31, %32 : vector<256x1024xf32>
    %c0_29 = arith.constant 0 : index
    %c0_30 = arith.constant 0 : index
    %34 = vector.load %arg12[%c0_29, %c0_30] : memref<256x1024xf32, #tpu.memory_space<vmem>>, vector<256x1024xf32>
    tpu.vector_store %arg12[%c0_29, %c0_30], %33 {strides = array<i32>} : memref<256x1024xf32, #tpu.memory_space<vmem>>, vector<256x1024xf32>,
    return
  }
  func.func @transform_0(%arg0: i32) -> (i32, i32) {
    %c0_i32 = arith.constant 0 : i32
    %c0_i32_0 = arith.constant 0 : i32
    return %arg0, %c0_i32 : i32, i32
  }
  func.func @transform_1(%arg0: i32) -> (i32, i32) {
    %c0_i32 = arith.constant 0 : i32
    %c0_i32_0 = arith.constant 0 : i32
    %c0_i32_1 = arith.constant 0 : i32
    return %c0_i32, %c0_i32_0 : i32, i32
  }
  func.func @transform_2(%arg0: i32) -> (i32, i32) {
    %c0_i32 = arith.constant 0 : i32
    %c0_i32_0 = arith.constant 0 : i32
    %c0_i32_1 = arith.constant 0 : i32
    return %c0_i32, %c0_i32_0 : i32, i32
  }
  func.func @transform_3(%arg0: i32) -> (i32, i32) {
    %c0_i32 = arith.constant 0 : i32
    %c0_i32_0 = arith.constant 0 : i32
    %c0_i32_1 = arith.constant 0 : i32
    return %c0_i32, %c0_i32_0 : i32, i32
  }
  func.func @transform_4(%arg0: i32) -> (i32, i32) {
    %c0_i32 = arith.constant 0 : i32
    %c0_i32_0 = arith.constant 0 : i32
    %c0_i32_1 = arith.constant 0 : i32
    return %c0_i32, %c0_i32_0 : i32, i32
  }
  func.func @transform_5(%arg0: i32) -> (i32, i32) {
    %c0_i32 = arith.constant 0 : i32
    %c0_i32_0 = arith.constant 0 : i32
    %c0_i32_1 = arith.constant 0 : i32
    return %c0_i32, %c0_i32_0 : i32, i32
  }
  func.func @transform_6(%arg0: i32) -> (i32, i32) {
    %c0_i32 = arith.constant 0 : i32
    %c0_i32_0 = arith.constant 0 : i32
    %c0_i32_1 = arith.constant 0 : i32
    return %c0_i32, %c0_i32_0 : i32, i32
  }
  func.func @transform_7(%arg0: i32) -> (i32, i32) {
    %c0_i32 = arith.constant 0 : i32
    %c0_i32_0 = arith.constant 0 : i32
    %c0_i32_1 = arith.constant 0 : i32
    return %c0_i32, %c0_i32_0 : i32, i32
  }
  func.func @transform_8(%arg0: i32) -> (i32, i32) {
    %c0_i32 = arith.constant 0 : i32
    %c0_i32_0 = arith.constant 0 : i32
    %c0_i32_1 = arith.constant 0 : i32
    return %c0_i32, %c0_i32_0 : i32, i32
  }
  func.func @transform_9(%arg0: i32) -> (i32, i32) {
    %c0_i32 = arith.constant 0 : i32
    %c0_i32_0 = arith.constant 0 : i32
    %c0_i32_1 = arith.constant 0 : i32
    return %c0_i32, %c0_i32_0 : i32, i32
  }
  func.func @transform_10(%arg0: i32) -> (i32, i32) {
    %c0_i32 = arith.constant 0 : i32
    %c0_i32_0 = arith.constant 0 : i32
    %c0_i32_1 = arith.constant 0 : i32
    return %c0_i32, %c0_i32_0 : i32, i32
  }
  func.func @transform_11(%arg0: i32) -> (i32, i32) {
    %c0_i32 = arith.constant 0 : i32
    %c0_i32_0 = arith.constant 0 : i32
    return %arg0, %c0_i32 : i32, i32
  }
}

</mosaic_0001>

<llo_original>
// kernel: _fused_forward.1
$region0: #{_fused_forward.1}
  #allocation0 [shape = 'u32[]', space=smem, size = 0x4, offset = 0x4, fixed_abs, tag = 'smem constant byte address 0x4 - core index']
  #allocation1 [shape = 'u32[72,128]{1,0:T(1,128)}', space=vmem, size = 0x9000, scoped, tag = 'internal scratch']
  %s0 = inlined_call_operand.vmem [shape: f32[256,256], index: 0, kind: input, shape index: {}]
  %s1 = inlined_call_operand.vmem [shape: f32[256,256], index: 1, kind: input, shape index: {}]
  %s2 = inlined_call_operand.vmem [shape: f32[1,256], index: 2, kind: input, shape index: {}]
  %s3 = inlined_call_operand.hbm [shape: f32[256,256], index: 3, kind: input, shape index: {}]
  %s4 = inlined_call_operand.vmem [shape: f32[1,256], index: 4, kind: input, shape index: {}]
  %s5 = inlined_call_operand.hbm [shape: f32[256,256], index: 5, kind: input, shape index: {}]
  %s6 = inlined_call_operand.vmem [shape: f32[1,256], index: 6, kind: input, shape index: {}]
  %s7 = inlined_call_operand.hbm [shape: f32[256,256], index: 7, kind: input, shape index: {}]
  %s8 = inlined_call_operand.vmem [shape: f32[1,256], index: 8, kind: input, shape index: {}]
  %s9 = inlined_call_operand.hbm [shape: f32[256,1024], index: 9, kind: input, shape index: {}]
  %s10 = inlined_call_operand.vmem [shape: f32[1,1024], index: 10, kind: input, shape index: {}]
  %s11 = inlined_call_operand.vmem [shape: f32[256,1024], index: 11, kind: output, shape index: {}]
  %s12 = sld [smem:[#allocation0]]
  $region70: #{_fused_forward.1} parent=0
    _
  %s14 = ssub.s32 1, %s12
  %s15 = scalar_select 0, %s14, %s12
  $region1: #{_fused_forward.1} parent=0
    #allocation2 [shape = 'u8[262144]{0}', space=vmem, size = 0x40000, scoped, tag = 'input window, operand 3, single buffered']
    #allocation3 [shape = 's32[1]{0}', space=sflag, size = 0x4, scoped, tag = 'scoped memory for _fused_forward.1']
    #allocation4 [shape = 'u8[262144]{0}', space=vmem, size = 0x40000, scoped, tag = 'input window, operand 5, single buffered']
    #allocation5 [shape = 's32[1]{0}', space=sflag, size = 0x4, scoped, tag = 'scoped memory for _fused_forward.1']
    #allocation6 [shape = 'u8[262144]{0}', space=vmem, size = 0x40000, scoped, tag = 'input window, operand 7, single buffered']
    #allocation7 [shape = 'u8[1048576]{0}', space=vmem, size = 0x100000, scoped, tag = 'input window, operand 9, single buffered']
    #allocation8 [shape = 's32[1]{0}', space=sflag, size = 0x4, scoped, tag = 'scoped memory for _fused_forward.1']
    %16 = vsyncpa [#allocation3], 0
    %17 = vsyncpa [#allocation5], 0
    %18 = vsyncpa [#allocation8], 0
    // Predicated region
    $region2: #{_fused_forward.1} parent=1 // pred_check
      _
    $region3: #{_fused_forward.1} parent=1 // pred_check_branch
      %20 = sbr.rel (0) target = $region5
    $region4: #{_fused_forward.1} parent=1 // pred_region
      _
    $region5: #{_fused_forward.1} parent=1 // pred_fallthru
      _
    // Predicated region
    $region6: #{_fused_forward.1} parent=1 // pred_check
      _
    $region7: #{_fused_forward.1} parent=1 // pred_check_branch
      %22 = sbr.rel (0) target = $region9
    $region8: #{_fused_forward.1} parent=1 // pred_region
      _
    $region9: #{_fused_forward.1} parent=1 // pred_fallthru
      _
    // Predicated region
    $region10: #{_fused_forward.1} parent=1 // pred_check
      _
    $region11: #{_fused_forward.1} parent=1 // pred_check_branch
      %24 = sbr.rel (0) target = $region13
    $region12: #{_fused_forward.1} parent=1 // pred_region
      _
    $region13: #{_fused_forward.1} parent=1 // pred_fallthru
      _
    // Predicated region
    $region14: #{_fused_forward.1} parent=1 // pred_check
      _
    $region15: #{_fused_forward.1} parent=1 // pred_check_branch
      %26 = sbr.rel (0) target = $region17
    $region16: #{_fused_forward.1} parent=1 // pred_region
      %28 = vsyncadd [#allocation3], 0
      %s29 = sshll.u32 %s3, 4
      %s30 = int_to_ptr.hbm [resolvable:$true] %s29
      %s31 = sshll.u32 [#allocation2], 4
      %s32 = int_to_ptr.vmem [resolvable:$true] %s31
      %37 = dma.hbm_to_vmem [thread:$0]  %s30, 8192, %s32, [#allocation3], 256, 256, 16
    $region17: #{_fused_forward.1} parent=1 // pred_fallthru
      _
    // Predicated region
    $region18: #{_fused_forward.1} parent=1 // pred_check
      _
    $region19: #{_fused_forward.1} parent=1 // pred_check_branch
      %39 = sbr.rel (0) target = $region21
    $region20: #{_fused_forward.1} parent=1 // pred_region
      _
    $region21: #{_fused_forward.1} parent=1 // pred_fallthru
      _
    // Predicated region
    $region22: #{_fused_forward.1} parent=1 // pred_check
      _
    $region23: #{_fused_forward.1} parent=1 // pred_check_branch
      %41 = sbr.rel (0) target = $region25
    $region24: #{_fused_forward.1} parent=1 // pred_region
      %43 = vsyncadd [#allocation5], 0
      %s44 = sshll.u32 %s5, 4
      %s45 = int_to_ptr.hbm [resolvable:$true] %s44
      %s46 = sshll.u32 [#allocation4], 4
      %s47 = int_to_ptr.vmem [resolvable:$true] %s46
      %52 = dma.hbm_to_vmem [thread:$0]  %s45, 8192, %s47, [#allocation5], 256, 256, 16
    $region25: #{_fused_forward.1} parent=1 // pred_fallthru
      _
    // Predicated region
    $region26: #{_fused_forward.1} parent=1 // pred_check
      _
    $region27: #{_fused_forward.1} parent=1 // pred_check_branch
      %54 = sbr.rel (0) target = $region29
    $region28: #{_fused_forward.1} parent=1 // pred_region
      _
    $region29: #{_fused_forward.1} parent=1 // pred_fallthru
      _
    // Predicated region
    $region30: #{_fused_forward.1} parent=1 // pred_check
      _
    $region31: #{_fused_forward.1} parent=1 // pred_check_branch
      %56 = sbr.rel (0) target = $region33
    $region32: #{_fused_forward.1} parent=1 // pred_region
      %58 = vsyncadd [#allocation5], 0
      %s59 = sshll.u32 %s7, 4
      %s60 = int_to_ptr.hbm [resolvable:$true] %s59
      %s61 = sshll.u32 [#allocation6], 4
      %s62 = int_to_ptr.vmem [resolvable:$true] %s61
      %67 = dma.hbm_to_vmem [thread:$0]  %s60, 8192, %s62, [#allocation5], 256, 256, 16
    $region33: #{_fused_forward.1} parent=1 // pred_fallthru
      _
    // Predicated region
    $region34: #{_fused_forward.1} parent=1 // pred_check
      _
    $region35: #{_fused_forward.1} parent=1 // pred_check_branch
      %69 = sbr.rel (0) target = $region37
    $region36: #{_fused_forward.1} parent=1 // pred_region
      _
    $region37: #{_fused_forward.1} parent=1 // pred_fallthru
      _
    // Predicated region
    $region38: #{_fused_forward.1} parent=1 // pred_check
      _
    $region39: #{_fused_forward.1} parent=1 // pred_check_branch
      %71 = sbr.rel (0) target = $region41
    $region40: #{_fused_forward.1} parent=1 // pred_region
      %73 = vsyncadd [#allocation8], 0
      %s74 = sshll.u32 %s9, 4
      %s75 = int_to_ptr.hbm [resolvable:$true] %s74
      %s76 = sshll.u32 [#allocation7], 4
      %s77 = int_to_ptr.vmem [resolvable:$true] %s76
      %82 = dma.hbm_to_vmem [thread:$0]  %s75, 32768, %s77, [#allocation8], 1024, 1024, 64
    $region41: #{_fused_forward.1} parent=1 // pred_fallthru
      _
    // Predicated region
    $region42: #{_fused_forward.1} parent=1 // pred_check
      _
    $region43: #{_fused_forward.1} parent=1 // pred_check_branch
      %84 = sbr.rel (0) target = $region45
    $region44: #{_fused_forward.1} parent=1 // pred_region
      _
    $region45: #{_fused_forward.1} parent=1 // pred_fallthru
      _
    // Predicated region
    $region46: #{_fused_forward.1} parent=1 // pred_check
      _
    $region47: #{_fused_forward.1} parent=1 // pred_check_branch
      %86 = sbr.rel (0) target = $region49
    $region48: #{_fused_forward.1} parent=1 // pred_region
      %88 = dma.done [#allocation3], 8192
    $region49: #{_fused_forward.1} parent=1 // pred_fallthru
      _
    // Predicated region
    $region50: #{_fused_forward.1} parent=1 // pred_check
      _
    $region51: #{_fused_forward.1} parent=1 // pred_check_branch
      %90 = sbr.rel (0) target = $region53
    $region52: #{_fused_forward.1} parent=1 // pred_region
      %92 = dma.done [#allocation5], 8192
    $region53: #{_fused_forward.1} parent=1 // pred_fallthru
      _
    // Predicated region
    $region54: #{_fused_forward.1} parent=1 // pred_check
      _
    $region55: #{_fused_forward.1} parent=1 // pred_check_branch
      %94 = sbr.rel (0) target = $region57
    $region56: #{_fused_forward.1} parent=1 // pred_region
      %96 = dma.done [#allocation5], 8192
    $region57: #{_fused_forward.1} parent=1 // pred_fallthru
      _
    // Predicated region
    $region58: #{_fused_forward.1} parent=1 // pred_check
      _
    $region59: #{_fused_forward.1} parent=1 // pred_check_branch
      %98 = sbr.rel (0) target = $region61
    $region60: #{_fused_forward.1} parent=1 // pred_region
      %100 = dma.done [#allocation8], 32768
    $region61: #{_fused_forward.1} parent=1 // pred_fallthru
      _
    %v101 = vld [vmem:[%s0] sm:$0xff]
    %v102 = vld [vmem:[%s0 + $0x8] sm:$0xff]
    %v103 = vld [vmem:[%s0 + $0x10] sm:$0xff]
    %v104 = vld [vmem:[%s0 + $0x18] sm:$0xff]
    %v105 = vld [vmem:[%s0 + $0x20] sm:$0xff]
    %v106 = vld [vmem:[%s0 + $0x28] sm:$0xff]
    %v107 = vld [vmem:[%s0 + $0x30] sm:$0xff]
    %v108 = vld [vmem:[%s0 + $0x38] sm:$0xff]
    %v109 = vld [vmem:[%s0 + $0x40] sm:$0xff]
    %v110 = vld [vmem:[%s0 + $0x48] sm:$0xff]
    %v111 = vld [vmem:[%s0 + $0x50] sm:$0xff]
    %v112 = vld [vmem:[%s0 + $0x58] sm:$0xff]
    %v113 = vld [vmem:[%s0 + $0x60] sm:$0xff]
    %v114 = vld [vmem:[%s0 + $0x68] sm:$0xff]
    %v115 = vld [vmem:[%s0 + $0x70] sm:$0xff]
    %v116 = vld [vmem:[%s0 + $0x78] sm:$0xff]
    %v117 = vld [vmem:[%s0 + $0x80] sm:$0xff]
    %v118 = vld [vmem:[%s0 + $0x88] sm:$0xff]
    %v119 = vld [vmem:[%s0 + $0x90] sm:$0xff]
    %v120 = vld [vmem:[%s0 + $0x98] sm:$0xff]
    %v121 = vld [vmem:[%s0 + $0xa0] sm:$0xff]
    %v122 = vld [vmem:[%s0 + $0xa8] sm:$0xff]
    %v123 = vld [vmem:[%s0 + $0xb0] sm:$0xff]
    %v124 = vld [vmem:[%s0 + $0xb8] sm:$0xff]
    %v125 = vld [vmem:[%s0 + $0xc0] sm:$0xff]
    %v126 = vld [vmem:[%s0 + $0xc8] sm:$0xff]
    %v127 = vld [vmem:[%s0 + $0xd0] sm:$0xff]
    %v128 = vld [vmem:[%s0 + $0xd8] sm:$0xff]
    %v129 = vld [vmem:[%s0 + $0xe0] sm:$0xff]
    %v130 = vld [vmem:[%s0 + $0xe8] sm:$0xff]
    %v131 = vld [vmem:[%s0 + $0xf0] sm:$0xff]
    %v132 = vld [vmem:[%s0 + $0xf8] sm:$0xff]
    %v133 = vld [vmem:[%s0 + $0x100] sm:$0xff]
    %v134 = vld [vmem:[%s0 + $0x108] sm:$0xff]
    %v135 = vld [vmem:[%s0 + $0x110] sm:$0xff]
    %v136 = vld [vmem:[%s0 + $0x118] sm:$0xff]
    %v137 = vld [vmem:[%s0 + $0x120] sm:$0xff]
    %v138 = vld [vmem:[%s0 + $0x128] sm:$0xff]
    %v139 = vld [vmem:[%s0 + $0x130] sm:$0xff]
    %v140 = vld [vmem:[%s0 + $0x138] sm:$0xff]
    %v141 = vld [vmem:[%s0 + $0x140] sm:$0xff]
    %v142 = vld [vmem:[%s0 + $0x148] sm:$0xff]
    %v143 = vld [vmem:[%s0 + $0x150] sm:$0xff]
    %v144 = vld [vmem:[%s0 + $0x158] sm:$0xff]
    %v145 = vld [vmem:[%s0 + $0x160] sm:$0xff]
    %v146 = vld [vmem:[%s0 + $0x168] sm:$0xff]
    %v147 = vld [vmem:[%s0 + $0x170] sm:$0xff]
    %v148 = vld [vmem:[%s0 + $0x178] sm:$0xff]
    %v149 = vld [vmem:[%s0 + $0x180] sm:$0xff]
    %v150 = vld [vmem:[%s0 + $0x188] sm:$0xff]
    %v151 = vld [vmem:[%s0 + $0x190] sm:$0xff]
    %v152 = vld [vmem:[%s0 + $0x198] sm:$0xff]
    %v153 = vld [vmem:[%s0 + $0x1a0] sm:$0xff]
    %v154 = vld [vmem:[%s0 + $0x1a8] sm:$0xff]
    %v155 = vld [vmem:[%s0 + $0x1b0] sm:$0xff]
    %v156 = vld [vmem:[%s0 + $0x1b8] sm:$0xff]
    %v157 = vld [vmem:[%s0 + $0x1c0] sm:$0xff]
    %v158 = vld [vmem:[%s0 + $0x1c8] sm:$0xff]
    %v159 = vld [vmem:[%s0 + $0x1d0] sm:$0xff]
    %v160 = vld [vmem:[%s0 + $0x1d8] sm:$0xff]
    %v161 = vld [vmem:[%s0 + $0x1e0] sm:$0xff]
    %v162 = vld [vmem:[%s0 + $0x1e8] sm:$0xff]
    %v163 = vld [vmem:[%s0 + $0x1f0] sm:$0xff]
    %v164 = vld [vmem:[%s0 + $0x1f8] sm:$0xff]
    %v165 = vld [vmem:[%s1] sm:$0xff]
    %v166 = vld [vmem:[%s1 + $0x8] sm:$0xff]
    %v167 = vld [vmem:[%s1 + $0x10] sm:$0xff]
    %v168 = vld [vmem:[%s1 + $0x18] sm:$0xff]
    %v169 = vld [vmem:[%s1 + $0x20] sm:$0xff]
    %v170 = vld [vmem:[%s1 + $0x28] sm:$0xff]
    %v171 = vld [vmem:[%s1 + $0x30] sm:$0xff]
    %v172 = vld [vmem:[%s1 + $0x38] sm:$0xff]
    %v173 = vld [vmem:[%s1 + $0x40] sm:$0xff]
    %v174 = vld [vmem:[%s1 + $0x48] sm:$0xff]
    %v175 = vld [vmem:[%s1 + $0x50] sm:$0xff]
    %v176 = vld [vmem:[%s1 + $0x58] sm:$0xff]
    %v177 = vld [vmem:[%s1 + $0x60] sm:$0xff]
    %v178 = vld [vmem:[%s1 + $0x68] sm:$0xff]
    %v179 = vld [vmem:[%s1 + $0x70] sm:$0xff]
    %v180 = vld [vmem:[%s1 + $0x78] sm:$0xff]
    %v181 = vld [vmem:[%s1 + $0x80] sm:$0xff]
    %v182 = vld [vmem:[%s1 + $0x88] sm:$0xff]
    %v183 = vld [vmem:[%s1 + $0x90] sm:$0xff]
    %v184 = vld [vmem:[%s1 + $0x98] sm:$0xff]
    %v185 = vld [vmem:[%s1 + $0xa0] sm:$0xff]
    %v186 = vld [vmem:[%s1 + $0xa8] sm:$0xff]
    %v187 = vld [vmem:[%s1 + $0xb0] sm:$0xff]
    %v188 = vld [vmem:[%s1 + $0xb8] sm:$0xff]
    %v189 = vld [vmem:[%s1 + $0xc0] sm:$0xff]
    %v190 = vld [vmem:[%s1 + $0xc8] sm:$0xff]
    %v191 = vld [vmem:[%s1 + $0xd0] sm:$0xff]
    %v192 = vld [vmem:[%s1 + $0xd8] sm:$0xff]
    %v193 = vld [vmem:[%s1 + $0xe0] sm:$0xff]
    %v194 = vld [vmem:[%s1 + $0xe8] sm:$0xff]
    %v195 = vld [vmem:[%s1 + $0xf0] sm:$0xff]
    %v196 = vld [vmem:[%s1 + $0xf8] sm:$0xff]
    %v197 = vld [vmem:[%s1 + $0x100] sm:$0xff]
    %v198 = vld [vmem:[%s1 + $0x108] sm:$0xff]
    %v199 = vld [vmem:[%s1 + $0x110] sm:$0xff]
    %v200 = vld [vmem:[%s1 + $0x118] sm:$0xff]
    %v201 = vld [vmem:[%s1 + $0x120] sm:$0xff]
    %v202 = vld [vmem:[%s1 + $0x128] sm:$0xff]
    %v203 = vld [vmem:[%s1 + $0x130] sm:$0xff]
    %v204 = vld [vmem:[%s1 + $0x138] sm:$0xff]
    %v205 = vld [vmem:[%s1 + $0x140] sm:$0xff]
    %v206 = vld [vmem:[%s1 + $0x148] sm:$0xff]
    %v207 = vld [vmem:[%s1 + $0x150] sm:$0xff]
    %v208 = vld [vmem:[%s1 + $0x158] sm:$0xff]
    %v209 = vld [vmem:[%s1 + $0x160] sm:$0xff]
    %v210 = vld [vmem:[%s1 + $0x168] sm:$0xff]
    %v211 = vld [vmem:[%s1 + $0x170] sm:$0xff]
    %v212 = vld [vmem:[%s1 + $0x178] sm:$0xff]
    %v213 = vld [vmem:[%s1 + $0x180] sm:$0xff]
    %v214 = vld [vmem:[%s1 + $0x188] sm:$0xff]
    %v215 = vld [vmem:[%s1 + $0x190] sm:$0xff]
    %v216 = vld [vmem:[%s1 + $0x198] sm:$0xff]
    %v217 = vld [vmem:[%s1 + $0x1a0] sm:$0xff]
    %v218 = vld [vmem:[%s1 + $0x1a8] sm:$0xff]
    %v219 = vld [vmem:[%s1 + $0x1b0] sm:$0xff]
    %v220 = vld [vmem:[%s1 + $0x1b8] sm:$0xff]
    %v221 = vld [vmem:[%s1 + $0x1c0] sm:$0xff]
    %v222 = vld [vmem:[%s1 + $0x1c8] sm:$0xff]
    %v223 = vld [vmem:[%s1 + $0x1d0] sm:$0xff]
    %v224 = vld [vmem:[%s1 + $0x1d8] sm:$0xff]
    %v225 = vld [vmem:[%s1 + $0x1e0] sm:$0xff]
    %v226 = vld [vmem:[%s1 + $0x1e8] sm:$0xff]
    %v227 = vld [vmem:[%s1 + $0x1f0] sm:$0xff]
    %v228 = vld [vmem:[%s1 + $0x1f8] sm:$0xff]
    %v229 = vld [vmem:[%s2] sm:$0x3]
    %v231 = vperm.slane %v229, 0
    %v232 = vperm.slane %v229, 1
    %235 = vmatpush.msra.mxu0 %v195
    %236 = vmatpush.msra.mxu0 %v193
    %237 = vmatpush.msra.mxu0 %v191
    %238 = vmatpush.msra.mxu0 %v189
    %239 = vmatpush.msra.mxu0 %v187
    %240 = vmatpush.msra.mxu0 %v185
    %241 = vmatpush.msra.mxu0 %v183
    %242 = vmatpush.msra.mxu0 %v181
    %243 = vmatpush.msra.mxu0 %v179
    %244 = vmatpush.msra.mxu0 %v177
    %245 = vmatpush.msra.mxu0 %v175
    %246 = vmatpush.msra.mxu0 %v173
    %247 = vmatpush.msra.mxu0 %v171
    %248 = vmatpush.msra.mxu0 %v169
    %249 = vmatpush.msra.mxu0 %v167
    %250 = vmatpush.msra.mxu0 %v165
    %251 = vmatmul.f32.gmra.mxu0 %v101
    %v252 = vpop.f32.mrf.mxu0
    %v253 = vadd.f32 %v231, %v252
    %254 = vmatmul.f32.gmra.mxu0 %v103
    %v255 = vpop.f32.mrf.mxu0
    %v256 = vadd.f32 %v231, %v255
    %257 = vmatmul.f32.gmra.mxu0 %v105
    %v258 = vpop.f32.mrf.mxu0
    %v259 = vadd.f32 %v231, %v258
    %260 = vmatmul.f32.gmra.mxu0 %v107
    %v261 = vpop.f32.mrf.mxu0
    %v262 = vadd.f32 %v231, %v261
    %263 = vmatmul.f32.gmra.mxu0 %v109
    %v264 = vpop.f32.mrf.mxu0
    %v265 = vadd.f32 %v231, %v264
    %266 = vmatmul.f32.gmra.mxu0 %v111
    %v267 = vpop.f32.mrf.mxu0
    %v268 = vadd.f32 %v231, %v267
    %269 = vmatmul.f32.gmra.mxu0 %v113
    %v270 = vpop.f32.mrf.mxu0
    %v271 = vadd.f32 %v231, %v270
    %272 = vmatmul.f32.gmra.mxu0 %v115
    %v273 = vpop.f32.mrf.mxu0
    %v274 = vadd.f32 %v231, %v273
    %275 = vmatmul.f32.gmra.mxu0 %v117
    %v276 = vpop.f32.mrf.mxu0
    %v277 = vadd.f32 %v231, %v276
    %278 = vmatmul.f32.gmra.mxu0 %v119
    %v279 = vpop.f32.mrf.mxu0
    %v280 = vadd.f32 %v231, %v279
    %281 = vmatmul.f32.gmra.mxu0 %v121
    %v282 = vpop.f32.mrf.mxu0
    %v283 = vadd.f32 %v231, %v282
    %284 = vmatmul.f32.gmra.mxu0 %v123
    %v285 = vpop.f32.mrf.mxu0
    %v286 = vadd.f32 %v231, %v285
    %287 = vmatmul.f32.gmra.mxu0 %v125
    %v288 = vpop.f32.mrf.mxu0
    %v289 = vadd.f32 %v231, %v288
    %290 = vmatmul.f32.gmra.mxu0 %v127
    %v291 = vpop.f32.mrf.mxu0
    %v292 = vadd.f32 %v231, %v291
    %293 = vmatmul.f32.gmra.mxu0 %v129
    %v294 = vpop.f32.mrf.mxu0
    %v295 = vadd.f32 %v231, %v294
    %296 = vmatmul.f32.gmra.mxu0 %v131
    %v297 = vpop.f32.mrf.mxu0
    %v298 = vadd.f32 %v231, %v297
    %299 = vmatmul.f32.gmra.mxu0 %v133
    %v300 = vpop.f32.mrf.mxu0
    %v301 = vadd.f32 %v231, %v300
    %302 = vmatmul.f32.gmra.mxu0 %v135
    %v303 = vpop.f32.mrf.mxu0
    %v304 = vadd.f32 %v231, %v303
    %305 = vmatmul.f32.gmra.mxu0 %v137
    %v306 = vpop.f32.mrf.mxu0
    %v307 = vadd.f32 %v231, %v306
    %308 = vmatmul.f32.gmra.mxu0 %v139
    %v309 = vpop.f32.mrf.mxu0
    %v310 = vadd.f32 %v231, %v309
    %311 = vmatmul.f32.gmra.mxu0 %v141
    %v312 = vpop.f32.mrf.mxu0
    %v313 = vadd.f32 %v231, %v312
    %314 = vmatmul.f32.gmra.mxu0 %v143
    %v315 = vpop.f32.mrf.mxu0
    %v316 = vadd.f32 %v231, %v315
    %317 = vmatmul.f32.gmra.mxu0 %v145
    %v318 = vpop.f32.mrf.mxu0
    %v319 = vadd.f32 %v231, %v318
    %320 = vmatmul.f32.gmra.mxu0 %v147
    %v321 = vpop.f32.mrf.mxu0
    %v322 = vadd.f32 %v231, %v321
    %323 = vmatmul.f32.gmra.mxu0 %v149
    %v324 = vpop.f32.mrf.mxu0
    %v325 = vadd.f32 %v231, %v324
    %326 = vmatmul.f32.gmra.mxu0 %v151
    %v327 = vpop.f32.mrf.mxu0
    %v328 = vadd.f32 %v231, %v327
    %329 = vmatmul.f32.gmra.mxu0 %v153
    %v330 = vpop.f32.mrf.mxu0
    %v331 = vadd.f32 %v231, %v330
    %332 = vmatmul.f32.gmra.mxu0 %v155
    %v333 = vpop.f32.mrf.mxu0
    %v334 = vadd.f32 %v231, %v333
    %335 = vmatmul.f32.gmra.mxu0 %v157
    %v336 = vpop.f32.mrf.mxu0
    %v337 = vadd.f32 %v231, %v336
    %338 = vmatmul.f32.gmra.mxu0 %v159
    %v339 = vpop.f32.mrf.mxu0
    %v340 = vadd.f32 %v231, %v339
    %341 = vmatmul.f32.gmra.mxu0 %v161
    %v342 = vpop.f32.mrf.mxu0
    %v343 = vadd.f32 %v231, %v342
    %344 = vmatmul.f32.gmra.mxu0 %v163
    %v345 = vpop.f32.mrf.mxu0
    %v346 = vadd.f32 %v231, %v345
    %347 = vdwg.mxu0
    %348 = vmatpush.msra.mxu0 %v227
    %349 = vmatpush.msra.mxu0 %v225
    %350 = vmatpush.msra.mxu0 %v223
    %351 = vmatpush.msra.mxu0 %v221
    %352 = vmatpush.msra.mxu0 %v219
    %353 = vmatpush.msra.mxu0 %v217
    %354 = vmatpush.msra.mxu0 %v215
    %355 = vmatpush.msra.mxu0 %v213
    %356 = vmatpush.msra.mxu0 %v211
    %357 = vmatpush.msra.mxu0 %v209
    %358 = vmatpush.msra.mxu0 %v207
    %359 = vmatpush.msra.mxu0 %v205
    %360 = vmatpush.msra.mxu0 %v203
    %361 = vmatpush.msra.mxu0 %v201
    %362 = vmatpush.msra.mxu0 %v199
    %363 = vmatpush.msra.mxu0 %v197
    %364 = vmatmul.f32.gmra.mxu0 %v102
    %v365 = vpop.f32.mrf.mxu0
    %v366 = vadd.f32 %v253, %v365
    %367 = vmatmul.f32.gmra.mxu0 %v104
    %v368 = vpop.f32.mrf.mxu0
    %v369 = vadd.f32 %v256, %v368
    %370 = vmatmul.f32.gmra.mxu0 %v106
    %v371 = vpop.f32.mrf.mxu0
    %v372 = vadd.f32 %v259, %v371
    %373 = vmatmul.f32.gmra.mxu0 %v108
    %v374 = vpop.f32.mrf.mxu0
    %v375 = vadd.f32 %v262, %v374
    %376 = vmatmul.f32.gmra.mxu0 %v110
    %v377 = vpop.f32.mrf.mxu0
    %v378 = vadd.f32 %v265, %v377
    %379 = vmatmul.f32.gmra.mxu0 %v112
    %v380 = vpop.f32.mrf.mxu0
    %v381 = vadd.f32 %v268, %v380
    %382 = vmatmul.f32.gmra.mxu0 %v114
    %v383 = vpop.f32.mrf.mxu0
    %v384 = vadd.f32 %v271, %v383
    %385 = vmatmul.f32.gmra.mxu0 %v116
    %v386 = vpop.f32.mrf.mxu0
    %v387 = vadd.f32 %v274, %v386
    %388 = vmatmul.f32.gmra.mxu0 %v118
    %v389 = vpop.f32.mrf.mxu0
    %v390 = vadd.f32 %v277, %v389
    %391 = vmatmul.f32.gmra.mxu0 %v120
    %v392 = vpop.f32.mrf.mxu0
    %v393 = vadd.f32 %v280, %v392
    %394 = vmatmul.f32.gmra.mxu0 %v122
    %v395 = vpop.f32.mrf.mxu0
    %v396 = vadd.f32 %v283, %v395
    %397 = vmatmul.f32.gmra.mxu0 %v124
    %v398 = vpop.f32.mrf.mxu0
    %v399 = vadd.f32 %v286, %v398
    %400 = vmatmul.f32.gmra.mxu0 %v126
    %v401 = vpop.f32.mrf.mxu0
    %v402 = vadd.f32 %v289, %v401
    %403 = vmatmul.f32.gmra.mxu0 %v128
    %v404 = vpop.f32.mrf.mxu0
    %v405 = vadd.f32 %v292, %v404
    %406 = vmatmul.f32.gmra.mxu0 %v130
    %v407 = vpop.f32.mrf.mxu0
    %v408 = vadd.f32 %v295, %v407
    %409 = vmatmul.f32.gmra.mxu0 %v132
    %v410 = vpop.f32.mrf.mxu0
    %v411 = vadd.f32 %v298, %v410
    %412 = vmatmul.f32.gmra.mxu0 %v134
    %v413 = vpop.f32.mrf.mxu0
    %v414 = vadd.f32 %v301, %v413
    %415 = vmatmul.f32.gmra.mxu0 %v136
    %v416 = vpop.f32.mrf.mxu0
    %v417 = vadd.f32 %v304, %v416
    %418 = vmatmul.f32.gmra.mxu0 %v138
    %v419 = vpop.f32.mrf.mxu0
    %v420 = vadd.f32 %v307, %v419
    %421 = vmatmul.f32.gmra.mxu0 %v140
    %v422 = vpop.f32.mrf.mxu0
    %v423 = vadd.f32 %v310, %v422
    %424 = vmatmul.f32.gmra.mxu0 %v142
    %v425 = vpop.f32.mrf.mxu0
    %v426 = vadd.f32 %v313, %v425
    %427 = vmatmul.f32.gmra.mxu0 %v144
    %v428 = vpop.f32.mrf.mxu0
    %v429 = vadd.f32 %v316, %v428
    %430 = vmatmul.f32.gmra.mxu0 %v146
    %v431 = vpop.f32.mrf.mxu0
    %v432 = vadd.f32 %v319, %v431
    %433 = vmatmul.f32.gmra.mxu0 %v148
    %v434 = vpop.f32.mrf.mxu0
    %v435 = vadd.f32 %v322, %v434
    %436 = vmatmul.f32.gmra.mxu0 %v150
    %v437 = vpop.f32.mrf.mxu0
    %v438 = vadd.f32 %v325, %v437
    %439 = vmatmul.f32.gmra.mxu0 %v152
    %v440 = vpop.f32.mrf.mxu0
    %v441 = vadd.f32 %v328, %v440
    %442 = vmatmul.f32.gmra.mxu0 %v154
    %v443 = vpop.f32.mrf.mxu0
    %v444 = vadd.f32 %v331, %v443
    %445 = vmatmul.f32.gmra.mxu0 %v156
    %v446 = vpop.f32.mrf.mxu0
    %v447 = vadd.f32 %v334, %v446
    %448 = vmatmul.f32.gmra.mxu0 %v158
    %v449 = vpop.f32.mrf.mxu0
    %v450 = vadd.f32 %v337, %v449
    %451 = vmatmul.f32.gmra.mxu0 %v160
    %v452 = vpop.f32.mrf.mxu0
    %v453 = vadd.f32 %v340, %v452
    %454 = vmatmul.f32.gmra.mxu0 %v162
    %v455 = vpop.f32.mrf.mxu0
    %v456 = vadd.f32 %v343, %v455
    %457 = vmatmul.f32.gmra.mxu0 %v164
    %v458 = vpop.f32.mrf.mxu0
    %v459 = vadd.f32 %v346, %v458
    %460 = vdwg.mxu0
    %461 = vmatpush.msra.mxu0 %v196
    %462 = vmatpush.msra.mxu0 %v194
    %463 = vmatpush.msra.mxu0 %v192
    %464 = vmatpush.msra.mxu0 %v190
    %465 = vmatpush.msra.mxu0 %v188
    %466 = vmatpush.msra.mxu0 %v186
    %467 = vmatpush.msra.mxu0 %v184
    %468 = vmatpush.msra.mxu0 %v182
    %469 = vmatpush.msra.mxu0 %v180
    %470 = vmatpush.msra.mxu0 %v178
    %471 = vmatpush.msra.mxu0 %v176
    %472 = vmatpush.msra.mxu0 %v174
    %473 = vmatpush.msra.mxu0 %v172
    %474 = vmatpush.msra.mxu0 %v170
    %475 = vmatpush.msra.mxu0 %v168
    %476 = vmatpush.msra.mxu0 %v166
    %477 = vmatmul.f32.gmra.mxu0 %v101
    %v478 = vpop.f32.mrf.mxu0
    %v479 = vadd.f32 %v232, %v478
    %480 = vmatmul.f32.gmra.mxu0 %v103
    %v481 = vpop.f32.mrf.mxu0
    %v482 = vadd.f32 %v232, %v481
    %483 = vmatmul.f32.gmra.mxu0 %v105
    %v484 = vpop.f32.mrf.mxu0
    %v485 = vadd.f32 %v232, %v484
    %486 = vmatmul.f32.gmra.mxu0 %v107
    %v487 = vpop.f32.mrf.mxu0
    %v488 = vadd.f32 %v232, %v487
    %489 = vmatmul.f32.gmra.mxu0 %v109
    %v490 = vpop.f32.mrf.mxu0
    %v491 = vadd.f32 %v232, %v490
    %492 = vmatmul.f32.gmra.mxu0 %v111
    %v493 = vpop.f32.mrf.mxu0
    %v494 = vadd.f32 %v232, %v493
    %495 = vmatmul.f32.gmra.mxu0 %v113
    %v496 = vpop.f32.mrf.mxu0
    %v497 = vadd.f32 %v232, %v496
    %498 = vmatmul.f32.gmra.mxu0 %v115
    %v499 = vpop.f32.mrf.mxu0
    %v500 = vadd.f32 %v232, %v499
    %501 = vmatmul.f32.gmra.mxu0 %v117
    %v502 = vpop.f32.mrf.mxu0
    %v503 = vadd.f32 %v232, %v502
    %504 = vmatmul.f32.gmra.mxu0 %v119
    %v505 = vpop.f32.mrf.mxu0
    %v506 = vadd.f32 %v232, %v505
    %507 = vmatmul.f32.gmra.mxu0 %v121
    %v508 = vpop.f32.mrf.mxu0
    %v509 = vadd.f32 %v232, %v508
    %510 = vmatmul.f32.gmra.mxu0 %v123
    %v511 = vpop.f32.mrf.mxu0
    %v512 = vadd.f32 %v232, %v511
    %513 = vmatmul.f32.gmra.mxu0 %v125
    %v514 = vpop.f32.mrf.mxu0
    %v515 = vadd.f32 %v232, %v514
    %516 = vmatmul.f32.gmra.mxu0 %v127
    %v517 = vpop.f32.mrf.mxu0
    %v518 = vadd.f32 %v232, %v517
    %519 = vmatmul.f32.gmra.mxu0 %v129
    %v520 = vpop.f32.mrf.mxu0
    %v521 = vadd.f32 %v232, %v520
    %522 = vmatmul.f32.gmra.mxu0 %v131
    %v523 = vpop.f32.mrf.mxu0
    %v524 = vadd.f32 %v232, %v523
    %525 = vmatmul.f32.gmra.mxu0 %v133
    %v526 = vpop.f32.mrf.mxu0
    %v527 = vadd.f32 %v232, %v526
    %528 = vmatmul.f32.gmra.mxu0 %v135
    %v529 = vpop.f32.mrf.mxu0
    %v530 = vadd.f32 %v232, %v529
    %531 = vmatmul.f32.gmra.mxu0 %v137
    %v532 = vpop.f32.mrf.mxu0
    %v533 = vadd.f32 %v232, %v532
    %534 = vmatmul.f32.gmra.mxu0 %v139
    %v535 = vpop.f32.mrf.mxu0
    %v536 = vadd.f32 %v232, %v535
    %537 = vmatmul.f32.gmra.mxu0 %v141
    %v538 = vpop.f32.mrf.mxu0
    %v539 = vadd.f32 %v232, %v538
    %540 = vmatmul.f32.gmra.mxu0 %v143
    %v541 = vpop.f32.mrf.mxu0
    %v542 = vadd.f32 %v232, %v541
    %543 = vmatmul.f32.gmra.mxu0 %v145
    %v544 = vpop.f32.mrf.mxu0
    %v545 = vadd.f32 %v232, %v544
    %546 = vmatmul.f32.gmra.mxu0 %v147
    %v547 = vpop.f32.mrf.mxu0
    %v548 = vadd.f32 %v232, %v547
    %549 = vmatmul.f32.gmra.mxu0 %v149
    %v550 = vpop.f32.mrf.mxu0
    %v551 = vadd.f32 %v232, %v550
    %552 = vmatmul.f32.gmra.mxu0 %v151
    %v553 = vpop.f32.mrf.mxu0
    %v554 = vadd.f32 %v232, %v553
    %555 = vmatmul.f32.gmra.mxu0 %v153
    %v556 = vpop.f32.mrf.mxu0
    %v557 = vadd.f32 %v232, %v556
    %558 = vmatmul.f32.gmra.mxu0 %v155
    %v559 = vpop.f32.mrf.mxu0
    %v560 = vadd.f32 %v232, %v559
    %561 = vmatmul.f32.gmra.mxu0 %v157
    %v562 = vpop.f32.mrf.mxu0
    %v563 = vadd.f32 %v232, %v562
    %564 = vmatmul.f32.gmra.mxu0 %v159
    %v565 = vpop.f32.mrf.mxu0
    %v566 = vadd.f32 %v232, %v565
    %567 = vmatmul.f32.gmra.mxu0 %v161
    %v568 = vpop.f32.mrf.mxu0
    %v569 = vadd.f32 %v232, %v568
    %570 = vmatmul.f32.gmra.mxu0 %v163
    %v571 = vpop.f32.mrf.mxu0
    %v572 = vadd.f32 %v232, %v571
    %573 = vdwg.mxu0
    %574 = vmatpush.msra.mxu0 %v228
    %575 = vmatpush.msra.mxu0 %v226
    %576 = vmatpush.msra.mxu0 %v224
    %577 = vmatpush.msra.mxu0 %v222
    %578 = vmatpush.msra.mxu0 %v220
    %579 = vmatpush.msra.mxu0 %v218
    %580 = vmatpush.msra.mxu0 %v216
    %581 = vmatpush.msra.mxu0 %v214
    %582 = vmatpush.msra.mxu0 %v212
    %583 = vmatpush.msra.mxu0 %v210
    %584 = vmatpush.msra.mxu0 %v208
    %585 = vmatpush.msra.mxu0 %v206
    %586 = vmatpush.msra.mxu0 %v204
    %587 = vmatpush.msra.mxu0 %v202
    %588 = vmatpush.msra.mxu0 %v200
    %589 = vmatpush.msra.mxu0 %v198
    %590 = vmatmul.f32.gmra.mxu0 %v102
    %v591 = vpop.f32.mrf.mxu0
    %v592 = vadd.f32 %v479, %v591
    %593 = vmatmul.f32.gmra.mxu0 %v104
    %v594 = vpop.f32.mrf.mxu0
    %v595 = vadd.f32 %v482, %v594
    %596 = vmatmul.f32.gmra.mxu0 %v106
    %v597 = vpop.f32.mrf.mxu0
    %v598 = vadd.f32 %v485, %v597
    %599 = vmatmul.f32.gmra.mxu0 %v108
    %v600 = vpop.f32.mrf.mxu0
    %v601 = vadd.f32 %v488, %v600
    %602 = vmatmul.f32.gmra.mxu0 %v110
    %v603 = vpop.f32.mrf.mxu0
    %v604 = vadd.f32 %v491, %v603
    %605 = vmatmul.f32.gmra.mxu0 %v112
    %v606 = vpop.f32.mrf.mxu0
    %v607 = vadd.f32 %v494, %v606
    %608 = vmatmul.f32.gmra.mxu0 %v114
    %v609 = vpop.f32.mrf.mxu0
    %v610 = vadd.f32 %v497, %v609
    %611 = vmatmul.f32.gmra.mxu0 %v116
    %v612 = vpop.f32.mrf.mxu0
    %v613 = vadd.f32 %v500, %v612
    %614 = vmatmul.f32.gmra.mxu0 %v118
    %v615 = vpop.f32.mrf.mxu0
    %v616 = vadd.f32 %v503, %v615
    %617 = vmatmul.f32.gmra.mxu0 %v120
    %v618 = vpop.f32.mrf.mxu0
    %v619 = vadd.f32 %v506, %v618
    %620 = vmatmul.f32.gmra.mxu0 %v122
    %v621 = vpop.f32.mrf.mxu0
    %v622 = vadd.f32 %v509, %v621
    %623 = vmatmul.f32.gmra.mxu0 %v124
    %v624 = vpop.f32.mrf.mxu0
    %v625 = vadd.f32 %v512, %v624
    %626 = vmatmul.f32.gmra.mxu0 %v126
    %v627 = vpop.f32.mrf.mxu0
    %v628 = vadd.f32 %v515, %v627
    %629 = vmatmul.f32.gmra.mxu0 %v128
    %v630 = vpop.f32.mrf.mxu0
    %v631 = vadd.f32 %v518, %v630
    %632 = vmatmul.f32.gmra.mxu0 %v130
    %v633 = vpop.f32.mrf.mxu0
    %v634 = vadd.f32 %v521, %v633
    %635 = vmatmul.f32.gmra.mxu0 %v132
    %v636 = vpop.f32.mrf.mxu0
    %v637 = vadd.f32 %v524, %v636
    %638 = vmatmul.f32.gmra.mxu0 %v134
    %v639 = vpop.f32.mrf.mxu0
    %v640 = vadd.f32 %v527, %v639
    %641 = vmatmul.f32.gmra.mxu0 %v136
    %v642 = vpop.f32.mrf.mxu0
    %v643 = vadd.f32 %v530, %v642
    %644 = vmatmul.f32.gmra.mxu0 %v138
    %v645 = vpop.f32.mrf.mxu0
    %v646 = vadd.f32 %v533, %v645
    %647 = vmatmul.f32.gmra.mxu0 %v140
    %v648 = vpop.f32.mrf.mxu0
    %v649 = vadd.f32 %v536, %v648
    %650 = vmatmul.f32.gmra.mxu0 %v142
    %v651 = vpop.f32.mrf.mxu0
    %v652 = vadd.f32 %v539, %v651
    %653 = vmatmul.f32.gmra.mxu0 %v144
    %v654 = vpop.f32.mrf.mxu0
    %v655 = vadd.f32 %v542, %v654
    %656 = vmatmul.f32.gmra.mxu0 %v146
    %v657 = vpop.f32.mrf.mxu0
    %v658 = vadd.f32 %v545, %v657
    %659 = vmatmul.f32.gmra.mxu0 %v148
    %v660 = vpop.f32.mrf.mxu0
    %v661 = vadd.f32 %v548, %v660
    %662 = vmatmul.f32.gmra.mxu0 %v150
    %v663 = vpop.f32.mrf.mxu0
    %v664 = vadd.f32 %v551, %v663
    %665 = vmatmul.f32.gmra.mxu0 %v152
    %v666 = vpop.f32.mrf.mxu0
    %v667 = vadd.f32 %v554, %v666
    %668 = vmatmul.f32.gmra.mxu0 %v154
    %v669 = vpop.f32.mrf.mxu0
    %v670 = vadd.f32 %v557, %v669
    %671 = vmatmul.f32.gmra.mxu0 %v156
    %v672 = vpop.f32.mrf.mxu0
    %v673 = vadd.f32 %v560, %v672
    %674 = vmatmul.f32.gmra.mxu0 %v158
    %v675 = vpop.f32.mrf.mxu0
    %v676 = vadd.f32 %v563, %v675
    %677 = vmatmul.f32.gmra.mxu0 %v160
    %v678 = vpop.f32.mrf.mxu0
    %v679 = vadd.f32 %v566, %v678
    %680 = vmatmul.f32.gmra.mxu0 %v162
    %v681 = vpop.f32.mrf.mxu0
    %v682 = vadd.f32 %v569, %v681
    %683 = vmatmul.f32.gmra.mxu0 %v164
    %v684 = vpop.f32.mrf.mxu0
    %v685 = vadd.f32 %v572, %v684
    %686 = vdwg.mxu0
    %v687 = vmax.f32 %v366, 0.0
    %v688 = vmax.f32 %v592, 0.0
    %v689 = vmax.f32 %v369, 0.0
    %v690 = vmax.f32 %v595, 0.0
    %v691 = vmax.f32 %v372, 0.0
    %v692 = vmax.f32 %v598, 0.0
    %v693 = vmax.f32 %v375, 0.0
    %v694 = vmax.f32 %v601, 0.0
    %v695 = vmax.f32 %v378, 0.0
    %v696 = vmax.f32 %v604, 0.0
    %v697 = vmax.f32 %v381, 0.0
    %v698 = vmax.f32 %v607, 0.0
    %v699 = vmax.f32 %v384, 0.0
    %v700 = vmax.f32 %v610, 0.0
    %v701 = vmax.f32 %v387, 0.0
    %v702 = vmax.f32 %v613, 0.0
    %v703 = vmax.f32 %v390, 0.0
    %v704 = vmax.f32 %v616, 0.0
    %v705 = vmax.f32 %v393, 0.0
    %v706 = vmax.f32 %v619, 0.0
    %v707 = vmax.f32 %v396, 0.0
    %v708 = vmax.f32 %v622, 0.0
    %v709 = vmax.f32 %v399, 0.0
    %v710 = vmax.f32 %v625, 0.0
    %v711 = vmax.f32 %v402, 0.0
    %v712 = vmax.f32 %v628, 0.0
    %v713 = vmax.f32 %v405, 0.0
    %v714 = vmax.f32 %v631, 0.0
    %v715 = vmax.f32 %v408, 0.0
    %v716 = vmax.f32 %v634, 0.0
    %v717 = vmax.f32 %v411, 0.0
    %v718 = vmax.f32 %v637, 0.0
    %v719 = vmax.f32 %v414, 0.0
    %v720 = vmax.f32 %v640, 0.0
    %v721 = vmax.f32 %v417, 0.0
    %v722 = vmax.f32 %v643, 0.0
    %v723 = vmax.f32 %v420, 0.0
    %v724 = vmax.f32 %v646, 0.0
    %v725 = vmax.f32 %v423, 0.0
    %v726 = vmax.f32 %v649, 0.0
    %v727 = vmax.f32 %v426, 0.0
    %v728 = vmax.f32 %v652, 0.0
    %v729 = vmax.f32 %v429, 0.0
    %v730 = vmax.f32 %v655, 0.0
    %v731 = vmax.f32 %v432, 0.0
    %v732 = vmax.f32 %v658, 0.0
    %v733 = vmax.f32 %v435, 0.0
    %v734 = vmax.f32 %v661, 0.0
    %v735 = vmax.f32 %v438, 0.0
    %v736 = vmax.f32 %v664, 0.0
    %v737 = vmax.f32 %v441, 0.0
    %v738 = vmax.f32 %v667, 0.0
    %v739 = vmax.f32 %v444, 0.0
    %v740 = vmax.f32 %v670, 0.0
    %v741 = vmax.f32 %v447, 0.0
    %v742 = vmax.f32 %v673, 0.0
    %v743 = vmax.f32 %v450, 0.0
    %v744 = vmax.f32 %v676, 0.0
    %v745 = vmax.f32 %v453, 0.0
    %v746 = vmax.f32 %v679, 0.0
    %v747 = vmax.f32 %v456, 0.0
    %v748 = vmax.f32 %v682, 0.0
    %v749 = vmax.f32 %v459, 0.0
    %v750 = vmax.f32 %v685, 0.0
    %v751 = vld [vmem:[#allocation2] sm:$0xff]
    %v752 = vld [vmem:[#allocation2 + $0x8] sm:$0xff]
    %v753 = vld [vmem:[#allocation2 + $0x10] sm:$0xff]
    %v754 = vld [vmem:[#allocation2 + $0x18] sm:$0xff]
    %v755 = vld [vmem:[#allocation2 + $0x20] sm:$0xff]
    %v756 = vld [vmem:[#allocation2 + $0x28] sm:$0xff]
    %v757 = vld [vmem:[#allocation2 + $0x30] sm:$0xff]
    %v758 = vld [vmem:[#allocation2 + $0x38] sm:$0xff]
    %v759 = vld [vmem:[#allocation2 + $0x40] sm:$0xff]
    %v760 = vld [vmem:[#allocation2 + $0x48] sm:$0xff]
    %v761 = vld [vmem:[#allocation2 + $0x50] sm:$0xff]
    %v762 = vld [vmem:[#allocation2 + $0x58] sm:$0xff]
    %v763 = vld [vmem:[#allocation2 + $0x60] sm:$0xff]
    %v764 = vld [vmem:[#allocation2 + $0x68] sm:$0xff]
    %v765 = vld [vmem:[#allocation2 + $0x70] sm:$0xff]
    %v766 = vld [vmem:[#allocation2 + $0x78] sm:$0xff]
    %v767 = vld [vmem:[#allocation2 + $0x80] sm:$0xff]
    %v768 = vld [vmem:[#allocation2 + $0x88] sm:$0xff]
    %v769 = vld [vmem:[#allocation2 + $0x90] sm:$0xff]
    %v770 = vld [vmem:[#allocation2 + $0x98] sm:$0xff]
    %v771 = vld [vmem:[#allocation2 + $0xa0] sm:$0xff]
    %v772 = vld [vmem:[#allocation2 + $0xa8] sm:$0xff]
    %v773 = vld [vmem:[#allocation2 + $0xb0] sm:$0xff]
    %v774 = vld [vmem:[#allocation2 + $0xb8] sm:$0xff]
    %v775 = vld [vmem:[#allocation2 + $0xc0] sm:$0xff]
    %v776 = vld [vmem:[#allocation2 + $0xc8] sm:$0xff]
    %v777 = vld [vmem:[#allocation2 + $0xd0] sm:$0xff]
    %v778 = vld [vmem:[#allocation2 + $0xd8] sm:$0xff]
    %v779 = vld [vmem:[#allocation2 + $0xe0] sm:$0xff]
    %v780 = vld [vmem:[#allocation2 + $0xe8] sm:$0xff]
    %v781 = vld [vmem:[#allocation2 + $0xf0] sm:$0xff]
    %v782 = vld [vmem:[#allocation2 + $0xf8] sm:$0xff]
    %v783 = vld [vmem:[#allocation2 + $0x100] sm:$0xff]
    %v784 = vld [vmem:[#allocation2 + $0x108] sm:$0xff]
    %v785 = vld [vmem:[#allocation2 + $0x110] sm:$0xff]
    %v786 = vld [vmem:[#allocation2 + $0x118] sm:$0xff]
    %v787 = vld [vmem:[#allocation2 + $0x120] sm:$0xff]
    %v788 = vld [vmem:[#allocation2 + $0x128] sm:$0xff]
    %v789 = vld [vmem:[#allocation2 + $0x130] sm:$0xff]
    %v790 = vld [vmem:[#allocation2 + $0x138] sm:$0xff]
    %v791 = vld [vmem:[#allocation2 + $0x140] sm:$0xff]
    %v792 = vld [vmem:[#allocation2 + $0x148] sm:$0xff]
    %v793 = vld [vmem:[#allocation2 + $0x150] sm:$0xff]
    %v794 = vld [vmem:[#allocation2 + $0x158] sm:$0xff]
    %v795 = vld [vmem:[#allocation2 + $0x160] sm:$0xff]
    %v796 = vld [vmem:[#allocation2 + $0x168] sm:$0xff]
    %v797 = vld [vmem:[#allocation2 + $0x170] sm:$0xff]
    %v798 = vld [vmem:[#allocation2 + $0x178] sm:$0xff]
    %v799 = vld [vmem:[#allocation2 + $0x180] sm:$0xff]
    %v800 = vld [vmem:[#allocation2 + $0x188] sm:$0xff]
    %v801 = vld [vmem:[#allocation2 + $0x190] sm:$0xff]
    %v802 = vld [vmem:[#allocation2 + $0x198] sm:$0xff]
    %v803 = vld [vmem:[#allocation2 + $0x1a0] sm:$0xff]
    %v804 = vld [vmem:[#allocation2 + $0x1a8] sm:$0xff]
    %v805 = vld [vmem:[#allocation2 + $0x1b0] sm:$0xff]
    %v806 = vld [vmem:[#allocation2 + $0x1b8] sm:$0xff]
    %v807 = vld [vmem:[#allocation2 + $0x1c0] sm:$0xff]
    %v808 = vld [vmem:[#allocation2 + $0x1c8] sm:$0xff]
    %v809 = vld [vmem:[#allocation2 + $0x1d0] sm:$0xff]
    %v810 = vld [vmem:[#allocation2 + $0x1d8] sm:$0xff]
    %v811 = vld [vmem:[#allocation2 + $0x1e0] sm:$0xff]
    %v812 = vld [vmem:[#allocation2 + $0x1e8] sm:$0xff]
    %v813 = vld [vmem:[#allocation2 + $0x1f0] sm:$0xff]
    %v814 = vld [vmem:[#allocation2 + $0x1f8] sm:$0xff]
    %v815 = vld [vmem:[%s4] sm:$0x3]
    %v817 = vperm.slane %v815, 0
    %v818 = vperm.slane %v815, 1
    %821 = vmatpush.msra.mxu0 %v781
    %822 = vmatpush.msra.mxu0 %v779
    %823 = vmatpush.msra.mxu0 %v777
    %824 = vmatpush.msra.mxu0 %v775
    %825 = vmatpush.msra.mxu0 %v773
    %826 = vmatpush.msra.mxu0 %v771
    %827 = vmatpush.msra.mxu0 %v769
    %828 = vmatpush.msra.mxu0 %v767
    %829 = vmatpush.msra.mxu0 %v765
    %830 = vmatpush.msra.mxu0 %v763
    %831 = vmatpush.msra.mxu0 %v761
    %832 = vmatpush.msra.mxu0 %v759
    %833 = vmatpush.msra.mxu0 %v757
    %834 = vmatpush.msra.mxu0 %v755
    %835 = vmatpush.msra.mxu0 %v753
    %836 = vmatpush.msra.mxu0 %v751
    %837 = vmatmul.f32.gmra.mxu0 %v687
    %v838 = vpop.f32.mrf.mxu0
    %v839 = vadd.f32 %v817, %v838
    %840 = vmatmul.f32.gmra.mxu0 %v689
    %v841 = vpop.f32.mrf.mxu0
    %v842 = vadd.f32 %v817, %v841
    %843 = vmatmul.f32.gmra.mxu0 %v691
    %v844 = vpop.f32.mrf.mxu0
    %v845 = vadd.f32 %v817, %v844
    %846 = vmatmul.f32.gmra.mxu0 %v693
    %v847 = vpop.f32.mrf.mxu0
    %v848 = vadd.f32 %v817, %v847
    %849 = vmatmul.f32.gmra.mxu0 %v695
    %v850 = vpop.f32.mrf.mxu0
    %v851 = vadd.f32 %v817, %v850
    %852 = vmatmul.f32.gmra.mxu0 %v697
    %v853 = vpop.f32.mrf.mxu0
    %v854 = vadd.f32 %v817, %v853
    %855 = vmatmul.f32.gmra.mxu0 %v699
    %v856 = vpop.f32.mrf.mxu0
    %v857 = vadd.f32 %v817, %v856
    %858 = vmatmul.f32.gmra.mxu0 %v701
    %v859 = vpop.f32.mrf.mxu0
    %v860 = vadd.f32 %v817, %v859
    %861 = vmatmul.f32.gmra.mxu0 %v703
    %v862 = vpop.f32.mrf.mxu0
    %v863 = vadd.f32 %v817, %v862
    %864 = vmatmul.f32.gmra.mxu0 %v705
    %v865 = vpop.f32.mrf.mxu0
    %v866 = vadd.f32 %v817, %v865
    %867 = vmatmul.f32.gmra.mxu0 %v707
    %v868 = vpop.f32.mrf.mxu0
    %v869 = vadd.f32 %v817, %v868
    %870 = vmatmul.f32.gmra.mxu0 %v709
    %v871 = vpop.f32.mrf.mxu0
    %v872 = vadd.f32 %v817, %v871
    %873 = vmatmul.f32.gmra.mxu0 %v711
    %v874 = vpop.f32.mrf.mxu0
    %v875 = vadd.f32 %v817, %v874
    %876 = vmatmul.f32.gmra.mxu0 %v713
    %v877 = vpop.f32.mrf.mxu0
    %v878 = vadd.f32 %v817, %v877
    %879 = vmatmul.f32.gmra.mxu0 %v715
    %v880 = vpop.f32.mrf.mxu0
    %v881 = vadd.f32 %v817, %v880
    %882 = vmatmul.f32.gmra.mxu0 %v717
    %v883 = vpop.f32.mrf.mxu0
    %v884 = vadd.f32 %v817, %v883
    %885 = vmatmul.f32.gmra.mxu0 %v719
    %v886 = vpop.f32.mrf.mxu0
    %v887 = vadd.f32 %v817, %v886
    %888 = vmatmul.f32.gmra.mxu0 %v721
    %v889 = vpop.f32.mrf.mxu0
    %v890 = vadd.f32 %v817, %v889
    %891 = vmatmul.f32.gmra.mxu0 %v723
    %v892 = vpop.f32.mrf.mxu0
    %v893 = vadd.f32 %v817, %v892
    %894 = vmatmul.f32.gmra.mxu0 %v725
    %v895 = vpop.f32.mrf.mxu0
    %v896 = vadd.f32 %v817, %v895
    %897 = vmatmul.f32.gmra.mxu0 %v727
    %v898 = vpop.f32.mrf.mxu0
    %v899 = vadd.f32 %v817, %v898
    %900 = vmatmul.f32.gmra.mxu0 %v729
    %v901 = vpop.f32.mrf.mxu0
    %v902 = vadd.f32 %v817, %v901
    %903 = vmatmul.f32.gmra.mxu0 %v731
    %v904 = vpop.f32.mrf.mxu0
    %v905 = vadd.f32 %v817, %v904
    %906 = vmatmul.f32.gmra.mxu0 %v733
    %v907 = vpop.f32.mrf.mxu0
    %v908 = vadd.f32 %v817, %v907
    %909 = vmatmul.f32.gmra.mxu0 %v735
    %v910 = vpop.f32.mrf.mxu0
    %v911 = vadd.f32 %v817, %v910
    %912 = vmatmul.f32.gmra.mxu0 %v737
    %v913 = vpop.f32.mrf.mxu0
    %v914 = vadd.f32 %v817, %v913
    %915 = vmatmul.f32.gmra.mxu0 %v739
    %v916 = vpop.f32.mrf.mxu0
    %v917 = vadd.f32 %v817, %v916
    %918 = vmatmul.f32.gmra.mxu0 %v741
    %v919 = vpop.f32.mrf.mxu0
    %v920 = vadd.f32 %v817, %v919
    %921 = vmatmul.f32.gmra.mxu0 %v743
    %v922 = vpop.f32.mrf.mxu0
    %v923 = vadd.f32 %v817, %v922
    %924 = vmatmul.f32.gmra.mxu0 %v745
    %v925 = vpop.f32.mrf.mxu0
    %v926 = vadd.f32 %v817, %v925
    %927 = vmatmul.f32.gmra.mxu0 %v747
    %v928 = vpop.f32.mrf.mxu0
    %v929 = vadd.f32 %v817, %v928
    %930 = vmatmul.f32.gmra.mxu0 %v749
    %v931 = vpop.f32.mrf.mxu0
    %v932 = vadd.f32 %v817, %v931
    %933 = vdwg.mxu0
    %934 = vmatpush.msra.mxu0 %v813
    %935 = vmatpush.msra.mxu0 %v811
    %936 = vmatpush.msra.mxu0 %v809
    %937 = vmatpush.msra.mxu0 %v807
    %938 = vmatpush.msra.mxu0 %v805
    %939 = vmatpush.msra.mxu0 %v803
    %940 = vmatpush.msra.mxu0 %v801
    %941 = vmatpush.msra.mxu0 %v799
    %942 = vmatpush.msra.mxu0 %v797
    %943 = vmatpush.msra.mxu0 %v795
    %944 = vmatpush.msra.mxu0 %v793
    %945 = vmatpush.msra.mxu0 %v791
    %946 = vmatpush.msra.mxu0 %v789
    %947 = vmatpush.msra.mxu0 %v787
    %948 = vmatpush.msra.mxu0 %v785
    %949 = vmatpush.msra.mxu0 %v783
    %950 = vmatmul.f32.gmra.mxu0 %v688
    %v951 = vpop.f32.mrf.mxu0
    %v952 = vadd.f32 %v839, %v951
    %953 = vmatmul.f32.gmra.mxu0 %v690
    %v954 = vpop.f32.mrf.mxu0
    %v955 = vadd.f32 %v842, %v954
    %956 = vmatmul.f32.gmra.mxu0 %v692
    %v957 = vpop.f32.mrf.mxu0
    %v958 = vadd.f32 %v845, %v957
    %959 = vmatmul.f32.gmra.mxu0 %v694
    %v960 = vpop.f32.mrf.mxu0
    %v961 = vadd.f32 %v848, %v960
    %962 = vmatmul.f32.gmra.mxu0 %v696
    %v963 = vpop.f32.mrf.mxu0
    %v964 = vadd.f32 %v851, %v963
    %965 = vmatmul.f32.gmra.mxu0 %v698
    %v966 = vpop.f32.mrf.mxu0
    %v967 = vadd.f32 %v854, %v966
    %968 = vmatmul.f32.gmra.mxu0 %v700
    %v969 = vpop.f32.mrf.mxu0
    %v970 = vadd.f32 %v857, %v969
    %971 = vmatmul.f32.gmra.mxu0 %v702
    %v972 = vpop.f32.mrf.mxu0
    %v973 = vadd.f32 %v860, %v972
    %974 = vmatmul.f32.gmra.mxu0 %v704
    %v975 = vpop.f32.mrf.mxu0
    %v976 = vadd.f32 %v863, %v975
    %977 = vmatmul.f32.gmra.mxu0 %v706
    %v978 = vpop.f32.mrf.mxu0
    %v979 = vadd.f32 %v866, %v978
    %980 = vmatmul.f32.gmra.mxu0 %v708
    %v981 = vpop.f32.mrf.mxu0
    %v982 = vadd.f32 %v869, %v981
    %983 = vmatmul.f32.gmra.mxu0 %v710
    %v984 = vpop.f32.mrf.mxu0
    %v985 = vadd.f32 %v872, %v984
    %986 = vmatmul.f32.gmra.mxu0 %v712
    %v987 = vpop.f32.mrf.mxu0
    %v988 = vadd.f32 %v875, %v987
    %989 = vmatmul.f32.gmra.mxu0 %v714
    %v990 = vpop.f32.mrf.mxu0
    %v991 = vadd.f32 %v878, %v990
    %992 = vmatmul.f32.gmra.mxu0 %v716
    %v993 = vpop.f32.mrf.mxu0
    %v994 = vadd.f32 %v881, %v993
    %995 = vmatmul.f32.gmra.mxu0 %v718
    %v996 = vpop.f32.mrf.mxu0
    %v997 = vadd.f32 %v884, %v996
    %998 = vmatmul.f32.gmra.mxu0 %v720
    %v999 = vpop.f32.mrf.mxu0
    %v1000 = vadd.f32 %v887, %v999
    %1001 = vmatmul.f32.gmra.mxu0 %v722
    %v1002 = vpop.f32.mrf.mxu0
    %v1003 = vadd.f32 %v890, %v1002
    %1004 = vmatmul.f32.gmra.mxu0 %v724
    %v1005 = vpop.f32.mrf.mxu0
    %v1006 = vadd.f32 %v893, %v1005
    %1007 = vmatmul.f32.gmra.mxu0 %v726
    %v1008 = vpop.f32.mrf.mxu0
    %v1009 = vadd.f32 %v896, %v1008
    %1010 = vmatmul.f32.gmra.mxu0 %v728
    %v1011 = vpop.f32.mrf.mxu0
    %v1012 = vadd.f32 %v899, %v1011
    %1013 = vmatmul.f32.gmra.mxu0 %v730
    %v1014 = vpop.f32.mrf.mxu0
    %v1015 = vadd.f32 %v902, %v1014
    %1016 = vmatmul.f32.gmra.mxu0 %v732
    %v1017 = vpop.f32.mrf.mxu0
    %v1018 = vadd.f32 %v905, %v1017
    %1019 = vmatmul.f32.gmra.mxu0 %v734
    %v1020 = vpop.f32.mrf.mxu0
    %v1021 = vadd.f32 %v908, %v1020
    %1022 = vmatmul.f32.gmra.mxu0 %v736
    %v1023 = vpop.f32.mrf.mxu0
    %v1024 = vadd.f32 %v911, %v1023
    %1025 = vmatmul.f32.gmra.mxu0 %v738
    %v1026 = vpop.f32.mrf.mxu0
    %v1027 = vadd.f32 %v914, %v1026
    %1028 = vmatmul.f32.gmra.mxu0 %v740
    %v1029 = vpop.f32.mrf.mxu0
    %v1030 = vadd.f32 %v917, %v1029
    %1031 = vmatmul.f32.gmra.mxu0 %v742
    %v1032 = vpop.f32.mrf.mxu0
    %v1033 = vadd.f32 %v920, %v1032
    %1034 = vmatmul.f32.gmra.mxu0 %v744
    %v1035 = vpop.f32.mrf.mxu0
    %v1036 = vadd.f32 %v923, %v1035
    %1037 = vmatmul.f32.gmra.mxu0 %v746
    %v1038 = vpop.f32.mrf.mxu0
    %v1039 = vadd.f32 %v926, %v1038
    %1040 = vmatmul.f32.gmra.mxu0 %v748
    %v1041 = vpop.f32.mrf.mxu0
    %v1042 = vadd.f32 %v929, %v1041
    %1043 = vmatmul.f32.gmra.mxu0 %v750
    %v1044 = vpop.f32.mrf.mxu0
    %v1045 = vadd.f32 %v932, %v1044
    %1046 = vdwg.mxu0
    %1047 = vmatpush.msra.mxu0 %v782
    %1048 = vmatpush.msra.mxu0 %v780
    %1049 = vmatpush.msra.mxu0 %v778
    %1050 = vmatpush.msra.mxu0 %v776
    %1051 = vmatpush.msra.mxu0 %v774
    %1052 = vmatpush.msra.mxu0 %v772
    %1053 = vmatpush.msra.mxu0 %v770
    %1054 = vmatpush.msra.mxu0 %v768
    %1055 = vmatpush.msra.mxu0 %v766
    %1056 = vmatpush.msra.mxu0 %v764
    %1057 = vmatpush.msra.mxu0 %v762
    %1058 = vmatpush.msra.mxu0 %v760
    %1059 = vmatpush.msra.mxu0 %v758
    %1060 = vmatpush.msra.mxu0 %v756
    %1061 = vmatpush.msra.mxu0 %v754
    %1062 = vmatpush.msra.mxu0 %v752
    %1063 = vmatmul.f32.gmra.mxu0 %v687
    %v1064 = vpop.f32.mrf.mxu0
    %v1065 = vadd.f32 %v818, %v1064
    %1066 = vmatmul.f32.gmra.mxu0 %v689
    %v1067 = vpop.f32.mrf.mxu0
    %v1068 = vadd.f32 %v818, %v1067
    %1069 = vmatmul.f32.gmra.mxu0 %v691
    %v1070 = vpop.f32.mrf.mxu0
    %v1071 = vadd.f32 %v818, %v1070
    %1072 = vmatmul.f32.gmra.mxu0 %v693
    %v1073 = vpop.f32.mrf.mxu0
    %v1074 = vadd.f32 %v818, %v1073
    %1075 = vmatmul.f32.gmra.mxu0 %v695
    %v1076 = vpop.f32.mrf.mxu0
    %v1077 = vadd.f32 %v818, %v1076
    %1078 = vmatmul.f32.gmra.mxu0 %v697
    %v1079 = vpop.f32.mrf.mxu0
    %v1080 = vadd.f32 %v818, %v1079
    %1081 = vmatmul.f32.gmra.mxu0 %v699
    %v1082 = vpop.f32.mrf.mxu0
    %v1083 = vadd.f32 %v818, %v1082
    %1084 = vmatmul.f32.gmra.mxu0 %v701
    %v1085 = vpop.f32.mrf.mxu0
    %v1086 = vadd.f32 %v818, %v1085
    %1087 = vmatmul.f32.gmra.mxu0 %v703
    %v1088 = vpop.f32.mrf.mxu0
    %v1089 = vadd.f32 %v818, %v1088
    %1090 = vmatmul.f32.gmra.mxu0 %v705
    %v1091 = vpop.f32.mrf.mxu0
    %v1092 = vadd.f32 %v818, %v1091
    %1093 = vmatmul.f32.gmra.mxu0 %v707
    %v1094 = vpop.f32.mrf.mxu0
    %v1095 = vadd.f32 %v818, %v1094
    %1096 = vmatmul.f32.gmra.mxu0 %v709
    %v1097 = vpop.f32.mrf.mxu0
    %v1098 = vadd.f32 %v818, %v1097
    %1099 = vmatmul.f32.gmra.mxu0 %v711
    %v1100 = vpop.f32.mrf.mxu0
    %v1101 = vadd.f32 %v818, %v1100
    %1102 = vmatmul.f32.gmra.mxu0 %v713
    %v1103 = vpop.f32.mrf.mxu0
    %v1104 = vadd.f32 %v818, %v1103
    %1105 = vmatmul.f32.gmra.mxu0 %v715
    %v1106 = vpop.f32.mrf.mxu0
    %v1107 = vadd.f32 %v818, %v1106
    %1108 = vmatmul.f32.gmra.mxu0 %v717
    %v1109 = vpop.f32.mrf.mxu0
    %v1110 = vadd.f32 %v818, %v1109
    %1111 = vmatmul.f32.gmra.mxu0 %v719
    %v1112 = vpop.f32.mrf.mxu0
    %v1113 = vadd.f32 %v818, %v1112
    %1114 = vmatmul.f32.gmra.mxu0 %v721
    %v1115 = vpop.f32.mrf.mxu0
    %v1116 = vadd.f32 %v818, %v1115
    %1117 = vmatmul.f32.gmra.mxu0 %v723
    %v1118 = vpop.f32.mrf.mxu0
    %v1119 = vadd.f32 %v818, %v1118
    %1120 = vmatmul.f32.gmra.mxu0 %v725
    %v1121 = vpop.f32.mrf.mxu0
    %v1122 = vadd.f32 %v818, %v1121
    %1123 = vmatmul.f32.gmra.mxu0 %v727
    %v1124 = vpop.f32.mrf.mxu0
    %v1125 = vadd.f32 %v818, %v1124
    %1126 = vmatmul.f32.gmra.mxu0 %v729
    %v1127 = vpop.f32.mrf.mxu0
    %v1128 = vadd.f32 %v818, %v1127
    %1129 = vmatmul.f32.gmra.mxu0 %v731
    %v1130 = vpop.f32.mrf.mxu0
    %v1131 = vadd.f32 %v818, %v1130
    %1132 = vmatmul.f32.gmra.mxu0 %v733
    %v1133 = vpop.f32.mrf.mxu0
    %v1134 = vadd.f32 %v818, %v1133
    %1135 = vmatmul.f32.gmra.mxu0 %v735
    %v1136 = vpop.f32.mrf.mxu0
    %v1137 = vadd.f32 %v818, %v1136
    %1138 = vmatmul.f32.gmra.mxu0 %v737
    %v1139 = vpop.f32.mrf.mxu0
    %v1140 = vadd.f32 %v818, %v1139
    %1141 = vmatmul.f32.gmra.mxu0 %v739
    %v1142 = vpop.f32.mrf.mxu0
    %v1143 = vadd.f32 %v818, %v1142
    %1144 = vmatmul.f32.gmra.mxu0 %v741
    %v1145 = vpop.f32.mrf.mxu0
    %v1146 = vadd.f32 %v818, %v1145
    %1147 = vmatmul.f32.gmra.mxu0 %v743
    %v1148 = vpop.f32.mrf.mxu0
    %v1149 = vadd.f32 %v818, %v1148
    %1150 = vmatmul.f32.gmra.mxu0 %v745
    %v1151 = vpop.f32.mrf.mxu0
    %v1152 = vadd.f32 %v818, %v1151
    %1153 = vmatmul.f32.gmra.mxu0 %v747
    %v1154 = vpop.f32.mrf.mxu0
    %v1155 = vadd.f32 %v818, %v1154
    %1156 = vmatmul.f32.gmra.mxu0 %v749
    %v1157 = vpop.f32.mrf.mxu0
    %v1158 = vadd.f32 %v818, %v1157
    %1159 = vdwg.mxu0
    %1160 = vmatpush.msra.mxu0 %v814
    %1161 = vmatpush.msra.mxu0 %v812
    %1162 = vmatpush.msra.mxu0 %v810
    %1163 = vmatpush.msra.mxu0 %v808
    %1164 = vmatpush.msra.mxu0 %v806
    %1165 = vmatpush.msra.mxu0 %v804
    %1166 = vmatpush.msra.mxu0 %v802
    %1167 = vmatpush.msra.mxu0 %v800
    %1168 = vmatpush.msra.mxu0 %v798
    %1169 = vmatpush.msra.mxu0 %v796
    %1170 = vmatpush.msra.mxu0 %v794
    %1171 = vmatpush.msra.mxu0 %v792
    %1172 = vmatpush.msra.mxu0 %v790
    %1173 = vmatpush.msra.mxu0 %v788
    %1174 = vmatpush.msra.mxu0 %v786
    %1175 = vmatpush.msra.mxu0 %v784
    %1176 = vmatmul.f32.gmra.mxu0 %v688
    %v1177 = vpop.f32.mrf.mxu0
    %v1178 = vadd.f32 %v1065, %v1177
    %1179 = vmatmul.f32.gmra.mxu0 %v690
    %v1180 = vpop.f32.mrf.mxu0
    %v1181 = vadd.f32 %v1068, %v1180
    %1182 = vmatmul.f32.gmra.mxu0 %v692
    %v1183 = vpop.f32.mrf.mxu0
    %v1184 = vadd.f32 %v1071, %v1183
    %1185 = vmatmul.f32.gmra.mxu0 %v694
    %v1186 = vpop.f32.mrf.mxu0
    %v1187 = vadd.f32 %v1074, %v1186
    %1188 = vmatmul.f32.gmra.mxu0 %v696
    %v1189 = vpop.f32.mrf.mxu0
    %v1190 = vadd.f32 %v1077, %v1189
    %1191 = vmatmul.f32.gmra.mxu0 %v698
    %v1192 = vpop.f32.mrf.mxu0
    %v1193 = vadd.f32 %v1080, %v1192
    %1194 = vmatmul.f32.gmra.mxu0 %v700
    %v1195 = vpop.f32.mrf.mxu0
    %v1196 = vadd.f32 %v1083, %v1195
    %1197 = vmatmul.f32.gmra.mxu0 %v702
    %v1198 = vpop.f32.mrf.mxu0
    %v1199 = vadd.f32 %v1086, %v1198
    %1200 = vmatmul.f32.gmra.mxu0 %v704
    %v1201 = vpop.f32.mrf.mxu0
    %v1202 = vadd.f32 %v1089, %v1201
    %1203 = vmatmul.f32.gmra.mxu0 %v706
    %v1204 = vpop.f32.mrf.mxu0
    %v1205 = vadd.f32 %v1092, %v1204
    %1206 = vmatmul.f32.gmra.mxu0 %v708
    %v1207 = vpop.f32.mrf.mxu0
    %v1208 = vadd.f32 %v1095, %v1207
    %1209 = vmatmul.f32.gmra.mxu0 %v710
    %v1210 = vpop.f32.mrf.mxu0
    %v1211 = vadd.f32 %v1098, %v1210
    %1212 = vmatmul.f32.gmra.mxu0 %v712
    %v1213 = vpop.f32.mrf.mxu0
    %v1214 = vadd.f32 %v1101, %v1213
    %1215 = vmatmul.f32.gmra.mxu0 %v714
    %v1216 = vpop.f32.mrf.mxu0
    %v1217 = vadd.f32 %v1104, %v1216
    %1218 = vmatmul.f32.gmra.mxu0 %v716
    %v1219 = vpop.f32.mrf.mxu0
    %v1220 = vadd.f32 %v1107, %v1219
    %1221 = vmatmul.f32.gmra.mxu0 %v718
    %v1222 = vpop.f32.mrf.mxu0
    %v1223 = vadd.f32 %v1110, %v1222
    %1224 = vmatmul.f32.gmra.mxu0 %v720
    %v1225 = vpop.f32.mrf.mxu0
    %v1226 = vadd.f32 %v1113, %v1225
    %1227 = vmatmul.f32.gmra.mxu0 %v722
    %v1228 = vpop.f32.mrf.mxu0
    %v1229 = vadd.f32 %v1116, %v1228
    %1230 = vmatmul.f32.gmra.mxu0 %v724
    %v1231 = vpop.f32.mrf.mxu0
    %v1232 = vadd.f32 %v1119, %v1231
    %1233 = vmatmul.f32.gmra.mxu0 %v726
    %v1234 = vpop.f32.mrf.mxu0
    %v1235 = vadd.f32 %v1122, %v1234
    %1236 = vmatmul.f32.gmra.mxu0 %v728
    %v1237 = vpop.f32.mrf.mxu0
    %v1238 = vadd.f32 %v1125, %v1237
    %1239 = vmatmul.f32.gmra.mxu0 %v730
    %v1240 = vpop.f32.mrf.mxu0
    %v1241 = vadd.f32 %v1128, %v1240
    %1242 = vmatmul.f32.gmra.mxu0 %v732
    %v1243 = vpop.f32.mrf.mxu0
    %v1244 = vadd.f32 %v1131, %v1243
    %1245 = vmatmul.f32.gmra.mxu0 %v734
    %v1246 = vpop.f32.mrf.mxu0
    %v1247 = vadd.f32 %v1134, %v1246
    %1248 = vmatmul.f32.gmra.mxu0 %v736
    %v1249 = vpop.f32.mrf.mxu0
    %v1250 = vadd.f32 %v1137, %v1249
    %1251 = vmatmul.f32.gmra.mxu0 %v738
    %v1252 = vpop.f32.mrf.mxu0
    %v1253 = vadd.f32 %v1140, %v1252
    %1254 = vmatmul.f32.gmra.mxu0 %v740
    %v1255 = vpop.f32.mrf.mxu0
    %v1256 = vadd.f32 %v1143, %v1255
    %1257 = vmatmul.f32.gmra.mxu0 %v742
    %v1258 = vpop.f32.mrf.mxu0
    %v1259 = vadd.f32 %v1146, %v1258
    %1260 = vmatmul.f32.gmra.mxu0 %v744
    %v1261 = vpop.f32.mrf.mxu0
    %v1262 = vadd.f32 %v1149, %v1261
    %1263 = vmatmul.f32.gmra.mxu0 %v746
    %v1264 = vpop.f32.mrf.mxu0
    %v1265 = vadd.f32 %v1152, %v1264
    %1266 = vmatmul.f32.gmra.mxu0 %v748
    %v1267 = vpop.f32.mrf.mxu0
    %v1268 = vadd.f32 %v1155, %v1267
    %1269 = vmatmul.f32.gmra.mxu0 %v750
    %v1270 = vpop.f32.mrf.mxu0
    %v1271 = vadd.f32 %v1158, %v1270
    %1272 = vdwg.mxu0
    %v1273 = vmax.f32 %v952, 0.0
    %v1274 = vmax.f32 %v1178, 0.0
    %v1275 = vmax.f32 %v955, 0.0
    %v1276 = vmax.f32 %v1181, 0.0
    %v1277 = vmax.f32 %v958, 0.0
    %v1278 = vmax.f32 %v1184, 0.0
    %v1279 = vmax.f32 %v961, 0.0
    %v1280 = vmax.f32 %v1187, 0.0
    %v1281 = vmax.f32 %v964, 0.0
    %v1282 = vmax.f32 %v1190, 0.0
    %v1283 = vmax.f32 %v967, 0.0
    %v1284 = vmax.f32 %v1193, 0.0
    %v1285 = vmax.f32 %v970, 0.0
    %v1286 = vmax.f32 %v1196, 0.0
    %v1287 = vmax.f32 %v973, 0.0
    %v1288 = vmax.f32 %v1199, 0.0
    %v1289 = vmax.f32 %v976, 0.0
    %v1290 = vmax.f32 %v1202, 0.0
    %v1291 = vmax.f32 %v979, 0.0
    %v1292 = vmax.f32 %v1205, 0.0
    %v1293 = vmax.f32 %v982, 0.0
    %v1294 = vmax.f32 %v1208, 0.0
    %v1295 = vmax.f32 %v985, 0.0
    %v1296 = vmax.f32 %v1211, 0.0
    %v1297 = vmax.f32 %v988, 0.0
    %v1298 = vmax.f32 %v1214, 0.0
    %v1299 = vmax.f32 %v991, 0.0
    %v1300 = vmax.f32 %v1217, 0.0
    %v1301 = vmax.f32 %v994, 0.0
    %v1302 = vmax.f32 %v1220, 0.0
    %v1303 = vmax.f32 %v997, 0.0
    %v1304 = vmax.f32 %v1223, 0.0
    %v1305 = vmax.f32 %v1000, 0.0
    %v1306 = vmax.f32 %v1226, 0.0
    %v1307 = vmax.f32 %v1003, 0.0
    %v1308 = vmax.f32 %v1229, 0.0
    %v1309 = vmax.f32 %v1006, 0.0
    %v1310 = vmax.f32 %v1232, 0.0
    %v1311 = vmax.f32 %v1009, 0.0
    %v1312 = vmax.f32 %v1235, 0.0
    %v1313 = vmax.f32 %v1012, 0.0
    %v1314 = vmax.f32 %v1238, 0.0
    %v1315 = vmax.f32 %v1015, 0.0
    %v1316 = vmax.f32 %v1241, 0.0
    %v1317 = vmax.f32 %v1018, 0.0
    %v1318 = vmax.f32 %v1244, 0.0
    %v1319 = vmax.f32 %v1021, 0.0
    %v1320 = vmax.f32 %v1247, 0.0
    %v1321 = vmax.f32 %v1024, 0.0
    %v1322 = vmax.f32 %v1250, 0.0
    %v1323 = vmax.f32 %v1027, 0.0
    %v1324 = vmax.f32 %v1253, 0.0
    %v1325 = vmax.f32 %v1030, 0.0
    %v1326 = vmax.f32 %v1256, 0.0
    %v1327 = vmax.f32 %v1033, 0.0
    %v1328 = vmax.f32 %v1259, 0.0
    %v1329 = vmax.f32 %v1036, 0.0
    %v1330 = vmax.f32 %v1262, 0.0
    %v1331 = vmax.f32 %v1039, 0.0
    %v1332 = vmax.f32 %v1265, 0.0
    %v1333 = vmax.f32 %v1042, 0.0
    %v1334 = vmax.f32 %v1268, 0.0
    %v1335 = vmax.f32 %v1045, 0.0
    %v1336 = vmax.f32 %v1271, 0.0
    %v1337 = vld [vmem:[#allocation4] sm:$0xff]
    %v1338 = vld [vmem:[#allocation4 + $0x8] sm:$0xff]
    %v1339 = vld [vmem:[#allocation4 + $0x10] sm:$0xff]
    %v1340 = vld [vmem:[#allocation4 + $0x18] sm:$0xff]
    %v1341 = vld [vmem:[#allocation4 + $0x20] sm:$0xff]
    %v1342 = vld [vmem:[#allocation4 + $0x28] sm:$0xff]
    %v1343 = vld [vmem:[#allocation4 + $0x30] sm:$0xff]
    %v1344 = vld [vmem:[#allocation4 + $0x38] sm:$0xff]
    %v1345 = vld [vmem:[#allocation4 + $0x40] sm:$0xff]
    %v1346 = vld [vmem:[#allocation4 + $0x48] sm:$0xff]
    %v1347 = vld [vmem:[#allocation4 + $0x50] sm:$0xff]
    %v1348 = vld [vmem:[#allocation4 + $0x58] sm:$0xff]
    %v1349 = vld [vmem:[#allocation4 + $0x60] sm:$0xff]
    %v1350 = vld [vmem:[#allocation4 + $0x68] sm:$0xff]
    %v1351 = vld [vmem:[#allocation4 + $0x70] sm:$0xff]
    %v1352 = vld [vmem:[#allocation4 + $0x78] sm:$0xff]
    %v1353 = vld [vmem:[#allocation4 + $0x80] sm:$0xff]
    %v1354 = vld [vmem:[#allocation4 + $0x88] sm:$0xff]
    %v1355 = vld [vmem:[#allocation4 + $0x90] sm:$0xff]
    %v1356 = vld [vmem:[#allocation4 + $0x98] sm:$0xff]
    %v1357 = vld [vmem:[#allocation4 + $0xa0] sm:$0xff]
    %v1358 = vld [vmem:[#allocation4 + $0xa8] sm:$0xff]
    %v1359 = vld [vmem:[#allocation4 + $0xb0] sm:$0xff]
    %v1360 = vld [vmem:[#allocation4 + $0xb8] sm:$0xff]
    %v1361 = vld [vmem:[#allocation4 + $0xc0] sm:$0xff]
    %v1362 = vld [vmem:[#allocation4 + $0xc8] sm:$0xff]
    %v1363 = vld [vmem:[#allocation4 + $0xd0] sm:$0xff]
    %v1364 = vld [vmem:[#allocation4 + $0xd8] sm:$0xff]
    %v1365 = vld [vmem:[#allocation4 + $0xe0] sm:$0xff]
    %v1366 = vld [vmem:[#allocation4 + $0xe8] sm:$0xff]
    %v1367 = vld [vmem:[#allocation4 + $0xf0] sm:$0xff]
    %v1368 = vld [vmem:[#allocation4 + $0xf8] sm:$0xff]
    %v1369 = vld [vmem:[#allocation4 + $0x100] sm:$0xff]
    %v1370 = vld [vmem:[#allocation4 + $0x108] sm:$0xff]
    %v1371 = vld [vmem:[#allocation4 + $0x110] sm:$0xff]
    %v1372 = vld [vmem:[#allocation4 + $0x118] sm:$0xff]
    %v1373 = vld [vmem:[#allocation4 + $0x120] sm:$0xff]
    %v1374 = vld [vmem:[#allocation4 + $0x128] sm:$0xff]
    %v1375 = vld [vmem:[#allocation4 + $0x130] sm:$0xff]
    %v1376 = vld [vmem:[#allocation4 + $0x138] sm:$0xff]
    %v1377 = vld [vmem:[#allocation4 + $0x140] sm:$0xff]
    %v1378 = vld [vmem:[#allocation4 + $0x148] sm:$0xff]
    %v1379 = vld [vmem:[#allocation4 + $0x150] sm:$0xff]
    %v1380 = vld [vmem:[#allocation4 + $0x158] sm:$0xff]
    %v1381 = vld [vmem:[#allocation4 + $0x160] sm:$0xff]
    %v1382 = vld [vmem:[#allocation4 + $0x168] sm:$0xff]
    %v1383 = vld [vmem:[#allocation4 + $0x170] sm:$0xff]
    %v1384 = vld [vmem:[#allocation4 + $0x178] sm:$0xff]
    %v1385 = vld [vmem:[#allocation4 + $0x180] sm:$0xff]
    %v1386 = vld [vmem:[#allocation4 + $0x188] sm:$0xff]
    %v1387 = vld [vmem:[#allocation4 + $0x190] sm:$0xff]
    %v1388 = vld [vmem:[#allocation4 + $0x198] sm:$0xff]
    %v1389 = vld [vmem:[#allocation4 + $0x1a0] sm:$0xff]
    %v1390 = vld [vmem:[#allocation4 + $0x1a8] sm:$0xff]
    %v1391 = vld [vmem:[#allocation4 + $0x1b0] sm:$0xff]
    %v1392 = vld [vmem:[#allocation4 + $0x1b8] sm:$0xff]
    %v1393 = vld [vmem:[#allocation4 + $0x1c0] sm:$0xff]
    %v1394 = vld [vmem:[#allocation4 + $0x1c8] sm:$0xff]
    %v1395 = vld [vmem:[#allocation4 + $0x1d0] sm:$0xff]
    %v1396 = vld [vmem:[#allocation4 + $0x1d8] sm:$0xff]
    %v1397 = vld [vmem:[#allocation4 + $0x1e0] sm:$0xff]
    %v1398 = vld [vmem:[#allocation4 + $0x1e8] sm:$0xff]
    %v1399 = vld [vmem:[#allocation4 + $0x1f0] sm:$0xff]
    %v1400 = vld [vmem:[#allocation4 + $0x1f8] sm:$0xff]
    %v1401 = vld [vmem:[%s6] sm:$0x3]
    %v1403 = vperm.slane %v1401, 0
    %v1404 = vperm.slane %v1401, 1
    %1407 = vmatpush.msra.mxu0 %v1367
    %1408 = vmatpush.msra.mxu0 %v1365
    %1409 = vmatpush.msra.mxu0 %v1363
    %1410 = vmatpush.msra.mxu0 %v1361
    %1411 = vmatpush.msra.mxu0 %v1359
    %1412 = vmatpush.msra.mxu0 %v1357
    %1413 = vmatpush.msra.mxu0 %v1355
    %1414 = vmatpush.msra.mxu0 %v1353
    %1415 = vmatpush.msra.mxu0 %v1351
    %1416 = vmatpush.msra.mxu0 %v1349
    %1417 = vmatpush.msra.mxu0 %v1347
    %1418 = vmatpush.msra.mxu0 %v1345
    %1419 = vmatpush.msra.mxu0 %v1343
    %1420 = vmatpush.msra.mxu0 %v1341
    %1421 = vmatpush.msra.mxu0 %v1339
    %1422 = vmatpush.msra.mxu0 %v1337
    %1423 = vmatmul.f32.gmra.mxu0 %v1273
    %v1424 = vpop.f32.mrf.mxu0
    %v1425 = vadd.f32 %v1403, %v1424
    %1426 = vmatmul.f32.gmra.mxu0 %v1275
    %v1427 = vpop.f32.mrf.mxu0
    %v1428 = vadd.f32 %v1403, %v1427
    %1429 = vmatmul.f32.gmra.mxu0 %v1277
    %v1430 = vpop.f32.mrf.mxu0
    %v1431 = vadd.f32 %v1403, %v1430
    %1432 = vmatmul.f32.gmra.mxu0 %v1279
    %v1433 = vpop.f32.mrf.mxu0
    %v1434 = vadd.f32 %v1403, %v1433
    %1435 = vmatmul.f32.gmra.mxu0 %v1281
    %v1436 = vpop.f32.mrf.mxu0
    %v1437 = vadd.f32 %v1403, %v1436
    %1438 = vmatmul.f32.gmra.mxu0 %v1283
    %v1439 = vpop.f32.mrf.mxu0
    %v1440 = vadd.f32 %v1403, %v1439
    %1441 = vmatmul.f32.gmra.mxu0 %v1285
    %v1442 = vpop.f32.mrf.mxu0
    %v1443 = vadd.f32 %v1403, %v1442
    %1444 = vmatmul.f32.gmra.mxu0 %v1287
    %v1445 = vpop.f32.mrf.mxu0
    %v1446 = vadd.f32 %v1403, %v1445
    %1447 = vmatmul.f32.gmra.mxu0 %v1289
    %v1448 = vpop.f32.mrf.mxu0
    %v1449 = vadd.f32 %v1403, %v1448
    %1450 = vmatmul.f32.gmra.mxu0 %v1291
    %v1451 = vpop.f32.mrf.mxu0
    %v1452 = vadd.f32 %v1403, %v1451
    %1453 = vmatmul.f32.gmra.mxu0 %v1293
    %v1454 = vpop.f32.mrf.mxu0
    %v1455 = vadd.f32 %v1403, %v1454
    %1456 = vmatmul.f32.gmra.mxu0 %v1295
    %v1457 = vpop.f32.mrf.mxu0
    %v1458 = vadd.f32 %v1403, %v1457
    %1459 = vmatmul.f32.gmra.mxu0 %v1297
    %v1460 = vpop.f32.mrf.mxu0
    %v1461 = vadd.f32 %v1403, %v1460
    %1462 = vmatmul.f32.gmra.mxu0 %v1299
    %v1463 = vpop.f32.mrf.mxu0
    %v1464 = vadd.f32 %v1403, %v1463
    %1465 = vmatmul.f32.gmra.mxu0 %v1301
    %v1466 = vpop.f32.mrf.mxu0
    %v1467 = vadd.f32 %v1403, %v1466
    %1468 = vmatmul.f32.gmra.mxu0 %v1303
    %v1469 = vpop.f32.mrf.mxu0
    %v1470 = vadd.f32 %v1403, %v1469
    %1471 = vmatmul.f32.gmra.mxu0 %v1305
    %v1472 = vpop.f32.mrf.mxu0
    %v1473 = vadd.f32 %v1403, %v1472
    %1474 = vmatmul.f32.gmra.mxu0 %v1307
    %v1475 = vpop.f32.mrf.mxu0
    %v1476 = vadd.f32 %v1403, %v1475
    %1477 = vmatmul.f32.gmra.mxu0 %v1309
    %v1478 = vpop.f32.mrf.mxu0
    %v1479 = vadd.f32 %v1403, %v1478
    %1480 = vmatmul.f32.gmra.mxu0 %v1311
    %v1481 = vpop.f32.mrf.mxu0
    %v1482 = vadd.f32 %v1403, %v1481
    %1483 = vmatmul.f32.gmra.mxu0 %v1313
    %v1484 = vpop.f32.mrf.mxu0
    %v1485 = vadd.f32 %v1403, %v1484
    %1486 = vmatmul.f32.gmra.mxu0 %v1315
    %v1487 = vpop.f32.mrf.mxu0
    %v1488 = vadd.f32 %v1403, %v1487
    %1489 = vmatmul.f32.gmra.mxu0 %v1317
    %v1490 = vpop.f32.mrf.mxu0
    %v1491 = vadd.f32 %v1403, %v1490
    %1492 = vmatmul.f32.gmra.mxu0 %v1319
    %v1493 = vpop.f32.mrf.mxu0
    %v1494 = vadd.f32 %v1403, %v1493
    %1495 = vmatmul.f32.gmra.mxu0 %v1321
    %v1496 = vpop.f32.mrf.mxu0
    %v1497 = vadd.f32 %v1403, %v1496
    %1498 = vmatmul.f32.gmra.mxu0 %v1323
    %v1499 = vpop.f32.mrf.mxu0
    %v1500 = vadd.f32 %v1403, %v1499
    %1501 = vmatmul.f32.gmra.mxu0 %v1325
    %v1502 = vpop.f32.mrf.mxu0
    %v1503 = vadd.f32 %v1403, %v1502
    %1504 = vmatmul.f32.gmra.mxu0 %v1327
    %v1505 = vpop.f32.mrf.mxu0
    %v1506 = vadd.f32 %v1403, %v1505
    %1507 = vmatmul.f32.gmra.mxu0 %v1329
    %v1508 = vpop.f32.mrf.mxu0
    %v1509 = vadd.f32 %v1403, %v1508
    %1510 = vmatmul.f32.gmra.mxu0 %v1331
    %v1511 = vpop.f32.mrf.mxu0
    %v1512 = vadd.f32 %v1403, %v1511
    %1513 = vmatmul.f32.gmra.mxu0 %v1333
    %v1514 = vpop.f32.mrf.mxu0
    %v1515 = vadd.f32 %v1403, %v1514
    %1516 = vmatmul.f32.gmra.mxu0 %v1335
    %v1517 = vpop.f32.mrf.mxu0
    %v1518 = vadd.f32 %v1403, %v1517
    %1519 = vdwg.mxu0
    %1520 = vmatpush.msra.mxu0 %v1399
    %1521 = vmatpush.msra.mxu0 %v1397
    %1522 = vmatpush.msra.mxu0 %v1395
    %1523 = vmatpush.msra.mxu0 %v1393
    %1524 = vmatpush.msra.mxu0 %v1391
    %1525 = vmatpush.msra.mxu0 %v1389
    %1526 = vmatpush.msra.mxu0 %v1387
    %1527 = vmatpush.msra.mxu0 %v1385
    %1528 = vmatpush.msra.mxu0 %v1383
    %1529 = vmatpush.msra.mxu0 %v1381
    %1530 = vmatpush.msra.mxu0 %v1379
    %1531 = vmatpush.msra.mxu0 %v1377
    %1532 = vmatpush.msra.mxu0 %v1375
    %1533 = vmatpush.msra.mxu0 %v1373
    %1534 = vmatpush.msra.mxu0 %v1371
    %1535 = vmatpush.msra.mxu0 %v1369
    %1536 = vmatmul.f32.gmra.mxu0 %v1274
    %v1537 = vpop.f32.mrf.mxu0
    %v1538 = vadd.f32 %v1425, %v1537
    %1539 = vmatmul.f32.gmra.mxu0 %v1276
    %v1540 = vpop.f32.mrf.mxu0
    %v1541 = vadd.f32 %v1428, %v1540
    %1542 = vmatmul.f32.gmra.mxu0 %v1278
    %v1543 = vpop.f32.mrf.mxu0
    %v1544 = vadd.f32 %v1431, %v1543
    %1545 = vmatmul.f32.gmra.mxu0 %v1280
    %v1546 = vpop.f32.mrf.mxu0
    %v1547 = vadd.f32 %v1434, %v1546
    %1548 = vmatmul.f32.gmra.mxu0 %v1282
    %v1549 = vpop.f32.mrf.mxu0
    %v1550 = vadd.f32 %v1437, %v1549
    %1551 = vmatmul.f32.gmra.mxu0 %v1284
    %v1552 = vpop.f32.mrf.mxu0
    %v1553 = vadd.f32 %v1440, %v1552
    %1554 = vmatmul.f32.gmra.mxu0 %v1286
    %v1555 = vpop.f32.mrf.mxu0
    %v1556 = vadd.f32 %v1443, %v1555
    %1557 = vmatmul.f32.gmra.mxu0 %v1288
    %v1558 = vpop.f32.mrf.mxu0
    %v1559 = vadd.f32 %v1446, %v1558
    %1560 = vmatmul.f32.gmra.mxu0 %v1290
    %v1561 = vpop.f32.mrf.mxu0
    %v1562 = vadd.f32 %v1449, %v1561
    %1563 = vmatmul.f32.gmra.mxu0 %v1292
    %v1564 = vpop.f32.mrf.mxu0
    %v1565 = vadd.f32 %v1452, %v1564
    %1566 = vmatmul.f32.gmra.mxu0 %v1294
    %v1567 = vpop.f32.mrf.mxu0
    %v1568 = vadd.f32 %v1455, %v1567
    %1569 = vmatmul.f32.gmra.mxu0 %v1296
    %v1570 = vpop.f32.mrf.mxu0
    %v1571 = vadd.f32 %v1458, %v1570
    %1572 = vmatmul.f32.gmra.mxu0 %v1298
    %v1573 = vpop.f32.mrf.mxu0
    %v1574 = vadd.f32 %v1461, %v1573
    %1575 = vmatmul.f32.gmra.mxu0 %v1300
    %v1576 = vpop.f32.mrf.mxu0
    %v1577 = vadd.f32 %v1464, %v1576
    %1578 = vmatmul.f32.gmra.mxu0 %v1302
    %v1579 = vpop.f32.mrf.mxu0
    %v1580 = vadd.f32 %v1467, %v1579
    %1581 = vmatmul.f32.gmra.mxu0 %v1304
    %v1582 = vpop.f32.mrf.mxu0
    %v1583 = vadd.f32 %v1470, %v1582
    %1584 = vmatmul.f32.gmra.mxu0 %v1306
    %v1585 = vpop.f32.mrf.mxu0
    %v1586 = vadd.f32 %v1473, %v1585
    %1587 = vmatmul.f32.gmra.mxu0 %v1308
    %v1588 = vpop.f32.mrf.mxu0
    %v1589 = vadd.f32 %v1476, %v1588
    %1590 = vmatmul.f32.gmra.mxu0 %v1310
    %v1591 = vpop.f32.mrf.mxu0
    %v1592 = vadd.f32 %v1479, %v1591
    %1593 = vmatmul.f32.gmra.mxu0 %v1312
    %v1594 = vpop.f32.mrf.mxu0
    %v1595 = vadd.f32 %v1482, %v1594
    %1596 = vmatmul.f32.gmra.mxu0 %v1314
    %v1597 = vpop.f32.mrf.mxu0
    %v1598 = vadd.f32 %v1485, %v1597
    %1599 = vmatmul.f32.gmra.mxu0 %v1316
    %v1600 = vpop.f32.mrf.mxu0
    %v1601 = vadd.f32 %v1488, %v1600
    %1602 = vmatmul.f32.gmra.mxu0 %v1318
    %v1603 = vpop.f32.mrf.mxu0
    %v1604 = vadd.f32 %v1491, %v1603
    %1605 = vmatmul.f32.gmra.mxu0 %v1320
    %v1606 = vpop.f32.mrf.mxu0
    %v1607 = vadd.f32 %v1494, %v1606
    %1608 = vmatmul.f32.gmra.mxu0 %v1322
    %v1609 = vpop.f32.mrf.mxu0
    %v1610 = vadd.f32 %v1497, %v1609
    %1611 = vmatmul.f32.gmra.mxu0 %v1324
    %v1612 = vpop.f32.mrf.mxu0
    %v1613 = vadd.f32 %v1500, %v1612
    %1614 = vmatmul.f32.gmra.mxu0 %v1326
    %v1615 = vpop.f32.mrf.mxu0
    %v1616 = vadd.f32 %v1503, %v1615
    %1617 = vmatmul.f32.gmra.mxu0 %v1328
    %v1618 = vpop.f32.mrf.mxu0
    %v1619 = vadd.f32 %v1506, %v1618
    %1620 = vmatmul.f32.gmra.mxu0 %v1330
    %v1621 = vpop.f32.mrf.mxu0
    %v1622 = vadd.f32 %v1509, %v1621
    %1623 = vmatmul.f32.gmra.mxu0 %v1332
    %v1624 = vpop.f32.mrf.mxu0
    %v1625 = vadd.f32 %v1512, %v1624
    %1626 = vmatmul.f32.gmra.mxu0 %v1334
    %v1627 = vpop.f32.mrf.mxu0
    %v1628 = vadd.f32 %v1515, %v1627
    %1629 = vmatmul.f32.gmra.mxu0 %v1336
    %v1630 = vpop.f32.mrf.mxu0
    %v1631 = vadd.f32 %v1518, %v1630
    %1632 = vdwg.mxu0
    %1633 = vmatpush.msra.mxu0 %v1368
    %1634 = vmatpush.msra.mxu0 %v1366
    %1635 = vmatpush.msra.mxu0 %v1364
    %1636 = vmatpush.msra.mxu0 %v1362
    %1637 = vmatpush.msra.mxu0 %v1360
    %1638 = vmatpush.msra.mxu0 %v1358
    %1639 = vmatpush.msra.mxu0 %v1356
    %1640 = vmatpush.msra.mxu0 %v1354
    %1641 = vmatpush.msra.mxu0 %v1352
    %1642 = vmatpush.msra.mxu0 %v1350
    %1643 = vmatpush.msra.mxu0 %v1348
    %1644 = vmatpush.msra.mxu0 %v1346
    %1645 = vmatpush.msra.mxu0 %v1344
    %1646 = vmatpush.msra.mxu0 %v1342
    %1647 = vmatpush.msra.mxu0 %v1340
    %1648 = vmatpush.msra.mxu0 %v1338
    %1649 = vmatmul.f32.gmra.mxu0 %v1273
    %v1650 = vpop.f32.mrf.mxu0
    %v1651 = vadd.f32 %v1404, %v1650
    %1652 = vmatmul.f32.gmra.mxu0 %v1275
    %v1653 = vpop.f32.mrf.mxu0
    %v1654 = vadd.f32 %v1404, %v1653
    %1655 = vmatmul.f32.gmra.mxu0 %v1277
    %v1656 = vpop.f32.mrf.mxu0
    %v1657 = vadd.f32 %v1404, %v1656
    %1658 = vmatmul.f32.gmra.mxu0 %v1279
    %v1659 = vpop.f32.mrf.mxu0
    %v1660 = vadd.f32 %v1404, %v1659
    %1661 = vmatmul.f32.gmra.mxu0 %v1281
    %v1662 = vpop.f32.mrf.mxu0
    %v1663 = vadd.f32 %v1404, %v1662
    %1664 = vmatmul.f32.gmra.mxu0 %v1283
    %v1665 = vpop.f32.mrf.mxu0
    %v1666 = vadd.f32 %v1404, %v1665
    %1667 = vmatmul.f32.gmra.mxu0 %v1285
    %v1668 = vpop.f32.mrf.mxu0
    %v1669 = vadd.f32 %v1404, %v1668
    %1670 = vmatmul.f32.gmra.mxu0 %v1287
    %v1671 = vpop.f32.mrf.mxu0
    %v1672 = vadd.f32 %v1404, %v1671
    %1673 = vmatmul.f32.gmra.mxu0 %v1289
    %v1674 = vpop.f32.mrf.mxu0
    %v1675 = vadd.f32 %v1404, %v1674
    %1676 = vmatmul.f32.gmra.mxu0 %v1291
    %v1677 = vpop.f32.mrf.mxu0
    %v1678 = vadd.f32 %v1404, %v1677
    %1679 = vmatmul.f32.gmra.mxu0 %v1293
    %v1680 = vpop.f32.mrf.mxu0
    %v1681 = vadd.f32 %v1404, %v1680
    %1682 = vmatmul.f32.gmra.mxu0 %v1295
    %v1683 = vpop.f32.mrf.mxu0
    %v1684 = vadd.f32 %v1404, %v1683
    %1685 = vmatmul.f32.gmra.mxu0 %v1297
    %v1686 = vpop.f32.mrf.mxu0
    %v1687 = vadd.f32 %v1404, %v1686
    %1688 = vmatmul.f32.gmra.mxu0 %v1299
    %v1689 = vpop.f32.mrf.mxu0
    %v1690 = vadd.f32 %v1404, %v1689
    %1691 = vmatmul.f32.gmra.mxu0 %v1301
    %v1692 = vpop.f32.mrf.mxu0
    %v1693 = vadd.f32 %v1404, %v1692
    %1694 = vmatmul.f32.gmra.mxu0 %v1303
    %v1695 = vpop.f32.mrf.mxu0
    %v1696 = vadd.f32 %v1404, %v1695
    %1697 = vmatmul.f32.gmra.mxu0 %v1305
    %v1698 = vpop.f32.mrf.mxu0
    %v1699 = vadd.f32 %v1404, %v1698
    %1700 = vmatmul.f32.gmra.mxu0 %v1307
    %v1701 = vpop.f32.mrf.mxu0
    %v1702 = vadd.f32 %v1404, %v1701
    %1703 = vmatmul.f32.gmra.mxu0 %v1309
    %v1704 = vpop.f32.mrf.mxu0
    %v1705 = vadd.f32 %v1404, %v1704
    %1706 = vmatmul.f32.gmra.mxu0 %v1311
    %v1707 = vpop.f32.mrf.mxu0
    %v1708 = vadd.f32 %v1404, %v1707
    %1709 = vmatmul.f32.gmra.mxu0 %v1313
    %v1710 = vpop.f32.mrf.mxu0
    %v1711 = vadd.f32 %v1404, %v1710
    %1712 = vmatmul.f32.gmra.mxu0 %v1315
    %v1713 = vpop.f32.mrf.mxu0
    %v1714 = vadd.f32 %v1404, %v1713
    %1715 = vmatmul.f32.gmra.mxu0 %v1317
    %v1716 = vpop.f32.mrf.mxu0
    %v1717 = vadd.f32 %v1404, %v1716
    %1718 = vmatmul.f32.gmra.mxu0 %v1319
    %v1719 = vpop.f32.mrf.mxu0
    %v1720 = vadd.f32 %v1404, %v1719
    %1721 = vmatmul.f32.gmra.mxu0 %v1321
    %v1722 = vpop.f32.mrf.mxu0
    %v1723 = vadd.f32 %v1404, %v1722
    %1724 = vmatmul.f32.gmra.mxu0 %v1323
    %v1725 = vpop.f32.mrf.mxu0
    %v1726 = vadd.f32 %v1404, %v1725
    %1727 = vmatmul.f32.gmra.mxu0 %v1325
    %v1728 = vpop.f32.mrf.mxu0
    %v1729 = vadd.f32 %v1404, %v1728
    %1730 = vmatmul.f32.gmra.mxu0 %v1327
    %v1731 = vpop.f32.mrf.mxu0
    %v1732 = vadd.f32 %v1404, %v1731
    %1733 = vmatmul.f32.gmra.mxu0 %v1329
    %v1734 = vpop.f32.mrf.mxu0
    %v1735 = vadd.f32 %v1404, %v1734
    %1736 = vmatmul.f32.gmra.mxu0 %v1331
    %v1737 = vpop.f32.mrf.mxu0
    %v1738 = vadd.f32 %v1404, %v1737
    %1739 = vmatmul.f32.gmra.mxu0 %v1333
    %v1740 = vpop.f32.mrf.mxu0
    %v1741 = vadd.f32 %v1404, %v1740
    %1742 = vmatmul.f32.gmra.mxu0 %v1335
    %v1743 = vpop.f32.mrf.mxu0
    %v1744 = vadd.f32 %v1404, %v1743
    %1745 = vdwg.mxu0
    %1746 = vmatpush.msra.mxu0 %v1400
    %1747 = vmatpush.msra.mxu0 %v1398
    %1748 = vmatpush.msra.mxu0 %v1396
    %1749 = vmatpush.msra.mxu0 %v1394
    %1750 = vmatpush.msra.mxu0 %v1392
    %1751 = vmatpush.msra.mxu0 %v1390
    %1752 = vmatpush.msra.mxu0 %v1388
    %1753 = vmatpush.msra.mxu0 %v1386
    %1754 = vmatpush.msra.mxu0 %v1384
    %1755 = vmatpush.msra.mxu0 %v1382
    %1756 = vmatpush.msra.mxu0 %v1380
    %1757 = vmatpush.msra.mxu0 %v1378
    %1758 = vmatpush.msra.mxu0 %v1376
    %1759 = vmatpush.msra.mxu0 %v1374
    %1760 = vmatpush.msra.mxu0 %v1372
    %1761 = vmatpush.msra.mxu0 %v1370
    %1762 = vmatmul.f32.gmra.mxu0 %v1274
    %v1763 = vpop.f32.mrf.mxu0
    %v1764 = vadd.f32 %v1651, %v1763
    %1765 = vmatmul.f32.gmra.mxu0 %v1276
    %v1766 = vpop.f32.mrf.mxu0
    %v1767 = vadd.f32 %v1654, %v1766
    %1768 = vmatmul.f32.gmra.mxu0 %v1278
    %v1769 = vpop.f32.mrf.mxu0
    %v1770 = vadd.f32 %v1657, %v1769
    %1771 = vmatmul.f32.gmra.mxu0 %v1280
    %v1772 = vpop.f32.mrf.mxu0
    %v1773 = vadd.f32 %v1660, %v1772
    %1774 = vmatmul.f32.gmra.mxu0 %v1282
    %v1775 = vpop.f32.mrf.mxu0
    %v1776 = vadd.f32 %v1663, %v1775
    %1777 = vmatmul.f32.gmra.mxu0 %v1284
    %v1778 = vpop.f32.mrf.mxu0
    %v1779 = vadd.f32 %v1666, %v1778
    %1780 = vmatmul.f32.gmra.mxu0 %v1286
    %v1781 = vpop.f32.mrf.mxu0
    %v1782 = vadd.f32 %v1669, %v1781
    %1783 = vmatmul.f32.gmra.mxu0 %v1288
    %v1784 = vpop.f32.mrf.mxu0
    %v1785 = vadd.f32 %v1672, %v1784
    %1786 = vmatmul.f32.gmra.mxu0 %v1290
    %v1787 = vpop.f32.mrf.mxu0
    %v1788 = vadd.f32 %v1675, %v1787
    %1789 = vmatmul.f32.gmra.mxu0 %v1292
    %v1790 = vpop.f32.mrf.mxu0
    %v1791 = vadd.f32 %v1678, %v1790
    %1792 = vmatmul.f32.gmra.mxu0 %v1294
    %v1793 = vpop.f32.mrf.mxu0
    %v1794 = vadd.f32 %v1681, %v1793
    %1795 = vmatmul.f32.gmra.mxu0 %v1296
    %v1796 = vpop.f32.mrf.mxu0
    %v1797 = vadd.f32 %v1684, %v1796
    %1798 = vmatmul.f32.gmra.mxu0 %v1298
    %v1799 = vpop.f32.mrf.mxu0
    %v1800 = vadd.f32 %v1687, %v1799
    %1801 = vmatmul.f32.gmra.mxu0 %v1300
    %v1802 = vpop.f32.mrf.mxu0
    %v1803 = vadd.f32 %v1690, %v1802
    %1804 = vmatmul.f32.gmra.mxu0 %v1302
    %v1805 = vpop.f32.mrf.mxu0
    %v1806 = vadd.f32 %v1693, %v1805
    %1807 = vmatmul.f32.gmra.mxu0 %v1304
    %v1808 = vpop.f32.mrf.mxu0
    %v1809 = vadd.f32 %v1696, %v1808
    %1810 = vmatmul.f32.gmra.mxu0 %v1306
    %v1811 = vpop.f32.mrf.mxu0
    %v1812 = vadd.f32 %v1699, %v1811
    %1813 = vmatmul.f32.gmra.mxu0 %v1308
    %v1814 = vpop.f32.mrf.mxu0
    %v1815 = vadd.f32 %v1702, %v1814
    %1816 = vmatmul.f32.gmra.mxu0 %v1310
    %v1817 = vpop.f32.mrf.mxu0
    %v1818 = vadd.f32 %v1705, %v1817
    %1819 = vmatmul.f32.gmra.mxu0 %v1312
    %v1820 = vpop.f32.mrf.mxu0
    %v1821 = vadd.f32 %v1708, %v1820
    %1822 = vmatmul.f32.gmra.mxu0 %v1314
    %v1823 = vpop.f32.mrf.mxu0
    %v1824 = vadd.f32 %v1711, %v1823
    %1825 = vmatmul.f32.gmra.mxu0 %v1316
    %v1826 = vpop.f32.mrf.mxu0
    %v1827 = vadd.f32 %v1714, %v1826
    %1828 = vmatmul.f32.gmra.mxu0 %v1318
    %v1829 = vpop.f32.mrf.mxu0
    %v1830 = vadd.f32 %v1717, %v1829
    %1831 = vmatmul.f32.gmra.mxu0 %v1320
    %v1832 = vpop.f32.mrf.mxu0
    %v1833 = vadd.f32 %v1720, %v1832
    %1834 = vmatmul.f32.gmra.mxu0 %v1322
    %v1835 = vpop.f32.mrf.mxu0
    %v1836 = vadd.f32 %v1723, %v1835
    %1837 = vmatmul.f32.gmra.mxu0 %v1324
    %v1838 = vpop.f32.mrf.mxu0
    %v1839 = vadd.f32 %v1726, %v1838
    %1840 = vmatmul.f32.gmra.mxu0 %v1326
    %v1841 = vpop.f32.mrf.mxu0
    %v1842 = vadd.f32 %v1729, %v1841
    %1843 = vmatmul.f32.gmra.mxu0 %v1328
    %v1844 = vpop.f32.mrf.mxu0
    %v1845 = vadd.f32 %v1732, %v1844
    %1846 = vmatmul.f32.gmra.mxu0 %v1330
    %v1847 = vpop.f32.mrf.mxu0
    %v1848 = vadd.f32 %v1735, %v1847
    %1849 = vmatmul.f32.gmra.mxu0 %v1332
    %v1850 = vpop.f32.mrf.mxu0
    %v1851 = vadd.f32 %v1738, %v1850
    %1852 = vmatmul.f32.gmra.mxu0 %v1334
    %v1853 = vpop.f32.mrf.mxu0
    %v1854 = vadd.f32 %v1741, %v1853
    %1855 = vmatmul.f32.gmra.mxu0 %v1336
    %v1856 = vpop.f32.mrf.mxu0
    %v1857 = vadd.f32 %v1744, %v1856
    %1858 = vdwg.mxu0
    %v1859 = vmax.f32 %v1538, 0.0
    %v1860 = vmax.f32 %v1764, 0.0
    %v1861 = vmax.f32 %v1541, 0.0
    %v1862 = vmax.f32 %v1767, 0.0
    %v1863 = vmax.f32 %v1544, 0.0
    %v1864 = vmax.f32 %v1770, 0.0
    %v1865 = vmax.f32 %v1547, 0.0
    %v1866 = vmax.f32 %v1773, 0.0
    %v1867 = vmax.f32 %v1550, 0.0
    %v1868 = vmax.f32 %v1776, 0.0
    %v1869 = vmax.f32 %v1553, 0.0
    %v1870 = vmax.f32 %v1779, 0.0
    %v1871 = vmax.f32 %v1556, 0.0
    %v1872 = vmax.f32 %v1782, 0.0
    %v1873 = vmax.f32 %v1559, 0.0
    %v1874 = vmax.f32 %v1785, 0.0
    %v1875 = vmax.f32 %v1562, 0.0
    %v1876 = vmax.f32 %v1788, 0.0
    %v1877 = vmax.f32 %v1565, 0.0
    %v1878 = vmax.f32 %v1791, 0.0
    %v1879 = vmax.f32 %v1568, 0.0
    %v1880 = vmax.f32 %v1794, 0.0
    %v1881 = vmax.f32 %v1571, 0.0
    %v1882 = vmax.f32 %v1797, 0.0
    %v1883 = vmax.f32 %v1574, 0.0
    %v1884 = vmax.f32 %v1800, 0.0
    %v1885 = vmax.f32 %v1577, 0.0
    %v1886 = vmax.f32 %v1803, 0.0
    %v1887 = vmax.f32 %v1580, 0.0
    %v1888 = vmax.f32 %v1806, 0.0
    %v1889 = vmax.f32 %v1583, 0.0
    %v1890 = vmax.f32 %v1809, 0.0
    %v1891 = vmax.f32 %v1586, 0.0
    %v1892 = vmax.f32 %v1812, 0.0
    %v1893 = vmax.f32 %v1589, 0.0
    %v1894 = vmax.f32 %v1815, 0.0
    %v1895 = vmax.f32 %v1592, 0.0
    %v1896 = vmax.f32 %v1818, 0.0
    %v1897 = vmax.f32 %v1595, 0.0
    %v1898 = vmax.f32 %v1821, 0.0
    %v1899 = vmax.f32 %v1598, 0.0
    %v1900 = vmax.f32 %v1824, 0.0
    %v1901 = vmax.f32 %v1601, 0.0
    %v1902 = vmax.f32 %v1827, 0.0
    %v1903 = vmax.f32 %v1604, 0.0
    %v1904 = vmax.f32 %v1830, 0.0
    %v1905 = vmax.f32 %v1607, 0.0
    %v1906 = vmax.f32 %v1833, 0.0
    %v1907 = vmax.f32 %v1610, 0.0
    %v1908 = vmax.f32 %v1836, 0.0
    %v1909 = vmax.f32 %v1613, 0.0
    %v1910 = vmax.f32 %v1839, 0.0
    %v1911 = vmax.f32 %v1616, 0.0
    %v1912 = vmax.f32 %v1842, 0.0
    %v1913 = vmax.f32 %v1619, 0.0
    %v1914 = vmax.f32 %v1845, 0.0
    %v1915 = vmax.f32 %v1622, 0.0
    %v1916 = vmax.f32 %v1848, 0.0
    %v1917 = vmax.f32 %v1625, 0.0
    %v1918 = vmax.f32 %v1851, 0.0
    %v1919 = vmax.f32 %v1628, 0.0
    %v1920 = vmax.f32 %v1854, 0.0
    %v1921 = vmax.f32 %v1631, 0.0
    %v1922 = vmax.f32 %v1857, 0.0
    %v1923 = vld [vmem:[#allocation6] sm:$0xff]
    %v1924 = vld [vmem:[#allocation6 + $0x8] sm:$0xff]
    %v1925 = vld [vmem:[#allocation6 + $0x10] sm:$0xff]
    %v1926 = vld [vmem:[#allocation6 + $0x18] sm:$0xff]
    %v1927 = vld [vmem:[#allocation6 + $0x20] sm:$0xff]
    %v1928 = vld [vmem:[#allocation6 + $0x28] sm:$0xff]
    %v1929 = vld [vmem:[#allocation6 + $0x30] sm:$0xff]
    %v1930 = vld [vmem:[#allocation6 + $0x38] sm:$0xff]
    %v1931 = vld [vmem:[#allocation6 + $0x40] sm:$0xff]
    %v1932 = vld [vmem:[#allocation6 + $0x48] sm:$0xff]
    %v1933 = vld [vmem:[#allocation6 + $0x50] sm:$0xff]
    %v1934 = vld [vmem:[#allocation6 + $0x58] sm:$0xff]
    %v1935 = vld [vmem:[#allocation6 + $0x60] sm:$0xff]
    %v1936 = vld [vmem:[#allocation6 + $0x68] sm:$0xff]
    %v1937 = vld [vmem:[#allocation6 + $0x70] sm:$0xff]
    %v1938 = vld [vmem:[#allocation6 + $0x78] sm:$0xff]
    %v1939 = vld [vmem:[#allocation6 + $0x80] sm:$0xff]
    %v1940 = vld [vmem:[#allocation6 + $0x88] sm:$0xff]
    %v1941 = vld [vmem:[#allocation6 + $0x90] sm:$0xff]
    %v1942 = vld [vmem:[#allocation6 + $0x98] sm:$0xff]
    %v1943 = vld [vmem:[#allocation6 + $0xa0] sm:$0xff]
    %v1944 = vld [vmem:[#allocation6 + $0xa8] sm:$0xff]
    %v1945 = vld [vmem:[#allocation6 + $0xb0] sm:$0xff]
    %v1946 = vld [vmem:[#allocation6 + $0xb8] sm:$0xff]
    %v1947 = vld [vmem:[#allocation6 + $0xc0] sm:$0xff]
    %v1948 = vld [vmem:[#allocation6 + $0xc8] sm:$0xff]
    %v1949 = vld [vmem:[#allocation6 + $0xd0] sm:$0xff]
    %v1950 = vld [vmem:[#allocation6 + $0xd8] sm:$0xff]
    %v1951 = vld [vmem:[#allocation6 + $0xe0] sm:$0xff]
    %v1952 = vld [vmem:[#allocation6 + $0xe8] sm:$0xff]
    %v1953 = vld [vmem:[#allocation6 + $0xf0] sm:$0xff]
    %v1954 = vld [vmem:[#allocation6 + $0xf8] sm:$0xff]
    %v1955 = vld [vmem:[#allocation6 + $0x100] sm:$0xff]
    %v1956 = vld [vmem:[#allocation6 + $0x108] sm:$0xff]
    %v1957 = vld [vmem:[#allocation6 + $0x110] sm:$0xff]
    %v1958 = vld [vmem:[#allocation6 + $0x118] sm:$0xff]
    %v1959 = vld [vmem:[#allocation6 + $0x120] sm:$0xff]
    %v1960 = vld [vmem:[#allocation6 + $0x128] sm:$0xff]
    %v1961 = vld [vmem:[#allocation6 + $0x130] sm:$0xff]
    %v1962 = vld [vmem:[#allocation6 + $0x138] sm:$0xff]
    %v1963 = vld [vmem:[#allocation6 + $0x140] sm:$0xff]
    %v1964 = vld [vmem:[#allocation6 + $0x148] sm:$0xff]
    %v1965 = vld [vmem:[#allocation6 + $0x150] sm:$0xff]
    %v1966 = vld [vmem:[#allocation6 + $0x158] sm:$0xff]
    %v1967 = vld [vmem:[#allocation6 + $0x160] sm:$0xff]
    %v1968 = vld [vmem:[#allocation6 + $0x168] sm:$0xff]
    %v1969 = vld [vmem:[#allocation6 + $0x170] sm:$0xff]
    %v1970 = vld [vmem:[#allocation6 + $0x178] sm:$0xff]
    %v1971 = vld [vmem:[#allocation6 + $0x180] sm:$0xff]
    %v1972 = vld [vmem:[#allocation6 + $0x188] sm:$0xff]
    %v1973 = vld [vmem:[#allocation6 + $0x190] sm:$0xff]
    %v1974 = vld [vmem:[#allocation6 + $0x198] sm:$0xff]
    %v1975 = vld [vmem:[#allocation6 + $0x1a0] sm:$0xff]
    %v1976 = vld [vmem:[#allocation6 + $0x1a8] sm:$0xff]
    %v1977 = vld [vmem:[#allocation6 + $0x1b0] sm:$0xff]
    %v1978 = vld [vmem:[#allocation6 + $0x1b8] sm:$0xff]
    %v1979 = vld [vmem:[#allocation6 + $0x1c0] sm:$0xff]
    %v1980 = vld [vmem:[#allocation6 + $0x1c8] sm:$0xff]
    %v1981 = vld [vmem:[#allocation6 + $0x1d0] sm:$0xff]
    %v1982 = vld [vmem:[#allocation6 + $0x1d8] sm:$0xff]
    %v1983 = vld [vmem:[#allocation6 + $0x1e0] sm:$0xff]
    %v1984 = vld [vmem:[#allocation6 + $0x1e8] sm:$0xff]
    %v1985 = vld [vmem:[#allocation6 + $0x1f0] sm:$0xff]
    %v1986 = vld [vmem:[#allocation6 + $0x1f8] sm:$0xff]
    %v1987 = vld [vmem:[%s8] sm:$0x3]
    %v1989 = vperm.slane %v1987, 0
    %v1990 = vperm.slane %v1987, 1
    %1993 = vmatpush.msra.mxu0 %v1953
    %1994 = vmatpush.msra.mxu0 %v1951
    %1995 = vmatpush.msra.mxu0 %v1949
    %1996 = vmatpush.msra.mxu0 %v1947
    %1997 = vmatpush.msra.mxu0 %v1945
    %1998 = vmatpush.msra.mxu0 %v1943
    %1999 = vmatpush.msra.mxu0 %v1941
    %2000 = vmatpush.msra.mxu0 %v1939
    %2001 = vmatpush.msra.mxu0 %v1937
    %2002 = vmatpush.msra.mxu0 %v1935
    %2003 = vmatpush.msra.mxu0 %v1933
    %2004 = vmatpush.msra.mxu0 %v1931
    %2005 = vmatpush.msra.mxu0 %v1929
    %2006 = vmatpush.msra.mxu0 %v1927
    %2007 = vmatpush.msra.mxu0 %v1925
    %2008 = vmatpush.msra.mxu0 %v1923
    %2009 = vmatmul.f32.gmra.mxu0 %v1859
    %v2010 = vpop.f32.mrf.mxu0
    %v2011 = vadd.f32 %v1989, %v2010
    %2012 = vmatmul.f32.gmra.mxu0 %v1861
    %v2013 = vpop.f32.mrf.mxu0
    %v2014 = vadd.f32 %v1989, %v2013
    %2015 = vmatmul.f32.gmra.mxu0 %v1863
    %v2016 = vpop.f32.mrf.mxu0
    %v2017 = vadd.f32 %v1989, %v2016
    %2018 = vmatmul.f32.gmra.mxu0 %v1865
    %v2019 = vpop.f32.mrf.mxu0
    %v2020 = vadd.f32 %v1989, %v2019
    %2021 = vmatmul.f32.gmra.mxu0 %v1867
    %v2022 = vpop.f32.mrf.mxu0
    %v2023 = vadd.f32 %v1989, %v2022
    %2024 = vmatmul.f32.gmra.mxu0 %v1869
    %v2025 = vpop.f32.mrf.mxu0
    %v2026 = vadd.f32 %v1989, %v2025
    %2027 = vmatmul.f32.gmra.mxu0 %v1871
    %v2028 = vpop.f32.mrf.mxu0
    %v2029 = vadd.f32 %v1989, %v2028
    %2030 = vmatmul.f32.gmra.mxu0 %v1873
    %v2031 = vpop.f32.mrf.mxu0
    %v2032 = vadd.f32 %v1989, %v2031
    %2033 = vmatmul.f32.gmra.mxu0 %v1875
    %v2034 = vpop.f32.mrf.mxu0
    %v2035 = vadd.f32 %v1989, %v2034
    %2036 = vmatmul.f32.gmra.mxu0 %v1877
    %v2037 = vpop.f32.mrf.mxu0
    %v2038 = vadd.f32 %v1989, %v2037
    %2039 = vmatmul.f32.gmra.mxu0 %v1879
    %v2040 = vpop.f32.mrf.mxu0
    %v2041 = vadd.f32 %v1989, %v2040
    %2042 = vmatmul.f32.gmra.mxu0 %v1881
    %v2043 = vpop.f32.mrf.mxu0
    %v2044 = vadd.f32 %v1989, %v2043
    %2045 = vmatmul.f32.gmra.mxu0 %v1883
    %v2046 = vpop.f32.mrf.mxu0
    %v2047 = vadd.f32 %v1989, %v2046
    %2048 = vmatmul.f32.gmra.mxu0 %v1885
    %v2049 = vpop.f32.mrf.mxu0
    %v2050 = vadd.f32 %v1989, %v2049
    %2051 = vmatmul.f32.gmra.mxu0 %v1887
    %v2052 = vpop.f32.mrf.mxu0
    %v2053 = vadd.f32 %v1989, %v2052
    %2054 = vmatmul.f32.gmra.mxu0 %v1889
    %v2055 = vpop.f32.mrf.mxu0
    %v2056 = vadd.f32 %v1989, %v2055
    %2057 = vmatmul.f32.gmra.mxu0 %v1891
    %v2058 = vpop.f32.mrf.mxu0
    %v2059 = vadd.f32 %v1989, %v2058
    %2060 = vmatmul.f32.gmra.mxu0 %v1893
    %v2061 = vpop.f32.mrf.mxu0
    %v2062 = vadd.f32 %v1989, %v2061
    %2063 = vmatmul.f32.gmra.mxu0 %v1895
    %v2064 = vpop.f32.mrf.mxu0
    %v2065 = vadd.f32 %v1989, %v2064
    %2066 = vmatmul.f32.gmra.mxu0 %v1897
    %v2067 = vpop.f32.mrf.mxu0
    %v2068 = vadd.f32 %v1989, %v2067
    %2069 = vmatmul.f32.gmra.mxu0 %v1899
    %v2070 = vpop.f32.mrf.mxu0
    %v2071 = vadd.f32 %v1989, %v2070
    %2072 = vmatmul.f32.gmra.mxu0 %v1901
    %v2073 = vpop.f32.mrf.mxu0
    %v2074 = vadd.f32 %v1989, %v2073
    %2075 = vmatmul.f32.gmra.mxu0 %v1903
    %v2076 = vpop.f32.mrf.mxu0
    %v2077 = vadd.f32 %v1989, %v2076
    %2078 = vmatmul.f32.gmra.mxu0 %v1905
    %v2079 = vpop.f32.mrf.mxu0
    %v2080 = vadd.f32 %v1989, %v2079
    %2081 = vmatmul.f32.gmra.mxu0 %v1907
    %v2082 = vpop.f32.mrf.mxu0
    %v2083 = vadd.f32 %v1989, %v2082
    %2084 = vmatmul.f32.gmra.mxu0 %v1909
    %v2085 = vpop.f32.mrf.mxu0
    %v2086 = vadd.f32 %v1989, %v2085
    %2087 = vmatmul.f32.gmra.mxu0 %v1911
    %v2088 = vpop.f32.mrf.mxu0
    %v2089 = vadd.f32 %v1989, %v2088
    %2090 = vmatmul.f32.gmra.mxu0 %v1913
    %v2091 = vpop.f32.mrf.mxu0
    %v2092 = vadd.f32 %v1989, %v2091
    %2093 = vmatmul.f32.gmra.mxu0 %v1915
    %v2094 = vpop.f32.mrf.mxu0
    %v2095 = vadd.f32 %v1989, %v2094
    %2096 = vmatmul.f32.gmra.mxu0 %v1917
    %v2097 = vpop.f32.mrf.mxu0
    %v2098 = vadd.f32 %v1989, %v2097
    %2099 = vmatmul.f32.gmra.mxu0 %v1919
    %v2100 = vpop.f32.mrf.mxu0
    %v2101 = vadd.f32 %v1989, %v2100
    %2102 = vmatmul.f32.gmra.mxu0 %v1921
    %v2103 = vpop.f32.mrf.mxu0
    %v2104 = vadd.f32 %v1989, %v2103
    %2105 = vdwg.mxu0
    %2106 = vmatpush.msra.mxu0 %v1985
    %2107 = vmatpush.msra.mxu0 %v1983
    %2108 = vmatpush.msra.mxu0 %v1981
    %2109 = vmatpush.msra.mxu0 %v1979
    %2110 = vmatpush.msra.mxu0 %v1977
    %2111 = vmatpush.msra.mxu0 %v1975
    %2112 = vmatpush.msra.mxu0 %v1973
    %2113 = vmatpush.msra.mxu0 %v1971
    %2114 = vmatpush.msra.mxu0 %v1969
    %2115 = vmatpush.msra.mxu0 %v1967
    %2116 = vmatpush.msra.mxu0 %v1965
    %2117 = vmatpush.msra.mxu0 %v1963
    %2118 = vmatpush.msra.mxu0 %v1961
    %2119 = vmatpush.msra.mxu0 %v1959
    %2120 = vmatpush.msra.mxu0 %v1957
    %2121 = vmatpush.msra.mxu0 %v1955
    %2122 = vmatmul.f32.gmra.mxu0 %v1860
    %v2123 = vpop.f32.mrf.mxu0
    %v2124 = vadd.f32 %v2011, %v2123
    %2125 = vmatmul.f32.gmra.mxu0 %v1862
    %v2126 = vpop.f32.mrf.mxu0
    %v2127 = vadd.f32 %v2014, %v2126
    %2128 = vmatmul.f32.gmra.mxu0 %v1864
    %v2129 = vpop.f32.mrf.mxu0
    %v2130 = vadd.f32 %v2017, %v2129
    %2131 = vmatmul.f32.gmra.mxu0 %v1866
    %v2132 = vpop.f32.mrf.mxu0
    %v2133 = vadd.f32 %v2020, %v2132
    %2134 = vmatmul.f32.gmra.mxu0 %v1868
    %v2135 = vpop.f32.mrf.mxu0
    %v2136 = vadd.f32 %v2023, %v2135
    %2137 = vmatmul.f32.gmra.mxu0 %v1870
    %v2138 = vpop.f32.mrf.mxu0
    %v2139 = vadd.f32 %v2026, %v2138
    %2140 = vmatmul.f32.gmra.mxu0 %v1872
    %v2141 = vpop.f32.mrf.mxu0
    %v2142 = vadd.f32 %v2029, %v2141
    %2143 = vmatmul.f32.gmra.mxu0 %v1874
    %v2144 = vpop.f32.mrf.mxu0
    %v2145 = vadd.f32 %v2032, %v2144
    %2146 = vmatmul.f32.gmra.mxu0 %v1876
    %v2147 = vpop.f32.mrf.mxu0
    %v2148 = vadd.f32 %v2035, %v2147
    %2149 = vmatmul.f32.gmra.mxu0 %v1878
    %v2150 = vpop.f32.mrf.mxu0
    %v2151 = vadd.f32 %v2038, %v2150
    %2152 = vmatmul.f32.gmra.mxu0 %v1880
    %v2153 = vpop.f32.mrf.mxu0
    %v2154 = vadd.f32 %v2041, %v2153
    %2155 = vmatmul.f32.gmra.mxu0 %v1882
    %v2156 = vpop.f32.mrf.mxu0
    %v2157 = vadd.f32 %v2044, %v2156
    %2158 = vmatmul.f32.gmra.mxu0 %v1884
    %v2159 = vpop.f32.mrf.mxu0
    %v2160 = vadd.f32 %v2047, %v2159
    %2161 = vmatmul.f32.gmra.mxu0 %v1886
    %v2162 = vpop.f32.mrf.mxu0
    %v2163 = vadd.f32 %v2050, %v2162
    %2164 = vmatmul.f32.gmra.mxu0 %v1888
    %v2165 = vpop.f32.mrf.mxu0
    %v2166 = vadd.f32 %v2053, %v2165
    %2167 = vmatmul.f32.gmra.mxu0 %v1890
    %v2168 = vpop.f32.mrf.mxu0
    %v2169 = vadd.f32 %v2056, %v2168
    %2170 = vmatmul.f32.gmra.mxu0 %v1892
    %v2171 = vpop.f32.mrf.mxu0
    %v2172 = vadd.f32 %v2059, %v2171
    %2173 = vmatmul.f32.gmra.mxu0 %v1894
    %v2174 = vpop.f32.mrf.mxu0
    %v2175 = vadd.f32 %v2062, %v2174
    %2176 = vmatmul.f32.gmra.mxu0 %v1896
    %v2177 = vpop.f32.mrf.mxu0
    %v2178 = vadd.f32 %v2065, %v2177
    %2179 = vmatmul.f32.gmra.mxu0 %v1898
    %v2180 = vpop.f32.mrf.mxu0
    %v2181 = vadd.f32 %v2068, %v2180
    %2182 = vmatmul.f32.gmra.mxu0 %v1900
    %v2183 = vpop.f32.mrf.mxu0
    %v2184 = vadd.f32 %v2071, %v2183
    %2185 = vmatmul.f32.gmra.mxu0 %v1902
    %v2186 = vpop.f32.mrf.mxu0
    %v2187 = vadd.f32 %v2074, %v2186
    %2188 = vmatmul.f32.gmra.mxu0 %v1904
    %v2189 = vpop.f32.mrf.mxu0
    %v2190 = vadd.f32 %v2077, %v2189
    %2191 = vmatmul.f32.gmra.mxu0 %v1906
    %v2192 = vpop.f32.mrf.mxu0
    %v2193 = vadd.f32 %v2080, %v2192
    %2194 = vmatmul.f32.gmra.mxu0 %v1908
    %v2195 = vpop.f32.mrf.mxu0
    %v2196 = vadd.f32 %v2083, %v2195
    %2197 = vmatmul.f32.gmra.mxu0 %v1910
    %v2198 = vpop.f32.mrf.mxu0
    %v2199 = vadd.f32 %v2086, %v2198
    %2200 = vmatmul.f32.gmra.mxu0 %v1912
    %v2201 = vpop.f32.mrf.mxu0
    %v2202 = vadd.f32 %v2089, %v2201
    %2203 = vmatmul.f32.gmra.mxu0 %v1914
    %v2204 = vpop.f32.mrf.mxu0
    %v2205 = vadd.f32 %v2092, %v2204
    %2206 = vmatmul.f32.gmra.mxu0 %v1916
    %v2207 = vpop.f32.mrf.mxu0
    %v2208 = vadd.f32 %v2095, %v2207
    %2209 = vmatmul.f32.gmra.mxu0 %v1918
    %v2210 = vpop.f32.mrf.mxu0
    %v2211 = vadd.f32 %v2098, %v2210
    %2212 = vmatmul.f32.gmra.mxu0 %v1920
    %v2213 = vpop.f32.mrf.mxu0
    %v2214 = vadd.f32 %v2101, %v2213
    %2215 = vmatmul.f32.gmra.mxu0 %v1922
    %v2216 = vpop.f32.mrf.mxu0
    %v2217 = vadd.f32 %v2104, %v2216
    %2218 = vdwg.mxu0
    %2219 = vmatpush.msra.mxu0 %v1954
    %2220 = vmatpush.msra.mxu0 %v1952
    %2221 = vmatpush.msra.mxu0 %v1950
    %2222 = vmatpush.msra.mxu0 %v1948
    %2223 = vmatpush.msra.mxu0 %v1946
    %2224 = vmatpush.msra.mxu0 %v1944
    %2225 = vmatpush.msra.mxu0 %v1942
    %2226 = vmatpush.msra.mxu0 %v1940
    %2227 = vmatpush.msra.mxu0 %v1938
    %2228 = vmatpush.msra.mxu0 %v1936
    %2229 = vmatpush.msra.mxu0 %v1934
    %2230 = vmatpush.msra.mxu0 %v1932
    %2231 = vmatpush.msra.mxu0 %v1930
    %2232 = vmatpush.msra.mxu0 %v1928
    %2233 = vmatpush.msra.mxu0 %v1926
    %2234 = vmatpush.msra.mxu0 %v1924
    %2235 = vmatmul.f32.gmra.mxu0 %v1859
    %v2236 = vpop.f32.mrf.mxu0
    %v2237 = vadd.f32 %v1990, %v2236
    %2238 = vmatmul.f32.gmra.mxu0 %v1861
    %v2239 = vpop.f32.mrf.mxu0
    %v2240 = vadd.f32 %v1990, %v2239
    %2241 = vmatmul.f32.gmra.mxu0 %v1863
    %v2242 = vpop.f32.mrf.mxu0
    %v2243 = vadd.f32 %v1990, %v2242
    %2244 = vmatmul.f32.gmra.mxu0 %v1865
    %v2245 = vpop.f32.mrf.mxu0
    %v2246 = vadd.f32 %v1990, %v2245
    %2247 = vmatmul.f32.gmra.mxu0 %v1867
    %v2248 = vpop.f32.mrf.mxu0
    %v2249 = vadd.f32 %v1990, %v2248
    %2250 = vmatmul.f32.gmra.mxu0 %v1869
    %v2251 = vpop.f32.mrf.mxu0
    %v2252 = vadd.f32 %v1990, %v2251
    %2253 = vmatmul.f32.gmra.mxu0 %v1871
    %v2254 = vpop.f32.mrf.mxu0
    %v2255 = vadd.f32 %v1990, %v2254
    %2256 = vmatmul.f32.gmra.mxu0 %v1873
    %v2257 = vpop.f32.mrf.mxu0
    %v2258 = vadd.f32 %v1990, %v2257
    %2259 = vmatmul.f32.gmra.mxu0 %v1875
    %v2260 = vpop.f32.mrf.mxu0
    %v2261 = vadd.f32 %v1990, %v2260
    %2262 = vmatmul.f32.gmra.mxu0 %v1877
    %v2263 = vpop.f32.mrf.mxu0
    %v2264 = vadd.f32 %v1990, %v2263
    %2265 = vmatmul.f32.gmra.mxu0 %v1879
    %v2266 = vpop.f32.mrf.mxu0
    %v2267 = vadd.f32 %v1990, %v2266
    %2268 = vmatmul.f32.gmra.mxu0 %v1881
    %v2269 = vpop.f32.mrf.mxu0
    %v2270 = vadd.f32 %v1990, %v2269
    %2271 = vmatmul.f32.gmra.mxu0 %v1883
    %v2272 = vpop.f32.mrf.mxu0
    %v2273 = vadd.f32 %v1990, %v2272
    %2274 = vmatmul.f32.gmra.mxu0 %v1885
    %v2275 = vpop.f32.mrf.mxu0
    %v2276 = vadd.f32 %v1990, %v2275
    %2277 = vmatmul.f32.gmra.mxu0 %v1887
    %v2278 = vpop.f32.mrf.mxu0
    %v2279 = vadd.f32 %v1990, %v2278
    %2280 = vmatmul.f32.gmra.mxu0 %v1889
    %v2281 = vpop.f32.mrf.mxu0
    %v2282 = vadd.f32 %v1990, %v2281
    %2283 = vmatmul.f32.gmra.mxu0 %v1891
    %v2284 = vpop.f32.mrf.mxu0
    %v2285 = vadd.f32 %v1990, %v2284
    %2286 = vmatmul.f32.gmra.mxu0 %v1893
    %v2287 = vpop.f32.mrf.mxu0
    %v2288 = vadd.f32 %v1990, %v2287
    %2289 = vmatmul.f32.gmra.mxu0 %v1895
    %v2290 = vpop.f32.mrf.mxu0
    %v2291 = vadd.f32 %v1990, %v2290
    %2292 = vmatmul.f32.gmra.mxu0 %v1897
    %v2293 = vpop.f32.mrf.mxu0
    %v2294 = vadd.f32 %v1990, %v2293
    %2295 = vmatmul.f32.gmra.mxu0 %v1899
    %v2296 = vpop.f32.mrf.mxu0
    %v2297 = vadd.f32 %v1990, %v2296
    %2298 = vmatmul.f32.gmra.mxu0 %v1901
    %v2299 = vpop.f32.mrf.mxu0
    %v2300 = vadd.f32 %v1990, %v2299
    %2301 = vmatmul.f32.gmra.mxu0 %v1903
    %v2302 = vpop.f32.mrf.mxu0
    %v2303 = vadd.f32 %v1990, %v2302
    %2304 = vmatmul.f32.gmra.mxu0 %v1905
    %v2305 = vpop.f32.mrf.mxu0
    %v2306 = vadd.f32 %v1990, %v2305
    %2307 = vmatmul.f32.gmra.mxu0 %v1907
    %v2308 = vpop.f32.mrf.mxu0
    %v2309 = vadd.f32 %v1990, %v2308
    %2310 = vmatmul.f32.gmra.mxu0 %v1909
    %v2311 = vpop.f32.mrf.mxu0
    %v2312 = vadd.f32 %v1990, %v2311
    %2313 = vmatmul.f32.gmra.mxu0 %v1911
    %v2314 = vpop.f32.mrf.mxu0
    %v2315 = vadd.f32 %v1990, %v2314
    %2316 = vmatmul.f32.gmra.mxu0 %v1913
    %v2317 = vpop.f32.mrf.mxu0
    %v2318 = vadd.f32 %v1990, %v2317
    %2319 = vmatmul.f32.gmra.mxu0 %v1915
    %v2320 = vpop.f32.mrf.mxu0
    %v2321 = vadd.f32 %v1990, %v2320
    %2322 = vmatmul.f32.gmra.mxu0 %v1917
    %v2323 = vpop.f32.mrf.mxu0
    %v2324 = vadd.f32 %v1990, %v2323
    %2325 = vmatmul.f32.gmra.mxu0 %v1919
    %v2326 = vpop.f32.mrf.mxu0
    %v2327 = vadd.f32 %v1990, %v2326
    %2328 = vmatmul.f32.gmra.mxu0 %v1921
    %v2329 = vpop.f32.mrf.mxu0
    %v2330 = vadd.f32 %v1990, %v2329
    %2331 = vdwg.mxu0
    %2332 = vmatpush.msra.mxu0 %v1986
    %2333 = vmatpush.msra.mxu0 %v1984
    %2334 = vmatpush.msra.mxu0 %v1982
    %2335 = vmatpush.msra.mxu0 %v1980
    %2336 = vmatpush.msra.mxu0 %v1978
    %2337 = vmatpush.msra.mxu0 %v1976
    %2338 = vmatpush.msra.mxu0 %v1974
    %2339 = vmatpush.msra.mxu0 %v1972
    %2340 = vmatpush.msra.mxu0 %v1970
    %2341 = vmatpush.msra.mxu0 %v1968
    %2342 = vmatpush.msra.mxu0 %v1966
    %2343 = vmatpush.msra.mxu0 %v1964
    %2344 = vmatpush.msra.mxu0 %v1962
    %2345 = vmatpush.msra.mxu0 %v1960
    %2346 = vmatpush.msra.mxu0 %v1958
    %2347 = vmatpush.msra.mxu0 %v1956
    %2348 = vmatmul.f32.gmra.mxu0 %v1860
    %v2349 = vpop.f32.mrf.mxu0
    %v2350 = vadd.f32 %v2237, %v2349
    %2351 = vmatmul.f32.gmra.mxu0 %v1862
    %v2352 = vpop.f32.mrf.mxu0
    %v2353 = vadd.f32 %v2240, %v2352
    %2354 = vmatmul.f32.gmra.mxu0 %v1864
    %v2355 = vpop.f32.mrf.mxu0
    %v2356 = vadd.f32 %v2243, %v2355
    %2357 = vmatmul.f32.gmra.mxu0 %v1866
    %v2358 = vpop.f32.mrf.mxu0
    %v2359 = vadd.f32 %v2246, %v2358
    %2360 = vmatmul.f32.gmra.mxu0 %v1868
    %v2361 = vpop.f32.mrf.mxu0
    %v2362 = vadd.f32 %v2249, %v2361
    %2363 = vmatmul.f32.gmra.mxu0 %v1870
    %v2364 = vpop.f32.mrf.mxu0
    %v2365 = vadd.f32 %v2252, %v2364
    %2366 = vmatmul.f32.gmra.mxu0 %v1872
    %v2367 = vpop.f32.mrf.mxu0
    %v2368 = vadd.f32 %v2255, %v2367
    %2369 = vmatmul.f32.gmra.mxu0 %v1874
    %v2370 = vpop.f32.mrf.mxu0
    %v2371 = vadd.f32 %v2258, %v2370
    %2372 = vmatmul.f32.gmra.mxu0 %v1876
    %v2373 = vpop.f32.mrf.mxu0
    %v2374 = vadd.f32 %v2261, %v2373
    %2375 = vmatmul.f32.gmra.mxu0 %v1878
    %v2376 = vpop.f32.mrf.mxu0
    %v2377 = vadd.f32 %v2264, %v2376
    %2378 = vmatmul.f32.gmra.mxu0 %v1880
    %v2379 = vpop.f32.mrf.mxu0
    %v2380 = vadd.f32 %v2267, %v2379
    %2381 = vmatmul.f32.gmra.mxu0 %v1882
    %v2382 = vpop.f32.mrf.mxu0
    %v2383 = vadd.f32 %v2270, %v2382
    %2384 = vmatmul.f32.gmra.mxu0 %v1884
    %v2385 = vpop.f32.mrf.mxu0
    %v2386 = vadd.f32 %v2273, %v2385
    %2387 = vmatmul.f32.gmra.mxu0 %v1886
    %v2388 = vpop.f32.mrf.mxu0
    %v2389 = vadd.f32 %v2276, %v2388
    %2390 = vmatmul.f32.gmra.mxu0 %v1888
    %v2391 = vpop.f32.mrf.mxu0
    %v2392 = vadd.f32 %v2279, %v2391
    %2393 = vmatmul.f32.gmra.mxu0 %v1890
    %v2394 = vpop.f32.mrf.mxu0
    %v2395 = vadd.f32 %v2282, %v2394
    %2396 = vmatmul.f32.gmra.mxu0 %v1892
    %v2397 = vpop.f32.mrf.mxu0
    %v2398 = vadd.f32 %v2285, %v2397
    %2399 = vmatmul.f32.gmra.mxu0 %v1894
    %v2400 = vpop.f32.mrf.mxu0
    %v2401 = vadd.f32 %v2288, %v2400
    %2402 = vmatmul.f32.gmra.mxu0 %v1896
    %v2403 = vpop.f32.mrf.mxu0
    %v2404 = vadd.f32 %v2291, %v2403
    %2405 = vmatmul.f32.gmra.mxu0 %v1898
    %v2406 = vpop.f32.mrf.mxu0
    %v2407 = vadd.f32 %v2294, %v2406
    %2408 = vmatmul.f32.gmra.mxu0 %v1900
    %v2409 = vpop.f32.mrf.mxu0
    %v2410 = vadd.f32 %v2297, %v2409
    %2411 = vmatmul.f32.gmra.mxu0 %v1902
    %v2412 = vpop.f32.mrf.mxu0
    %v2413 = vadd.f32 %v2300, %v2412
    %2414 = vmatmul.f32.gmra.mxu0 %v1904
    %v2415 = vpop.f32.mrf.mxu0
    %v2416 = vadd.f32 %v2303, %v2415
    %2417 = vmatmul.f32.gmra.mxu0 %v1906
    %v2418 = vpop.f32.mrf.mxu0
    %v2419 = vadd.f32 %v2306, %v2418
    %2420 = vmatmul.f32.gmra.mxu0 %v1908
    %v2421 = vpop.f32.mrf.mxu0
    %v2422 = vadd.f32 %v2309, %v2421
    %2423 = vmatmul.f32.gmra.mxu0 %v1910
    %v2424 = vpop.f32.mrf.mxu0
    %v2425 = vadd.f32 %v2312, %v2424
    %2426 = vmatmul.f32.gmra.mxu0 %v1912
    %v2427 = vpop.f32.mrf.mxu0
    %v2428 = vadd.f32 %v2315, %v2427
    %2429 = vmatmul.f32.gmra.mxu0 %v1914
    %v2430 = vpop.f32.mrf.mxu0
    %v2431 = vadd.f32 %v2318, %v2430
    %2432 = vmatmul.f32.gmra.mxu0 %v1916
    %v2433 = vpop.f32.mrf.mxu0
    %v2434 = vadd.f32 %v2321, %v2433
    %2435 = vmatmul.f32.gmra.mxu0 %v1918
    %v2436 = vpop.f32.mrf.mxu0
    %v2437 = vadd.f32 %v2324, %v2436
    %2438 = vmatmul.f32.gmra.mxu0 %v1920
    %v2439 = vpop.f32.mrf.mxu0
    %v2440 = vadd.f32 %v2327, %v2439
    %2441 = vmatmul.f32.gmra.mxu0 %v1922
    %v2442 = vpop.f32.mrf.mxu0
    %v2443 = vadd.f32 %v2330, %v2442
    %2444 = vdwg.mxu0
    %v2445 = vmax.f32 %v2124, 0.0
    %v2446 = vmax.f32 %v2350, 0.0
    %v2447 = vmax.f32 %v2127, 0.0
    %v2448 = vmax.f32 %v2353, 0.0
    %v2449 = vmax.f32 %v2130, 0.0
    %v2450 = vmax.f32 %v2356, 0.0
    %v2451 = vmax.f32 %v2133, 0.0
    %v2452 = vmax.f32 %v2359, 0.0
    %v2453 = vmax.f32 %v2136, 0.0
    %v2454 = vmax.f32 %v2362, 0.0
    %v2455 = vmax.f32 %v2139, 0.0
    %v2456 = vmax.f32 %v2365, 0.0
    %v2457 = vmax.f32 %v2142, 0.0
    %v2458 = vmax.f32 %v2368, 0.0
    %v2459 = vmax.f32 %v2145, 0.0
    %v2460 = vmax.f32 %v2371, 0.0
    %v2461 = vmax.f32 %v2148, 0.0
    %v2462 = vmax.f32 %v2374, 0.0
    %v2463 = vmax.f32 %v2151, 0.0
    %v2464 = vmax.f32 %v2377, 0.0
    %v2465 = vmax.f32 %v2154, 0.0
    %v2466 = vmax.f32 %v2380, 0.0
    %v2467 = vmax.f32 %v2157, 0.0
    %v2468 = vmax.f32 %v2383, 0.0
    %v2469 = vmax.f32 %v2160, 0.0
    %v2470 = vmax.f32 %v2386, 0.0
    %v2471 = vmax.f32 %v2163, 0.0
    %v2472 = vmax.f32 %v2389, 0.0
    %v2473 = vmax.f32 %v2166, 0.0
    %v2474 = vmax.f32 %v2392, 0.0
    %v2475 = vmax.f32 %v2169, 0.0
    %v2476 = vmax.f32 %v2395, 0.0
    %v2477 = vmax.f32 %v2172, 0.0
    %v2478 = vmax.f32 %v2398, 0.0
    %v2479 = vmax.f32 %v2175, 0.0
    %v2480 = vmax.f32 %v2401, 0.0
    %v2481 = vmax.f32 %v2178, 0.0
    %v2482 = vmax.f32 %v2404, 0.0
    %v2483 = vmax.f32 %v2181, 0.0
    %v2484 = vmax.f32 %v2407, 0.0
    %v2485 = vmax.f32 %v2184, 0.0
    %v2486 = vmax.f32 %v2410, 0.0
    %v2487 = vmax.f32 %v2187, 0.0
    %v2488 = vmax.f32 %v2413, 0.0
    %v2489 = vmax.f32 %v2190, 0.0
    %v2490 = vmax.f32 %v2416, 0.0
    %v2491 = vmax.f32 %v2193, 0.0
    %v2492 = vmax.f32 %v2419, 0.0
    %v2493 = vmax.f32 %v2196, 0.0
    %v2494 = vmax.f32 %v2422, 0.0
    %v2495 = vmax.f32 %v2199, 0.0
    %v2496 = vmax.f32 %v2425, 0.0
    %v2497 = vmax.f32 %v2202, 0.0
    %v2498 = vmax.f32 %v2428, 0.0
    %v2499 = vmax.f32 %v2205, 0.0
    %v2500 = vmax.f32 %v2431, 0.0
    %v2501 = vmax.f32 %v2208, 0.0
    %v2502 = vmax.f32 %v2434, 0.0
    %v2503 = vmax.f32 %v2211, 0.0
    %v2504 = vmax.f32 %v2437, 0.0
    %v2505 = vmax.f32 %v2214, 0.0
    %v2506 = vmax.f32 %v2440, 0.0
    %v2507 = vmax.f32 %v2217, 0.0
    %v2508 = vmax.f32 %v2443, 0.0
    %v2509 = vld [vmem:[#allocation7] sm:$0xff]
    %v2510 = vld [vmem:[#allocation7 + $0x8] sm:$0xff]
    %v2511 = vld [vmem:[#allocation7 + $0x10] sm:$0xff]
    %v2512 = vld [vmem:[#allocation7 + $0x18] sm:$0xff]
    %v2513 = vld [vmem:[#allocation7 + $0x20] sm:$0xff]
    %v2514 = vld [vmem:[#allocation7 + $0x28] sm:$0xff]
    %v2515 = vld [vmem:[#allocation7 + $0x30] sm:$0xff]
    %v2516 = vld [vmem:[#allocation7 + $0x38] sm:$0xff]
    %v2517 = vld [vmem:[#allocation7 + $0x40] sm:$0xff]
    %v2518 = vld [vmem:[#allocation7 + $0x48] sm:$0xff]
    %v2519 = vld [vmem:[#allocation7 + $0x50] sm:$0xff]
    %v2520 = vld [vmem:[#allocation7 + $0x58] sm:$0xff]
    %v2521 = vld [vmem:[#allocation7 + $0x60] sm:$0xff]
    %v2522 = vld [vmem:[#allocation7 + $0x68] sm:$0xff]
    %v2523 = vld [vmem:[#allocation7 + $0x70] sm:$0xff]
    %v2524 = vld [vmem:[#allocation7 + $0x78] sm:$0xff]
    %v2525 = vld [vmem:[#allocation7 + $0x80] sm:$0xff]
    %v2526 = vld [vmem:[#allocation7 + $0x88] sm:$0xff]
    %v2527 = vld [vmem:[#allocation7 + $0x90] sm:$0xff]
    %v2528 = vld [vmem:[#allocation7 + $0x98] sm:$0xff]
    %v2529 = vld [vmem:[#allocation7 + $0xa0] sm:$0xff]
    %v2530 = vld [vmem:[#allocation7 + $0xa8] sm:$0xff]
    %v2531 = vld [vmem:[#allocation7 + $0xb0] sm:$0xff]
    %v2532 = vld [vmem:[#allocation7 + $0xb8] sm:$0xff]
    %v2533 = vld [vmem:[#allocation7 + $0xc0] sm:$0xff]
    %v2534 = vld [vmem:[#allocation7 + $0xc8] sm:$0xff]
    %v2535 = vld [vmem:[#allocation7 + $0xd0] sm:$0xff]
    %v2536 = vld [vmem:[#allocation7 + $0xd8] sm:$0xff]
    %v2537 = vld [vmem:[#allocation7 + $0xe0] sm:$0xff]
    %v2538 = vld [vmem:[#allocation7 + $0xe8] sm:$0xff]
    %v2539 = vld [vmem:[#allocation7 + $0xf0] sm:$0xff]
    %v2540 = vld [vmem:[#allocation7 + $0xf8] sm:$0xff]
    %v2541 = vld [vmem:[#allocation7 + $0x100] sm:$0xff]
    %v2542 = vld [vmem:[#allocation7 + $0x108] sm:$0xff]
    %v2543 = vld [vmem:[#allocation7 + $0x110] sm:$0xff]
    %v2544 = vld [vmem:[#allocation7 + $0x118] sm:$0xff]
    %v2545 = vld [vmem:[#allocation7 + $0x120] sm:$0xff]
    %v2546 = vld [vmem:[#allocation7 + $0x128] sm:$0xff]
    %v2547 = vld [vmem:[#allocation7 + $0x130] sm:$0xff]
    %v2548 = vld [vmem:[#allocation7 + $0x138] sm:$0xff]
    %v2549 = vld [vmem:[#allocation7 + $0x140] sm:$0xff]
    %v2550 = vld [vmem:[#allocation7 + $0x148] sm:$0xff]
    %v2551 = vld [vmem:[#allocation7 + $0x150] sm:$0xff]
    %v2552 = vld [vmem:[#allocation7 + $0x158] sm:$0xff]
    %v2553 = vld [vmem:[#allocation7 + $0x160] sm:$0xff]
    %v2554 = vld [vmem:[#allocation7 + $0x168] sm:$0xff]
    %v2555 = vld [vmem:[#allocation7 + $0x170] sm:$0xff]
    %v2556 = vld [vmem:[#allocation7 + $0x178] sm:$0xff]
    %v2557 = vld [vmem:[#allocation7 + $0x180] sm:$0xff]
    %v2558 = vld [vmem:[#allocation7 + $0x188] sm:$0xff]
    %v2559 = vld [vmem:[#allocation7 + $0x190] sm:$0xff]
    %v2560 = vld [vmem:[#allocation7 + $0x198] sm:$0xff]
    %v2561 = vld [vmem:[#allocation7 + $0x1a0] sm:$0xff]
    %v2562 = vld [vmem:[#allocation7 + $0x1a8] sm:$0xff]
    %v2563 = vld [vmem:[#allocation7 + $0x1b0] sm:$0xff]
    %v2564 = vld [vmem:[#allocation7 + $0x1b8] sm:$0xff]
    %v2565 = vld [vmem:[#allocation7 + $0x1c0] sm:$0xff]
    %v2566 = vld [vmem:[#allocation7 + $0x1c8] sm:$0xff]
    %v2567 = vld [vmem:[#allocation7 + $0x1d0] sm:$0xff]
    %v2568 = vld [vmem:[#allocation7 + $0x1d8] sm:$0xff]
    %v2569 = vld [vmem:[#allocation7 + $0x1e0] sm:$0xff]
    %v2570 = vld [vmem:[#allocation7 + $0x1e8] sm:$0xff]
    %v2571 = vld [vmem:[#allocation7 + $0x1f0] sm:$0xff]
    %v2572 = vld [vmem:[#allocation7 + $0x1f8] sm:$0xff]
    %v2573 = vld [vmem:[#allocation7 + $0x200] sm:$0xff]
    %v2574 = vld [vmem:[#allocation7 + $0x208] sm:$0xff]
    %v2575 = vld [vmem:[#allocation7 + $0x210] sm:$0xff]
    %v2576 = vld [vmem:[#allocation7 + $0x218] sm:$0xff]
    %v2577 = vld [vmem:[#allocation7 + $0x220] sm:$0xff]
    %v2578 = vld [vmem:[#allocation7 + $0x228] sm:$0xff]
    %v2579 = vld [vmem:[#allocation7 + $0x230] sm:$0xff]
    %v2580 = vld [vmem:[#allocation7 + $0x238] sm:$0xff]
    %v2581 = vld [vmem:[#allocation7 + $0x240] sm:$0xff]
    %v2582 = vld [vmem:[#allocation7 + $0x248] sm:$0xff]
    %v2583 = vld [vmem:[#allocation7 + $0x250] sm:$0xff]
    %v2584 = vld [vmem:[#allocation7 + $0x258] sm:$0xff]
    %v2585 = vld [vmem:[#allocation7 + $0x260] sm:$0xff]
    %v2586 = vld [vmem:[#allocation7 + $0x268] sm:$0xff]
    %v2587 = vld [vmem:[#allocation7 + $0x270] sm:$0xff]
    %v2588 = vld [vmem:[#allocation7 + $0x278] sm:$0xff]
    %v2589 = vld [vmem:[#allocation7 + $0x280] sm:$0xff]
    %v2590 = vld [vmem:[#allocation7 + $0x288] sm:$0xff]
    %v2591 = vld [vmem:[#allocation7 + $0x290] sm:$0xff]
    %v2592 = vld [vmem:[#allocation7 + $0x298] sm:$0xff]
    %v2593 = vld [vmem:[#allocation7 + $0x2a0] sm:$0xff]
    %v2594 = vld [vmem:[#allocation7 + $0x2a8] sm:$0xff]
    %v2595 = vld [vmem:[#allocation7 + $0x2b0] sm:$0xff]
    %v2596 = vld [vmem:[#allocation7 + $0x2b8] sm:$0xff]
    %v2597 = vld [vmem:[#allocation7 + $0x2c0] sm:$0xff]
    %v2598 = vld [vmem:[#allocation7 + $0x2c8] sm:$0xff]
    %v2599 = vld [vmem:[#allocation7 + $0x2d0] sm:$0xff]
    %v2600 = vld [vmem:[#allocation7 + $0x2d8] sm:$0xff]
    %v2601 = vld [vmem:[#allocation7 + $0x2e0] sm:$0xff]
    %v2602 = vld [vmem:[#allocation7 + $0x2e8] sm:$0xff]
    %v2603 = vld [vmem:[#allocation7 + $0x2f0] sm:$0xff]
    %v2604 = vld [vmem:[#allocation7 + $0x2f8] sm:$0xff]
    %v2605 = vld [vmem:[#allocation7 + $0x300] sm:$0xff]
    %v2606 = vld [vmem:[#allocation7 + $0x308] sm:$0xff]
    %v2607 = vld [vmem:[#allocation7 + $0x310] sm:$0xff]
    %v2608 = vld [vmem:[#allocation7 + $0x318] sm:$0xff]
    %v2609 = vld [vmem:[#allocation7 + $0x320] sm:$0xff]
    %v2610 = vld [vmem:[#allocation7 + $0x328] sm:$0xff]
    %v2611 = vld [vmem:[#allocation7 + $0x330] sm:$0xff]
    %v2612 = vld [vmem:[#allocation7 + $0x338] sm:$0xff]
    %v2613 = vld [vmem:[#allocation7 + $0x340] sm:$0xff]
    %v2614 = vld [vmem:[#allocation7 + $0x348] sm:$0xff]
    %v2615 = vld [vmem:[#allocation7 + $0x350] sm:$0xff]
    %v2616 = vld [vmem:[#allocation7 + $0x358] sm:$0xff]
    %v2617 = vld [vmem:[#allocation7 + $0x360] sm:$0xff]
    %v2618 = vld [vmem:[#allocation7 + $0x368] sm:$0xff]
    %v2619 = vld [vmem:[#allocation7 + $0x370] sm:$0xff]
    %v2620 = vld [vmem:[#allocation7 + $0x378] sm:$0xff]
    %v2621 = vld [vmem:[#allocation7 + $0x380] sm:$0xff]
    %v2622 = vld [vmem:[#allocation7 + $0x388] sm:$0xff]
    %v2623 = vld [vmem:[#allocation7 + $0x390] sm:$0xff]
    %v2624 = vld [vmem:[#allocation7 + $0x398] sm:$0xff]
    %v2625 = vld [vmem:[#allocation7 + $0x3a0] sm:$0xff]
    %v2626 = vld [vmem:[#allocation7 + $0x3a8] sm:$0xff]
    %v2627 = vld [vmem:[#allocation7 + $0x3b0] sm:$0xff]
    %v2628 = vld [vmem:[#allocation7 + $0x3b8] sm:$0xff]
    %v2629 = vld [vmem:[#allocation7 + $0x3c0] sm:$0xff]
    %v2630 = vld [vmem:[#allocation7 + $0x3c8] sm:$0xff]
    %v2631 = vld [vmem:[#allocation7 + $0x3d0] sm:$0xff]
    %v2632 = vld [vmem:[#allocation7 + $0x3d8] sm:$0xff]
    %v2633 = vld [vmem:[#allocation7 + $0x3e0] sm:$0xff]
    %v2634 = vld [vmem:[#allocation7 + $0x3e8] sm:$0xff]
    %v2635 = vld [vmem:[#allocation7 + $0x3f0] sm:$0xff]
    %v2636 = vld [vmem:[#allocation7 + $0x3f8] sm:$0xff]
    %v2637 = vld [vmem:[#allocation7 + $0x400] sm:$0xff]
    %v2638 = vld [vmem:[#allocation7 + $0x408] sm:$0xff]
    %v2639 = vld [vmem:[#allocation7 + $0x410] sm:$0xff]
    %v2640 = vld [vmem:[#allocation7 + $0x418] sm:$0xff]
    %v2641 = vld [vmem:[#allocation7 + $0x420] sm:$0xff]
    %v2642 = vld [vmem:[#allocation7 + $0x428] sm:$0xff]
    %v2643 = vld [vmem:[#allocation7 + $0x430] sm:$0xff]
    %v2644 = vld [vmem:[#allocation7 + $0x438] sm:$0xff]
    %v2645 = vld [vmem:[#allocation7 + $0x440] sm:$0xff]
    %v2646 = vld [vmem:[#allocation7 + $0x448] sm:$0xff]
    %v2647 = vld [vmem:[#allocation7 + $0x450] sm:$0xff]
    %v2648 = vld [vmem:[#allocation7 + $0x458] sm:$0xff]
    %v2649 = vld [vmem:[#allocation7 + $0x460] sm:$0xff]
    %v2650 = vld [vmem:[#allocation7 + $0x468] sm:$0xff]
    %v2651 = vld [vmem:[#allocation7 + $0x470] sm:$0xff]
    %v2652 = vld [vmem:[#allocation7 + $0x478] sm:$0xff]
    %v2653 = vld [vmem:[#allocation7 + $0x480] sm:$0xff]
    %v2654 = vld [vmem:[#allocation7 + $0x488] sm:$0xff]
    %v2655 = vld [vmem:[#allocation7 + $0x490] sm:$0xff]
    %v2656 = vld [vmem:[#allocation7 + $0x498] sm:$0xff]
    %v2657 = vld [vmem:[#allocation7 + $0x4a0] sm:$0xff]
    %v2658 = vld [vmem:[#allocation7 + $0x4a8] sm:$0xff]
    %v2659 = vld [vmem:[#allocation7 + $0x4b0] sm:$0xff]
    %v2660 = vld [vmem:[#allocation7 + $0x4b8] sm:$0xff]
    %v2661 = vld [vmem:[#allocation7 + $0x4c0] sm:$0xff]
    %v2662 = vld [vmem:[#allocation7 + $0x4c8] sm:$0xff]
    %v2663 = vld [vmem:[#allocation7 + $0x4d0] sm:$0xff]
    %v2664 = vld [vmem:[#allocation7 + $0x4d8] sm:$0xff]
    %v2665 = vld [vmem:[#allocation7 + $0x4e0] sm:$0xff]
    %v2666 = vld [vmem:[#allocation7 + $0x4e8] sm:$0xff]
    %v2667 = vld [vmem:[#allocation7 + $0x4f0] sm:$0xff]
    %v2668 = vld [vmem:[#allocation7 + $0x4f8] sm:$0xff]
    %v2669 = vld [vmem:[#allocation7 + $0x500] sm:$0xff]
    %v2670 = vld [vmem:[#allocation7 + $0x508] sm:$0xff]
    %v2671 = vld [vmem:[#allocation7 + $0x510] sm:$0xff]
    %v2672 = vld [vmem:[#allocation7 + $0x518] sm:$0xff]
    %v2673 = vld [vmem:[#allocation7 + $0x520] sm:$0xff]
    %v2674 = vld [vmem:[#allocation7 + $0x528] sm:$0xff]
    %v2675 = vld [vmem:[#allocation7 + $0x530] sm:$0xff]
    %v2676 = vld [vmem:[#allocation7 + $0x538] sm:$0xff]
    %v2677 = vld [vmem:[#allocation7 + $0x540] sm:$0xff]
    %v2678 = vld [vmem:[#allocation7 + $0x548] sm:$0xff]
    %v2679 = vld [vmem:[#allocation7 + $0x550] sm:$0xff]
    %v2680 = vld [vmem:[#allocation7 + $0x558] sm:$0xff]
    %v2681 = vld [vmem:[#allocation7 + $0x560] sm:$0xff]
    %v2682 = vld [vmem:[#allocation7 + $0x568] sm:$0xff]
    %v2683 = vld [vmem:[#allocation7 + $0x570] sm:$0xff]
    %v2684 = vld [vmem:[#allocation7 + $0x578] sm:$0xff]
    %v2685 = vld [vmem:[#allocation7 + $0x580] sm:$0xff]
    %v2686 = vld [vmem:[#allocation7 + $0x588] sm:$0xff]
    %v2687 = vld [vmem:[#allocation7 + $0x590] sm:$0xff]
    %v2688 = vld [vmem:[#allocation7 + $0x598] sm:$0xff]
    %v2689 = vld [vmem:[#allocation7 + $0x5a0] sm:$0xff]
    %v2690 = vld [vmem:[#allocation7 + $0x5a8] sm:$0xff]
    %v2691 = vld [vmem:[#allocation7 + $0x5b0] sm:$0xff]
    %v2692 = vld [vmem:[#allocation7 + $0x5b8] sm:$0xff]
    %v2693 = vld [vmem:[#allocation7 + $0x5c0] sm:$0xff]
    %v2694 = vld [vmem:[#allocation7 + $0x5c8] sm:$0xff]
    %v2695 = vld [vmem:[#allocation7 + $0x5d0] sm:$0xff]
    %v2696 = vld [vmem:[#allocation7 + $0x5d8] sm:$0xff]
    %v2697 = vld [vmem:[#allocation7 + $0x5e0] sm:$0xff]
    %v2698 = vld [vmem:[#allocation7 + $0x5e8] sm:$0xff]
    %v2699 = vld [vmem:[#allocation7 + $0x5f0] sm:$0xff]
    %v2700 = vld [vmem:[#allocation7 + $0x5f8] sm:$0xff]
    %v2701 = vld [vmem:[#allocation7 + $0x600] sm:$0xff]
    %v2702 = vld [vmem:[#allocation7 + $0x608] sm:$0xff]
    %v2703 = vld [vmem:[#allocation7 + $0x610] sm:$0xff]
    %v2704 = vld [vmem:[#allocation7 + $0x618] sm:$0xff]
    %v2705 = vld [vmem:[#allocation7 + $0x620] sm:$0xff]
    %v2706 = vld [vmem:[#allocation7 + $0x628] sm:$0xff]
    %v2707 = vld [vmem:[#allocation7 + $0x630] sm:$0xff]
    %v2708 = vld [vmem:[#allocation7 + $0x638] sm:$0xff]
    %v2709 = vld [vmem:[#allocation7 + $0x640] sm:$0xff]
    %v2710 = vld [vmem:[#allocation7 + $0x648] sm:$0xff]
    %v2711 = vld [vmem:[#allocation7 + $0x650] sm:$0xff]
    %v2712 = vld [vmem:[#allocation7 + $0x658] sm:$0xff]
    %v2713 = vld [vmem:[#allocation7 + $0x660] sm:$0xff]
    %v2714 = vld [vmem:[#allocation7 + $0x668] sm:$0xff]
    %v2715 = vld [vmem:[#allocation7 + $0x670] sm:$0xff]
    %v2716 = vld [vmem:[#allocation7 + $0x678] sm:$0xff]
    %v2717 = vld [vmem:[#allocation7 + $0x680] sm:$0xff]
    %v2718 = vld [vmem:[#allocation7 + $0x688] sm:$0xff]
    %v2719 = vld [vmem:[#allocation7 + $0x690] sm:$0xff]
    %v2720 = vld [vmem:[#allocation7 + $0x698] sm:$0xff]
    %v2721 = vld [vmem:[#allocation7 + $0x6a0] sm:$0xff]
    %v2722 = vld [vmem:[#allocation7 + $0x6a8] sm:$0xff]
    %v2723 = vld [vmem:[#allocation7 + $0x6b0] sm:$0xff]
    %v2724 = vld [vmem:[#allocation7 + $0x6b8] sm:$0xff]
    %v2725 = vld [vmem:[#allocation7 + $0x6c0] sm:$0xff]
    %v2726 = vld [vmem:[#allocation7 + $0x6c8] sm:$0xff]
    %v2727 = vld [vmem:[#allocation7 + $0x6d0] sm:$0xff]
    %v2728 = vld [vmem:[#allocation7 + $0x6d8] sm:$0xff]
    %v2729 = vld [vmem:[#allocation7 + $0x6e0] sm:$0xff]
    %v2730 = vld [vmem:[#allocation7 + $0x6e8] sm:$0xff]
    %v2731 = vld [vmem:[#allocation7 + $0x6f0] sm:$0xff]
    %v2732 = vld [vmem:[#allocation7 + $0x6f8] sm:$0xff]
    %v2733 = vld [vmem:[#allocation7 + $0x700] sm:$0xff]
    %v2734 = vld [vmem:[#allocation7 + $0x708] sm:$0xff]
    %v2735 = vld [vmem:[#allocation7 + $0x710] sm:$0xff]
    %v2736 = vld [vmem:[#allocation7 + $0x718] sm:$0xff]
    %v2737 = vld [vmem:[#allocation7 + $0x720] sm:$0xff]
    %v2738 = vld [vmem:[#allocation7 + $0x728] sm:$0xff]
    %v2739 = vld [vmem:[#allocation7 + $0x730] sm:$0xff]
    %v2740 = vld [vmem:[#allocation7 + $0x738] sm:$0xff]
    %v2741 = vld [vmem:[#allocation7 + $0x740] sm:$0xff]
    %v2742 = vld [vmem:[#allocation7 + $0x748] sm:$0xff]
    %v2743 = vld [vmem:[#allocation7 + $0x750] sm:$0xff]
    %v2744 = vld [vmem:[#allocation7 + $0x758] sm:$0xff]
    %v2745 = vld [vmem:[#allocation7 + $0x760] sm:$0xff]
    %v2746 = vld [vmem:[#allocation7 + $0x768] sm:$0xff]
    %v2747 = vld [vmem:[#allocation7 + $0x770] sm:$0xff]
    %v2748 = vld [vmem:[#allocation7 + $0x778] sm:$0xff]
    %v2749 = vld [vmem:[#allocation7 + $0x780] sm:$0xff]
    %v2750 = vld [vmem:[#allocation7 + $0x788] sm:$0xff]
    %v2751 = vld [vmem:[#allocation7 + $0x790] sm:$0xff]
    %v2752 = vld [vmem:[#allocation7 + $0x798] sm:$0xff]
    %v2753 = vld [vmem:[#allocation7 + $0x7a0] sm:$0xff]
    %v2754 = vld [vmem:[#allocation7 + $0x7a8] sm:$0xff]
    %v2755 = vld [vmem:[#allocation7 + $0x7b0] sm:$0xff]
    %v2756 = vld [vmem:[#allocation7 + $0x7b8] sm:$0xff]
    %v2757 = vld [vmem:[#allocation7 + $0x7c0] sm:$0xff]
    %v2758 = vld [vmem:[#allocation7 + $0x7c8] sm:$0xff]
    %v2759 = vld [vmem:[#allocation7 + $0x7d0] sm:$0xff]
    %v2760 = vld [vmem:[#allocation7 + $0x7d8] sm:$0xff]
    %v2761 = vld [vmem:[#allocation7 + $0x7e0] sm:$0xff]
    %v2762 = vld [vmem:[#allocation7 + $0x7e8] sm:$0xff]
    %v2763 = vld [vmem:[#allocation7 + $0x7f0] sm:$0xff]
    %v2764 = vld [vmem:[#allocation7 + $0x7f8] sm:$0xff]
    %v2765 = vld [vmem:[%s10] sm:$0xff]
    %v2767 = vperm.slane %v2765, 0
    %v2768 = vperm.slane %v2765, 1
    %v2769 = vperm.slane %v2765, 2
    %v2770 = vperm.slane %v2765, 3
    %v2771 = vperm.slane %v2765, 4
    %v2772 = vperm.slane %v2765, 5
    %v2773 = vperm.slane %v2765, 6
    %v2774 = vperm.slane %v2765, 7
    %2783 = vmatpush.msra.mxu0 %v2629
    %2784 = vmatpush.msra.mxu0 %v2621
    %2785 = vmatpush.msra.mxu0 %v2613
    %2786 = vmatpush.msra.mxu0 %v2605
    %2787 = vmatpush.msra.mxu0 %v2597
    %2788 = vmatpush.msra.mxu0 %v2589
    %2789 = vmatpush.msra.mxu0 %v2581
    %2790 = vmatpush.msra.mxu0 %v2573
    %2791 = vmatpush.msra.mxu0 %v2565
    %2792 = vmatpush.msra.mxu0 %v2557
    %2793 = vmatpush.msra.mxu0 %v2549
    %2794 = vmatpush.msra.mxu0 %v2541
    %2795 = vmatpush.msra.mxu0 %v2533
    %2796 = vmatpush.msra.mxu0 %v2525
    %2797 = vmatpush.msra.mxu0 %v2517
    %2798 = vmatpush.msra.mxu0 %v2509
    %2799 = vmatmul.f32.gmra.mxu0 %v2445
    %v2800 = vpop.f32.mrf.mxu0
    %v2801 = vadd.f32 %v2767, %v2800
    %2802 = vmatmul.f32.gmra.mxu0 %v2447
    %v2803 = vpop.f32.mrf.mxu0
    %v2804 = vadd.f32 %v2767, %v2803
    %2805 = vmatmul.f32.gmra.mxu0 %v2449
    %v2806 = vpop.f32.mrf.mxu0
    %v2807 = vadd.f32 %v2767, %v2806
    %2808 = vmatmul.f32.gmra.mxu0 %v2451
    %v2809 = vpop.f32.mrf.mxu0
    %v2810 = vadd.f32 %v2767, %v2809
    %2811 = vmatmul.f32.gmra.mxu0 %v2453
    %v2812 = vpop.f32.mrf.mxu0
    %v2813 = vadd.f32 %v2767, %v2812
    %2814 = vmatmul.f32.gmra.mxu0 %v2455
    %v2815 = vpop.f32.mrf.mxu0
    %v2816 = vadd.f32 %v2767, %v2815
    %2817 = vmatmul.f32.gmra.mxu0 %v2457
    %v2818 = vpop.f32.mrf.mxu0
    %v2819 = vadd.f32 %v2767, %v2818
    %2820 = vmatmul.f32.gmra.mxu0 %v2459
    %v2821 = vpop.f32.mrf.mxu0
    %v2822 = vadd.f32 %v2767, %v2821
    %2823 = vmatmul.f32.gmra.mxu0 %v2461
    %v2824 = vpop.f32.mrf.mxu0
    %v2825 = vadd.f32 %v2767, %v2824
    %2826 = vmatmul.f32.gmra.mxu0 %v2463
    %v2827 = vpop.f32.mrf.mxu0
    %v2828 = vadd.f32 %v2767, %v2827
    %2829 = vmatmul.f32.gmra.mxu0 %v2465
    %v2830 = vpop.f32.mrf.mxu0
    %v2831 = vadd.f32 %v2767, %v2830
    %2832 = vmatmul.f32.gmra.mxu0 %v2467
    %v2833 = vpop.f32.mrf.mxu0
    %v2834 = vadd.f32 %v2767, %v2833
    %2835 = vmatmul.f32.gmra.mxu0 %v2469
    %v2836 = vpop.f32.mrf.mxu0
    %v2837 = vadd.f32 %v2767, %v2836
    %2838 = vmatmul.f32.gmra.mxu0 %v2471
    %v2839 = vpop.f32.mrf.mxu0
    %v2840 = vadd.f32 %v2767, %v2839
    %2841 = vmatmul.f32.gmra.mxu0 %v2473
    %v2842 = vpop.f32.mrf.mxu0
    %v2843 = vadd.f32 %v2767, %v2842
    %2844 = vmatmul.f32.gmra.mxu0 %v2475
    %v2845 = vpop.f32.mrf.mxu0
    %v2846 = vadd.f32 %v2767, %v2845
    %2847 = vmatmul.f32.gmra.mxu0 %v2477
    %v2848 = vpop.f32.mrf.mxu0
    %v2849 = vadd.f32 %v2767, %v2848
    %2850 = vmatmul.f32.gmra.mxu0 %v2479
    %v2851 = vpop.f32.mrf.mxu0
    %v2852 = vadd.f32 %v2767, %v2851
    %2853 = vmatmul.f32.gmra.mxu0 %v2481
    %v2854 = vpop.f32.mrf.mxu0
    %v2855 = vadd.f32 %v2767, %v2854
    %2856 = vmatmul.f32.gmra.mxu0 %v2483
    %v2857 = vpop.f32.mrf.mxu0
    %v2858 = vadd.f32 %v2767, %v2857
    %2859 = vmatmul.f32.gmra.mxu0 %v2485
    %v2860 = vpop.f32.mrf.mxu0
    %v2861 = vadd.f32 %v2767, %v2860
    %2862 = vmatmul.f32.gmra.mxu0 %v2487
    %v2863 = vpop.f32.mrf.mxu0
    %v2864 = vadd.f32 %v2767, %v2863
    %2865 = vmatmul.f32.gmra.mxu0 %v2489
    %v2866 = vpop.f32.mrf.mxu0
    %v2867 = vadd.f32 %v2767, %v2866
    %2868 = vmatmul.f32.gmra.mxu0 %v2491
    %v2869 = vpop.f32.mrf.mxu0
    %v2870 = vadd.f32 %v2767, %v2869
    %2871 = vmatmul.f32.gmra.mxu0 %v2493
    %v2872 = vpop.f32.mrf.mxu0
    %v2873 = vadd.f32 %v2767, %v2872
    %2874 = vmatmul.f32.gmra.mxu0 %v2495
    %v2875 = vpop.f32.mrf.mxu0
    %v2876 = vadd.f32 %v2767, %v2875
    %2877 = vmatmul.f32.gmra.mxu0 %v2497
    %v2878 = vpop.f32.mrf.mxu0
    %v2879 = vadd.f32 %v2767, %v2878
    %2880 = vmatmul.f32.gmra.mxu0 %v2499
    %v2881 = vpop.f32.mrf.mxu0
    %v2882 = vadd.f32 %v2767, %v2881
    %2883 = vmatmul.f32.gmra.mxu0 %v2501
    %v2884 = vpop.f32.mrf.mxu0
    %v2885 = vadd.f32 %v2767, %v2884
    %2886 = vmatmul.f32.gmra.mxu0 %v2503
    %v2887 = vpop.f32.mrf.mxu0
    %v2888 = vadd.f32 %v2767, %v2887
    %2889 = vmatmul.f32.gmra.mxu0 %v2505
    %v2890 = vpop.f32.mrf.mxu0
    %v2891 = vadd.f32 %v2767, %v2890
    %2892 = vmatmul.f32.gmra.mxu0 %v2507
    %v2893 = vpop.f32.mrf.mxu0
    %v2894 = vadd.f32 %v2767, %v2893
    %2895 = vdwg.mxu0
    %2896 = vmatpush.msra.mxu0 %v2757
    %2897 = vmatpush.msra.mxu0 %v2749
    %2898 = vmatpush.msra.mxu0 %v2741
    %2899 = vmatpush.msra.mxu0 %v2733
    %2900 = vmatpush.msra.mxu0 %v2725
    %2901 = vmatpush.msra.mxu0 %v2717
    %2902 = vmatpush.msra.mxu0 %v2709
    %2903 = vmatpush.msra.mxu0 %v2701
    %2904 = vmatpush.msra.mxu0 %v2693
    %2905 = vmatpush.msra.mxu0 %v2685
    %2906 = vmatpush.msra.mxu0 %v2677
    %2907 = vmatpush.msra.mxu0 %v2669
    %2908 = vmatpush.msra.mxu0 %v2661
    %2909 = vmatpush.msra.mxu0 %v2653
    %2910 = vmatpush.msra.mxu0 %v2645
    %2911 = vmatpush.msra.mxu0 %v2637
    %2912 = vmatmul.f32.gmra.mxu0 %v2446
    %v2913 = vpop.f32.mrf.mxu0
    %v2914 = vadd.f32 %v2801, %v2913
    %2915 = vmatmul.f32.gmra.mxu0 %v2448
    %v2916 = vpop.f32.mrf.mxu0
    %v2917 = vadd.f32 %v2804, %v2916
    %2918 = vmatmul.f32.gmra.mxu0 %v2450
    %v2919 = vpop.f32.mrf.mxu0
    %v2920 = vadd.f32 %v2807, %v2919
    %2921 = vmatmul.f32.gmra.mxu0 %v2452
    %v2922 = vpop.f32.mrf.mxu0
    %v2923 = vadd.f32 %v2810, %v2922
    %2924 = vmatmul.f32.gmra.mxu0 %v2454
    %v2925 = vpop.f32.mrf.mxu0
    %v2926 = vadd.f32 %v2813, %v2925
    %2927 = vmatmul.f32.gmra.mxu0 %v2456
    %v2928 = vpop.f32.mrf.mxu0
    %v2929 = vadd.f32 %v2816, %v2928
    %2930 = vmatmul.f32.gmra.mxu0 %v2458
    %v2931 = vpop.f32.mrf.mxu0
    %v2932 = vadd.f32 %v2819, %v2931
    %2933 = vmatmul.f32.gmra.mxu0 %v2460
    %v2934 = vpop.f32.mrf.mxu0
    %v2935 = vadd.f32 %v2822, %v2934
    %2936 = vmatmul.f32.gmra.mxu0 %v2462
    %v2937 = vpop.f32.mrf.mxu0
    %v2938 = vadd.f32 %v2825, %v2937
    %2939 = vmatmul.f32.gmra.mxu0 %v2464
    %v2940 = vpop.f32.mrf.mxu0
    %v2941 = vadd.f32 %v2828, %v2940
    %2942 = vmatmul.f32.gmra.mxu0 %v2466
    %v2943 = vpop.f32.mrf.mxu0
    %v2944 = vadd.f32 %v2831, %v2943
    %2945 = vmatmul.f32.gmra.mxu0 %v2468
    %v2946 = vpop.f32.mrf.mxu0
    %v2947 = vadd.f32 %v2834, %v2946
    %2948 = vmatmul.f32.gmra.mxu0 %v2470
    %v2949 = vpop.f32.mrf.mxu0
    %v2950 = vadd.f32 %v2837, %v2949
    %2951 = vmatmul.f32.gmra.mxu0 %v2472
    %v2952 = vpop.f32.mrf.mxu0
    %v2953 = vadd.f32 %v2840, %v2952
    %2954 = vmatmul.f32.gmra.mxu0 %v2474
    %v2955 = vpop.f32.mrf.mxu0
    %v2956 = vadd.f32 %v2843, %v2955
    %2957 = vmatmul.f32.gmra.mxu0 %v2476
    %v2958 = vpop.f32.mrf.mxu0
    %v2959 = vadd.f32 %v2846, %v2958
    %2960 = vmatmul.f32.gmra.mxu0 %v2478
    %v2961 = vpop.f32.mrf.mxu0
    %v2962 = vadd.f32 %v2849, %v2961
    %2963 = vmatmul.f32.gmra.mxu0 %v2480
    %v2964 = vpop.f32.mrf.mxu0
    %v2965 = vadd.f32 %v2852, %v2964
    %2966 = vmatmul.f32.gmra.mxu0 %v2482
    %v2967 = vpop.f32.mrf.mxu0
    %v2968 = vadd.f32 %v2855, %v2967
    %2969 = vmatmul.f32.gmra.mxu0 %v2484
    %v2970 = vpop.f32.mrf.mxu0
    %v2971 = vadd.f32 %v2858, %v2970
    %2972 = vmatmul.f32.gmra.mxu0 %v2486
    %v2973 = vpop.f32.mrf.mxu0
    %v2974 = vadd.f32 %v2861, %v2973
    %2975 = vmatmul.f32.gmra.mxu0 %v2488
    %v2976 = vpop.f32.mrf.mxu0
    %v2977 = vadd.f32 %v2864, %v2976
    %2978 = vmatmul.f32.gmra.mxu0 %v2490
    %v2979 = vpop.f32.mrf.mxu0
    %v2980 = vadd.f32 %v2867, %v2979
    %2981 = vmatmul.f32.gmra.mxu0 %v2492
    %v2982 = vpop.f32.mrf.mxu0
    %v2983 = vadd.f32 %v2870, %v2982
    %2984 = vmatmul.f32.gmra.mxu0 %v2494
    %v2985 = vpop.f32.mrf.mxu0
    %v2986 = vadd.f32 %v2873, %v2985
    %2987 = vmatmul.f32.gmra.mxu0 %v2496
    %v2988 = vpop.f32.mrf.mxu0
    %v2989 = vadd.f32 %v2876, %v2988
    %2990 = vmatmul.f32.gmra.mxu0 %v2498
    %v2991 = vpop.f32.mrf.mxu0
    %v2992 = vadd.f32 %v2879, %v2991
    %2993 = vmatmul.f32.gmra.mxu0 %v2500
    %v2994 = vpop.f32.mrf.mxu0
    %v2995 = vadd.f32 %v2882, %v2994
    %2996 = vmatmul.f32.gmra.mxu0 %v2502
    %v2997 = vpop.f32.mrf.mxu0
    %v2998 = vadd.f32 %v2885, %v2997
    %2999 = vmatmul.f32.gmra.mxu0 %v2504
    %v3000 = vpop.f32.mrf.mxu0
    %v3001 = vadd.f32 %v2888, %v3000
    %3002 = vmatmul.f32.gmra.mxu0 %v2506
    %v3003 = vpop.f32.mrf.mxu0
    %v3004 = vadd.f32 %v2891, %v3003
    %3005 = vmatmul.f32.gmra.mxu0 %v2508
    %v3006 = vpop.f32.mrf.mxu0
    %v3007 = vadd.f32 %v2894, %v3006
    %3008 = vdwg.mxu0
    %3009 = vmatpush.msra.mxu0 %v2630
    %3010 = vmatpush.msra.mxu0 %v2622
    %3011 = vmatpush.msra.mxu0 %v2614
    %3012 = vmatpush.msra.mxu0 %v2606
    %3013 = vmatpush.msra.mxu0 %v2598
    %3014 = vmatpush.msra.mxu0 %v2590
    %3015 = vmatpush.msra.mxu0 %v2582
    %3016 = vmatpush.msra.mxu0 %v2574
    %3017 = vmatpush.msra.mxu0 %v2566
    %3018 = vmatpush.msra.mxu0 %v2558
    %3019 = vmatpush.msra.mxu0 %v2550
    %3020 = vmatpush.msra.mxu0 %v2542
    %3021 = vmatpush.msra.mxu0 %v2534
    %3022 = vmatpush.msra.mxu0 %v2526
    %3023 = vmatpush.msra.mxu0 %v2518
    %3024 = vmatpush.msra.mxu0 %v2510
    %3025 = vmatmul.f32.gmra.mxu0 %v2445
    %v3026 = vpop.f32.mrf.mxu0
    %v3027 = vadd.f32 %v2768, %v3026
    %3028 = vmatmul.f32.gmra.mxu0 %v2447
    %v3029 = vpop.f32.mrf.mxu0
    %v3030 = vadd.f32 %v2768, %v3029
    %3031 = vmatmul.f32.gmra.mxu0 %v2449
    %v3032 = vpop.f32.mrf.mxu0
    %v3033 = vadd.f32 %v2768, %v3032
    %3034 = vmatmul.f32.gmra.mxu0 %v2451
    %v3035 = vpop.f32.mrf.mxu0
    %v3036 = vadd.f32 %v2768, %v3035
    %3037 = vmatmul.f32.gmra.mxu0 %v2453
    %v3038 = vpop.f32.mrf.mxu0
    %v3039 = vadd.f32 %v2768, %v3038
    %3040 = vmatmul.f32.gmra.mxu0 %v2455
    %v3041 = vpop.f32.mrf.mxu0
    %v3042 = vadd.f32 %v2768, %v3041
    %3043 = vmatmul.f32.gmra.mxu0 %v2457
    %v3044 = vpop.f32.mrf.mxu0
    %v3045 = vadd.f32 %v2768, %v3044
    %3046 = vmatmul.f32.gmra.mxu0 %v2459
    %v3047 = vpop.f32.mrf.mxu0
    %v3048 = vadd.f32 %v2768, %v3047
    %3049 = vmatmul.f32.gmra.mxu0 %v2461
    %v3050 = vpop.f32.mrf.mxu0
    %v3051 = vadd.f32 %v2768, %v3050
    %3052 = vmatmul.f32.gmra.mxu0 %v2463
    %v3053 = vpop.f32.mrf.mxu0
    %v3054 = vadd.f32 %v2768, %v3053
    %3055 = vmatmul.f32.gmra.mxu0 %v2465
    %v3056 = vpop.f32.mrf.mxu0
    %v3057 = vadd.f32 %v2768, %v3056
    %3058 = vmatmul.f32.gmra.mxu0 %v2467
    %v3059 = vpop.f32.mrf.mxu0
    %v3060 = vadd.f32 %v2768, %v3059
    %3061 = vmatmul.f32.gmra.mxu0 %v2469
    %v3062 = vpop.f32.mrf.mxu0
    %v3063 = vadd.f32 %v2768, %v3062
    %3064 = vmatmul.f32.gmra.mxu0 %v2471
    %v3065 = vpop.f32.mrf.mxu0
    %v3066 = vadd.f32 %v2768, %v3065
    %3067 = vmatmul.f32.gmra.mxu0 %v2473
    %v3068 = vpop.f32.mrf.mxu0
    %v3069 = vadd.f32 %v2768, %v3068
    %3070 = vmatmul.f32.gmra.mxu0 %v2475
    %v3071 = vpop.f32.mrf.mxu0
    %v3072 = vadd.f32 %v2768, %v3071
    %3073 = vmatmul.f32.gmra.mxu0 %v2477
    %v3074 = vpop.f32.mrf.mxu0
    %v3075 = vadd.f32 %v2768, %v3074
    %3076 = vmatmul.f32.gmra.mxu0 %v2479
    %v3077 = vpop.f32.mrf.mxu0
    %v3078 = vadd.f32 %v2768, %v3077
    %3079 = vmatmul.f32.gmra.mxu0 %v2481
    %v3080 = vpop.f32.mrf.mxu0
    %v3081 = vadd.f32 %v2768, %v3080
    %3082 = vmatmul.f32.gmra.mxu0 %v2483
    %v3083 = vpop.f32.mrf.mxu0
    %v3084 = vadd.f32 %v2768, %v3083
    %3085 = vmatmul.f32.gmra.mxu0 %v2485
    %v3086 = vpop.f32.mrf.mxu0
    %v3087 = vadd.f32 %v2768, %v3086
    %3088 = vmatmul.f32.gmra.mxu0 %v2487
    %v3089 = vpop.f32.mrf.mxu0
    %v3090 = vadd.f32 %v2768, %v3089
    %3091 = vmatmul.f32.gmra.mxu0 %v2489
    %v3092 = vpop.f32.mrf.mxu0
    %v3093 = vadd.f32 %v2768, %v3092
    %3094 = vmatmul.f32.gmra.mxu0 %v2491
    %v3095 = vpop.f32.mrf.mxu0
    %v3096 = vadd.f32 %v2768, %v3095
    %3097 = vmatmul.f32.gmra.mxu0 %v2493
    %v3098 = vpop.f32.mrf.mxu0
    %v3099 = vadd.f32 %v2768, %v3098
    %3100 = vmatmul.f32.gmra.mxu0 %v2495
    %v3101 = vpop.f32.mrf.mxu0
    %v3102 = vadd.f32 %v2768, %v3101
    %3103 = vmatmul.f32.gmra.mxu0 %v2497
    %v3104 = vpop.f32.mrf.mxu0
    %v3105 = vadd.f32 %v2768, %v3104
    %3106 = vmatmul.f32.gmra.mxu0 %v2499
    %v3107 = vpop.f32.mrf.mxu0
    %v3108 = vadd.f32 %v2768, %v3107
    %3109 = vmatmul.f32.gmra.mxu0 %v2501
    %v3110 = vpop.f32.mrf.mxu0
    %v3111 = vadd.f32 %v2768, %v3110
    %3112 = vmatmul.f32.gmra.mxu0 %v2503
    %v3113 = vpop.f32.mrf.mxu0
    %v3114 = vadd.f32 %v2768, %v3113
    %3115 = vmatmul.f32.gmra.mxu0 %v2505
    %v3116 = vpop.f32.mrf.mxu0
    %v3117 = vadd.f32 %v2768, %v3116
    %3118 = vmatmul.f32.gmra.mxu0 %v2507
    %v3119 = vpop.f32.mrf.mxu0
    %v3120 = vadd.f32 %v2768, %v3119
    %3121 = vdwg.mxu0
    %3122 = vmatpush.msra.mxu0 %v2758
    %3123 = vmatpush.msra.mxu0 %v2750
    %3124 = vmatpush.msra.mxu0 %v2742
    %3125 = vmatpush.msra.mxu0 %v2734
    %3126 = vmatpush.msra.mxu0 %v2726
    %3127 = vmatpush.msra.mxu0 %v2718
    %3128 = vmatpush.msra.mxu0 %v2710
    %3129 = vmatpush.msra.mxu0 %v2702
    %3130 = vmatpush.msra.mxu0 %v2694
    %3131 = vmatpush.msra.mxu0 %v2686
    %3132 = vmatpush.msra.mxu0 %v2678
    %3133 = vmatpush.msra.mxu0 %v2670
    %3134 = vmatpush.msra.mxu0 %v2662
    %3135 = vmatpush.msra.mxu0 %v2654
    %3136 = vmatpush.msra.mxu0 %v2646
    %3137 = vmatpush.msra.mxu0 %v2638
    %3138 = vmatmul.f32.gmra.mxu0 %v2446
    %v3139 = vpop.f32.mrf.mxu0
    %v3140 = vadd.f32 %v3027, %v3139
    %3141 = vmatmul.f32.gmra.mxu0 %v2448
    %v3142 = vpop.f32.mrf.mxu0
    %v3143 = vadd.f32 %v3030, %v3142
    %3144 = vmatmul.f32.gmra.mxu0 %v2450
    %v3145 = vpop.f32.mrf.mxu0
    %v3146 = vadd.f32 %v3033, %v3145
    %3147 = vmatmul.f32.gmra.mxu0 %v2452
    %v3148 = vpop.f32.mrf.mxu0
    %v3149 = vadd.f32 %v3036, %v3148
    %3150 = vmatmul.f32.gmra.mxu0 %v2454
    %v3151 = vpop.f32.mrf.mxu0
    %v3152 = vadd.f32 %v3039, %v3151
    %3153 = vmatmul.f32.gmra.mxu0 %v2456
    %v3154 = vpop.f32.mrf.mxu0
    %v3155 = vadd.f32 %v3042, %v3154
    %3156 = vmatmul.f32.gmra.mxu0 %v2458
    %v3157 = vpop.f32.mrf.mxu0
    %v3158 = vadd.f32 %v3045, %v3157
    %3159 = vmatmul.f32.gmra.mxu0 %v2460
    %v3160 = vpop.f32.mrf.mxu0
    %v3161 = vadd.f32 %v3048, %v3160
    %3162 = vmatmul.f32.gmra.mxu0 %v2462
    %v3163 = vpop.f32.mrf.mxu0
    %v3164 = vadd.f32 %v3051, %v3163
    %3165 = vmatmul.f32.gmra.mxu0 %v2464
    %v3166 = vpop.f32.mrf.mxu0
    %v3167 = vadd.f32 %v3054, %v3166
    %3168 = vmatmul.f32.gmra.mxu0 %v2466
    %v3169 = vpop.f32.mrf.mxu0
    %v3170 = vadd.f32 %v3057, %v3169
    %3171 = vmatmul.f32.gmra.mxu0 %v2468
    %v3172 = vpop.f32.mrf.mxu0
    %v3173 = vadd.f32 %v3060, %v3172
    %3174 = vmatmul.f32.gmra.mxu0 %v2470
    %v3175 = vpop.f32.mrf.mxu0
    %v3176 = vadd.f32 %v3063, %v3175
    %3177 = vmatmul.f32.gmra.mxu0 %v2472
    %v3178 = vpop.f32.mrf.mxu0
    %v3179 = vadd.f32 %v3066, %v3178
    %3180 = vmatmul.f32.gmra.mxu0 %v2474
    %v3181 = vpop.f32.mrf.mxu0
    %v3182 = vadd.f32 %v3069, %v3181
    %3183 = vmatmul.f32.gmra.mxu0 %v2476
    %v3184 = vpop.f32.mrf.mxu0
    %v3185 = vadd.f32 %v3072, %v3184
    %3186 = vmatmul.f32.gmra.mxu0 %v2478
    %v3187 = vpop.f32.mrf.mxu0
    %v3188 = vadd.f32 %v3075, %v3187
    %3189 = vmatmul.f32.gmra.mxu0 %v2480
    %v3190 = vpop.f32.mrf.mxu0
    %v3191 = vadd.f32 %v3078, %v3190
    %3192 = vmatmul.f32.gmra.mxu0 %v2482
    %v3193 = vpop.f32.mrf.mxu0
    %v3194 = vadd.f32 %v3081, %v3193
    %3195 = vmatmul.f32.gmra.mxu0 %v2484
    %v3196 = vpop.f32.mrf.mxu0
    %v3197 = vadd.f32 %v3084, %v3196
    %3198 = vmatmul.f32.gmra.mxu0 %v2486
    %v3199 = vpop.f32.mrf.mxu0
    %v3200 = vadd.f32 %v3087, %v3199
    %3201 = vmatmul.f32.gmra.mxu0 %v2488
    %v3202 = vpop.f32.mrf.mxu0
    %v3203 = vadd.f32 %v3090, %v3202
    %3204 = vmatmul.f32.gmra.mxu0 %v2490
    %v3205 = vpop.f32.mrf.mxu0
    %v3206 = vadd.f32 %v3093, %v3205
    %3207 = vmatmul.f32.gmra.mxu0 %v2492
    %v3208 = vpop.f32.mrf.mxu0
    %v3209 = vadd.f32 %v3096, %v3208
    %3210 = vmatmul.f32.gmra.mxu0 %v2494
    %v3211 = vpop.f32.mrf.mxu0
    %v3212 = vadd.f32 %v3099, %v3211
    %3213 = vmatmul.f32.gmra.mxu0 %v2496
    %v3214 = vpop.f32.mrf.mxu0
    %v3215 = vadd.f32 %v3102, %v3214
    %3216 = vmatmul.f32.gmra.mxu0 %v2498
    %v3217 = vpop.f32.mrf.mxu0
    %v3218 = vadd.f32 %v3105, %v3217
    %3219 = vmatmul.f32.gmra.mxu0 %v2500
    %v3220 = vpop.f32.mrf.mxu0
    %v3221 = vadd.f32 %v3108, %v3220
    %3222 = vmatmul.f32.gmra.mxu0 %v2502
    %v3223 = vpop.f32.mrf.mxu0
    %v3224 = vadd.f32 %v3111, %v3223
    %3225 = vmatmul.f32.gmra.mxu0 %v2504
    %v3226 = vpop.f32.mrf.mxu0
    %v3227 = vadd.f32 %v3114, %v3226
    %3228 = vmatmul.f32.gmra.mxu0 %v2506
    %v3229 = vpop.f32.mrf.mxu0
    %v3230 = vadd.f32 %v3117, %v3229
    %3231 = vmatmul.f32.gmra.mxu0 %v2508
    %v3232 = vpop.f32.mrf.mxu0
    %v3233 = vadd.f32 %v3120, %v3232
    %3234 = vdwg.mxu0
    %3235 = vmatpush.msra.mxu0 %v2631
    %3236 = vmatpush.msra.mxu0 %v2623
    %3237 = vmatpush.msra.mxu0 %v2615
    %3238 = vmatpush.msra.mxu0 %v2607
    %3239 = vmatpush.msra.mxu0 %v2599
    %3240 = vmatpush.msra.mxu0 %v2591
    %3241 = vmatpush.msra.mxu0 %v2583
    %3242 = vmatpush.msra.mxu0 %v2575
    %3243 = vmatpush.msra.mxu0 %v2567
    %3244 = vmatpush.msra.mxu0 %v2559
    %3245 = vmatpush.msra.mxu0 %v2551
    %3246 = vmatpush.msra.mxu0 %v2543
    %3247 = vmatpush.msra.mxu0 %v2535
    %3248 = vmatpush.msra.mxu0 %v2527
    %3249 = vmatpush.msra.mxu0 %v2519
    %3250 = vmatpush.msra.mxu0 %v2511
    %3251 = vmatmul.f32.gmra.mxu0 %v2445
    %v3252 = vpop.f32.mrf.mxu0
    %v3253 = vadd.f32 %v2769, %v3252
    %3254 = vmatmul.f32.gmra.mxu0 %v2447
    %v3255 = vpop.f32.mrf.mxu0
    %v3256 = vadd.f32 %v2769, %v3255
    %3257 = vmatmul.f32.gmra.mxu0 %v2449
    %v3258 = vpop.f32.mrf.mxu0
    %v3259 = vadd.f32 %v2769, %v3258
    %3260 = vmatmul.f32.gmra.mxu0 %v2451
    %v3261 = vpop.f32.mrf.mxu0
    %v3262 = vadd.f32 %v2769, %v3261
    %3263 = vmatmul.f32.gmra.mxu0 %v2453
    %v3264 = vpop.f32.mrf.mxu0
    %v3265 = vadd.f32 %v2769, %v3264
    %3266 = vmatmul.f32.gmra.mxu0 %v2455
    %v3267 = vpop.f32.mrf.mxu0
    %v3268 = vadd.f32 %v2769, %v3267
    %3269 = vmatmul.f32.gmra.mxu0 %v2457
    %v3270 = vpop.f32.mrf.mxu0
    %v3271 = vadd.f32 %v2769, %v3270
    %3272 = vmatmul.f32.gmra.mxu0 %v2459
    %v3273 = vpop.f32.mrf.mxu0
    %v3274 = vadd.f32 %v2769, %v3273
    %3275 = vmatmul.f32.gmra.mxu0 %v2461
    %v3276 = vpop.f32.mrf.mxu0
    %v3277 = vadd.f32 %v2769, %v3276
    %3278 = vmatmul.f32.gmra.mxu0 %v2463
    %v3279 = vpop.f32.mrf.mxu0
    %v3280 = vadd.f32 %v2769, %v3279
    %3281 = vmatmul.f32.gmra.mxu0 %v2465
    %v3282 = vpop.f32.mrf.mxu0
    %v3283 = vadd.f32 %v2769, %v3282
    %3284 = vmatmul.f32.gmra.mxu0 %v2467
    %v3285 = vpop.f32.mrf.mxu0
    %v3286 = vadd.f32 %v2769, %v3285
    %3287 = vmatmul.f32.gmra.mxu0 %v2469
    %v3288 = vpop.f32.mrf.mxu0
    %v3289 = vadd.f32 %v2769, %v3288
    %3290 = vmatmul.f32.gmra.mxu0 %v2471
    %v3291 = vpop.f32.mrf.mxu0
    %v3292 = vadd.f32 %v2769, %v3291
    %3293 = vmatmul.f32.gmra.mxu0 %v2473
    %v3294 = vpop.f32.mrf.mxu0
    %v3295 = vadd.f32 %v2769, %v3294
    %3296 = vmatmul.f32.gmra.mxu0 %v2475
    %v3297 = vpop.f32.mrf.mxu0
    %v3298 = vadd.f32 %v2769, %v3297
    %3299 = vmatmul.f32.gmra.mxu0 %v2477
    %v3300 = vpop.f32.mrf.mxu0
    %v3301 = vadd.f32 %v2769, %v3300
    %3302 = vmatmul.f32.gmra.mxu0 %v2479
    %v3303 = vpop.f32.mrf.mxu0
    %v3304 = vadd.f32 %v2769, %v3303
    %3305 = vmatmul.f32.gmra.mxu0 %v2481
    %v3306 = vpop.f32.mrf.mxu0
    %v3307 = vadd.f32 %v2769, %v3306
    %3308 = vmatmul.f32.gmra.mxu0 %v2483
    %v3309 = vpop.f32.mrf.mxu0
    %v3310 = vadd.f32 %v2769, %v3309
    %3311 = vmatmul.f32.gmra.mxu0 %v2485
    %v3312 = vpop.f32.mrf.mxu0
    %v3313 = vadd.f32 %v2769, %v3312
    %3314 = vmatmul.f32.gmra.mxu0 %v2487
    %v3315 = vpop.f32.mrf.mxu0
    %v3316 = vadd.f32 %v2769, %v3315
    %3317 = vmatmul.f32.gmra.mxu0 %v2489
    %v3318 = vpop.f32.mrf.mxu0
    %v3319 = vadd.f32 %v2769, %v3318
    %3320 = vmatmul.f32.gmra.mxu0 %v2491
    %v3321 = vpop.f32.mrf.mxu0
    %v3322 = vadd.f32 %v2769, %v3321
    %3323 = vmatmul.f32.gmra.mxu0 %v2493
    %v3324 = vpop.f32.mrf.mxu0
    %v3325 = vadd.f32 %v2769, %v3324
    %3326 = vmatmul.f32.gmra.mxu0 %v2495
    %v3327 = vpop.f32.mrf.mxu0
    %v3328 = vadd.f32 %v2769, %v3327
    %3329 = vmatmul.f32.gmra.mxu0 %v2497
    %v3330 = vpop.f32.mrf.mxu0
    %v3331 = vadd.f32 %v2769, %v3330
    %3332 = vmatmul.f32.gmra.mxu0 %v2499
    %v3333 = vpop.f32.mrf.mxu0
    %v3334 = vadd.f32 %v2769, %v3333
    %3335 = vmatmul.f32.gmra.mxu0 %v2501
    %v3336 = vpop.f32.mrf.mxu0
    %v3337 = vadd.f32 %v2769, %v3336
    %3338 = vmatmul.f32.gmra.mxu0 %v2503
    %v3339 = vpop.f32.mrf.mxu0
    %v3340 = vadd.f32 %v2769, %v3339
    %3341 = vmatmul.f32.gmra.mxu0 %v2505
    %v3342 = vpop.f32.mrf.mxu0
    %v3343 = vadd.f32 %v2769, %v3342
    %3344 = vmatmul.f32.gmra.mxu0 %v2507
    %v3345 = vpop.f32.mrf.mxu0
    %v3346 = vadd.f32 %v2769, %v3345
    %3347 = vdwg.mxu0
    %3348 = vmatpush.msra.mxu0 %v2759
    %3349 = vmatpush.msra.mxu0 %v2751
    %3350 = vmatpush.msra.mxu0 %v2743
    %3351 = vmatpush.msra.mxu0 %v2735
    %3352 = vmatpush.msra.mxu0 %v2727
    %3353 = vmatpush.msra.mxu0 %v2719
    %3354 = vmatpush.msra.mxu0 %v2711
    %3355 = vmatpush.msra.mxu0 %v2703
    %3356 = vmatpush.msra.mxu0 %v2695
    %3357 = vmatpush.msra.mxu0 %v2687
    %3358 = vmatpush.msra.mxu0 %v2679
    %3359 = vmatpush.msra.mxu0 %v2671
    %3360 = vmatpush.msra.mxu0 %v2663
    %3361 = vmatpush.msra.mxu0 %v2655
    %3362 = vmatpush.msra.mxu0 %v2647
    %3363 = vmatpush.msra.mxu0 %v2639
    %3364 = vmatmul.f32.gmra.mxu0 %v2446
    %v3365 = vpop.f32.mrf.mxu0
    %v3366 = vadd.f32 %v3253, %v3365
    %3367 = vmatmul.f32.gmra.mxu0 %v2448
    %v3368 = vpop.f32.mrf.mxu0
    %v3369 = vadd.f32 %v3256, %v3368
    %3370 = vmatmul.f32.gmra.mxu0 %v2450
    %v3371 = vpop.f32.mrf.mxu0
    %v3372 = vadd.f32 %v3259, %v3371
    %3373 = vmatmul.f32.gmra.mxu0 %v2452
    %v3374 = vpop.f32.mrf.mxu0
    %v3375 = vadd.f32 %v3262, %v3374
    %3376 = vmatmul.f32.gmra.mxu0 %v2454
    %v3377 = vpop.f32.mrf.mxu0
    %v3378 = vadd.f32 %v3265, %v3377
    %3379 = vmatmul.f32.gmra.mxu0 %v2456
    %v3380 = vpop.f32.mrf.mxu0
    %v3381 = vadd.f32 %v3268, %v3380
    %3382 = vmatmul.f32.gmra.mxu0 %v2458
    %v3383 = vpop.f32.mrf.mxu0
    %v3384 = vadd.f32 %v3271, %v3383
    %3385 = vmatmul.f32.gmra.mxu0 %v2460
    %v3386 = vpop.f32.mrf.mxu0
    %v3387 = vadd.f32 %v3274, %v3386
    %3388 = vmatmul.f32.gmra.mxu0 %v2462
    %v3389 = vpop.f32.mrf.mxu0
    %v3390 = vadd.f32 %v3277, %v3389
    %3391 = vmatmul.f32.gmra.mxu0 %v2464
    %v3392 = vpop.f32.mrf.mxu0
    %v3393 = vadd.f32 %v3280, %v3392
    %3394 = vmatmul.f32.gmra.mxu0 %v2466
    %v3395 = vpop.f32.mrf.mxu0
    %v3396 = vadd.f32 %v3283, %v3395
    %3397 = vmatmul.f32.gmra.mxu0 %v2468
    %v3398 = vpop.f32.mrf.mxu0
    %v3399 = vadd.f32 %v3286, %v3398
    %3400 = vmatmul.f32.gmra.mxu0 %v2470
    %v3401 = vpop.f32.mrf.mxu0
    %v3402 = vadd.f32 %v3289, %v3401
    %3403 = vmatmul.f32.gmra.mxu0 %v2472
    %v3404 = vpop.f32.mrf.mxu0
    %v3405 = vadd.f32 %v3292, %v3404
    %3406 = vmatmul.f32.gmra.mxu0 %v2474
    %v3407 = vpop.f32.mrf.mxu0
    %v3408 = vadd.f32 %v3295, %v3407
    %3409 = vmatmul.f32.gmra.mxu0 %v2476
    %v3410 = vpop.f32.mrf.mxu0
    %v3411 = vadd.f32 %v3298, %v3410
    %3412 = vmatmul.f32.gmra.mxu0 %v2478
    %v3413 = vpop.f32.mrf.mxu0
    %v3414 = vadd.f32 %v3301, %v3413
    %3415 = vmatmul.f32.gmra.mxu0 %v2480
    %v3416 = vpop.f32.mrf.mxu0
    %v3417 = vadd.f32 %v3304, %v3416
    %3418 = vmatmul.f32.gmra.mxu0 %v2482
    %v3419 = vpop.f32.mrf.mxu0
    %v3420 = vadd.f32 %v3307, %v3419
    %3421 = vmatmul.f32.gmra.mxu0 %v2484
    %v3422 = vpop.f32.mrf.mxu0
    %v3423 = vadd.f32 %v3310, %v3422
    %3424 = vmatmul.f32.gmra.mxu0 %v2486
    %v3425 = vpop.f32.mrf.mxu0
    %v3426 = vadd.f32 %v3313, %v3425
    %3427 = vmatmul.f32.gmra.mxu0 %v2488
    %v3428 = vpop.f32.mrf.mxu0
    %v3429 = vadd.f32 %v3316, %v3428
    %3430 = vmatmul.f32.gmra.mxu0 %v2490
    %v3431 = vpop.f32.mrf.mxu0
    %v3432 = vadd.f32 %v3319, %v3431
    %3433 = vmatmul.f32.gmra.mxu0 %v2492
    %v3434 = vpop.f32.mrf.mxu0
    %v3435 = vadd.f32 %v3322, %v3434
    %3436 = vmatmul.f32.gmra.mxu0 %v2494
    %v3437 = vpop.f32.mrf.mxu0
    %v3438 = vadd.f32 %v3325, %v3437
    %3439 = vmatmul.f32.gmra.mxu0 %v2496
    %v3440 = vpop.f32.mrf.mxu0
    %v3441 = vadd.f32 %v3328, %v3440
    %3442 = vmatmul.f32.gmra.mxu0 %v2498
    %v3443 = vpop.f32.mrf.mxu0
    %v3444 = vadd.f32 %v3331, %v3443
    %3445 = vmatmul.f32.gmra.mxu0 %v2500
    %v3446 = vpop.f32.mrf.mxu0
    %v3447 = vadd.f32 %v3334, %v3446
    %3448 = vmatmul.f32.gmra.mxu0 %v2502
    %v3449 = vpop.f32.mrf.mxu0
    %v3450 = vadd.f32 %v3337, %v3449
    %3451 = vmatmul.f32.gmra.mxu0 %v2504
    %v3452 = vpop.f32.mrf.mxu0
    %v3453 = vadd.f32 %v3340, %v3452
    %3454 = vmatmul.f32.gmra.mxu0 %v2506
    %v3455 = vpop.f32.mrf.mxu0
    %v3456 = vadd.f32 %v3343, %v3455
    %3457 = vmatmul.f32.gmra.mxu0 %v2508
    %v3458 = vpop.f32.mrf.mxu0
    %v3459 = vadd.f32 %v3346, %v3458
    %3460 = vdwg.mxu0
    %3461 = vmatpush.msra.mxu0 %v2632
    %3462 = vmatpush.msra.mxu0 %v2624
    %3463 = vmatpush.msra.mxu0 %v2616
    %3464 = vmatpush.msra.mxu0 %v2608
    %3465 = vmatpush.msra.mxu0 %v2600
    %3466 = vmatpush.msra.mxu0 %v2592
    %3467 = vmatpush.msra.mxu0 %v2584
    %3468 = vmatpush.msra.mxu0 %v2576
    %3469 = vmatpush.msra.mxu0 %v2568
    %3470 = vmatpush.msra.mxu0 %v2560
    %3471 = vmatpush.msra.mxu0 %v2552
    %3472 = vmatpush.msra.mxu0 %v2544
    %3473 = vmatpush.msra.mxu0 %v2536
    %3474 = vmatpush.msra.mxu0 %v2528
    %3475 = vmatpush.msra.mxu0 %v2520
    %3476 = vmatpush.msra.mxu0 %v2512
    %3477 = vmatmul.f32.gmra.mxu0 %v2445
    %v3478 = vpop.f32.mrf.mxu0
    %v3479 = vadd.f32 %v2770, %v3478
    %3480 = vmatmul.f32.gmra.mxu0 %v2447
    %v3481 = vpop.f32.mrf.mxu0
    %v3482 = vadd.f32 %v2770, %v3481
    %3483 = vmatmul.f32.gmra.mxu0 %v2449
    %v3484 = vpop.f32.mrf.mxu0
    %v3485 = vadd.f32 %v2770, %v3484
    %3486 = vmatmul.f32.gmra.mxu0 %v2451
    %v3487 = vpop.f32.mrf.mxu0
    %v3488 = vadd.f32 %v2770, %v3487
    %3489 = vmatmul.f32.gmra.mxu0 %v2453
    %v3490 = vpop.f32.mrf.mxu0
    %v3491 = vadd.f32 %v2770, %v3490
    %3492 = vmatmul.f32.gmra.mxu0 %v2455
    %v3493 = vpop.f32.mrf.mxu0
    %v3494 = vadd.f32 %v2770, %v3493
    %3495 = vmatmul.f32.gmra.mxu0 %v2457
    %v3496 = vpop.f32.mrf.mxu0
    %v3497 = vadd.f32 %v2770, %v3496
    %3498 = vmatmul.f32.gmra.mxu0 %v2459
    %v3499 = vpop.f32.mrf.mxu0
    %v3500 = vadd.f32 %v2770, %v3499
    %3501 = vmatmul.f32.gmra.mxu0 %v2461
    %v3502 = vpop.f32.mrf.mxu0
    %v3503 = vadd.f32 %v2770, %v3502
    %3504 = vmatmul.f32.gmra.mxu0 %v2463
    %v3505 = vpop.f32.mrf.mxu0
    %v3506 = vadd.f32 %v2770, %v3505
    %3507 = vmatmul.f32.gmra.mxu0 %v2465
    %v3508 = vpop.f32.mrf.mxu0
    %v3509 = vadd.f32 %v2770, %v3508
    %3510 = vmatmul.f32.gmra.mxu0 %v2467
    %v3511 = vpop.f32.mrf.mxu0
    %v3512 = vadd.f32 %v2770, %v3511
    %3513 = vmatmul.f32.gmra.mxu0 %v2469
    %v3514 = vpop.f32.mrf.mxu0
    %v3515 = vadd.f32 %v2770, %v3514
    %3516 = vmatmul.f32.gmra.mxu0 %v2471
    %v3517 = vpop.f32.mrf.mxu0
    %v3518 = vadd.f32 %v2770, %v3517
    %3519 = vmatmul.f32.gmra.mxu0 %v2473
    %v3520 = vpop.f32.mrf.mxu0
    %v3521 = vadd.f32 %v2770, %v3520
    %3522 = vmatmul.f32.gmra.mxu0 %v2475
    %v3523 = vpop.f32.mrf.mxu0
    %v3524 = vadd.f32 %v2770, %v3523
    %3525 = vmatmul.f32.gmra.mxu0 %v2477
    %v3526 = vpop.f32.mrf.mxu0
    %v3527 = vadd.f32 %v2770, %v3526
    %3528 = vmatmul.f32.gmra.mxu0 %v2479
    %v3529 = vpop.f32.mrf.mxu0
    %v3530 = vadd.f32 %v2770, %v3529
    %3531 = vmatmul.f32.gmra.mxu0 %v2481
    %v3532 = vpop.f32.mrf.mxu0
    %v3533 = vadd.f32 %v2770, %v3532
    %3534 = vmatmul.f32.gmra.mxu0 %v2483
    %v3535 = vpop.f32.mrf.mxu0
    %v3536 = vadd.f32 %v2770, %v3535
    %3537 = vmatmul.f32.gmra.mxu0 %v2485
    %v3538 = vpop.f32.mrf.mxu0
    %v3539 = vadd.f32 %v2770, %v3538
    %3540 = vmatmul.f32.gmra.mxu0 %v2487
    %v3541 = vpop.f32.mrf.mxu0
    %v3542 = vadd.f32 %v2770, %v3541
    %3543 = vmatmul.f32.gmra.mxu0 %v2489
    %v3544 = vpop.f32.mrf.mxu0
    %v3545 = vadd.f32 %v2770, %v3544
    %3546 = vmatmul.f32.gmra.mxu0 %v2491
    %v3547 = vpop.f32.mrf.mxu0
    %v3548 = vadd.f32 %v2770, %v3547
    %3549 = vmatmul.f32.gmra.mxu0 %v2493
    %v3550 = vpop.f32.mrf.mxu0
    %v3551 = vadd.f32 %v2770, %v3550
    %3552 = vmatmul.f32.gmra.mxu0 %v2495
    %v3553 = vpop.f32.mrf.mxu0
    %v3554 = vadd.f32 %v2770, %v3553
    %3555 = vmatmul.f32.gmra.mxu0 %v2497
    %v3556 = vpop.f32.mrf.mxu0
    %v3557 = vadd.f32 %v2770, %v3556
    %3558 = vmatmul.f32.gmra.mxu0 %v2499
    %v3559 = vpop.f32.mrf.mxu0
    %v3560 = vadd.f32 %v2770, %v3559
    %3561 = vmatmul.f32.gmra.mxu0 %v2501
    %v3562 = vpop.f32.mrf.mxu0
    %v3563 = vadd.f32 %v2770, %v3562
    %3564 = vmatmul.f32.gmra.mxu0 %v2503
    %v3565 = vpop.f32.mrf.mxu0
    %v3566 = vadd.f32 %v2770, %v3565
    %3567 = vmatmul.f32.gmra.mxu0 %v2505
    %v3568 = vpop.f32.mrf.mxu0
    %v3569 = vadd.f32 %v2770, %v3568
    %3570 = vmatmul.f32.gmra.mxu0 %v2507
    %v3571 = vpop.f32.mrf.mxu0
    %v3572 = vadd.f32 %v2770, %v3571
    %3573 = vdwg.mxu0
    %3574 = vmatpush.msra.mxu0 %v2760
    %3575 = vmatpush.msra.mxu0 %v2752
    %3576 = vmatpush.msra.mxu0 %v2744
    %3577 = vmatpush.msra.mxu0 %v2736
    %3578 = vmatpush.msra.mxu0 %v2728
    %3579 = vmatpush.msra.mxu0 %v2720
    %3580 = vmatpush.msra.mxu0 %v2712
    %3581 = vmatpush.msra.mxu0 %v2704
    %3582 = vmatpush.msra.mxu0 %v2696
    %3583 = vmatpush.msra.mxu0 %v2688
    %3584 = vmatpush.msra.mxu0 %v2680
    %3585 = vmatpush.msra.mxu0 %v2672
    %3586 = vmatpush.msra.mxu0 %v2664
    %3587 = vmatpush.msra.mxu0 %v2656
    %3588 = vmatpush.msra.mxu0 %v2648
    %3589 = vmatpush.msra.mxu0 %v2640
    %3590 = vmatmul.f32.gmra.mxu0 %v2446
    %v3591 = vpop.f32.mrf.mxu0
    %v3592 = vadd.f32 %v3479, %v3591
    %3593 = vmatmul.f32.gmra.mxu0 %v2448
    %v3594 = vpop.f32.mrf.mxu0
    %v3595 = vadd.f32 %v3482, %v3594
    %3596 = vmatmul.f32.gmra.mxu0 %v2450
    %v3597 = vpop.f32.mrf.mxu0
    %v3598 = vadd.f32 %v3485, %v3597
    %3599 = vmatmul.f32.gmra.mxu0 %v2452
    %v3600 = vpop.f32.mrf.mxu0
    %v3601 = vadd.f32 %v3488, %v3600
    %3602 = vmatmul.f32.gmra.mxu0 %v2454
    %v3603 = vpop.f32.mrf.mxu0
    %v3604 = vadd.f32 %v3491, %v3603
    %3605 = vmatmul.f32.gmra.mxu0 %v2456
    %v3606 = vpop.f32.mrf.mxu0
    %v3607 = vadd.f32 %v3494, %v3606
    %3608 = vmatmul.f32.gmra.mxu0 %v2458
    %v3609 = vpop.f32.mrf.mxu0
    %v3610 = vadd.f32 %v3497, %v3609
    %3611 = vmatmul.f32.gmra.mxu0 %v2460
    %v3612 = vpop.f32.mrf.mxu0
    %v3613 = vadd.f32 %v3500, %v3612
    %3614 = vmatmul.f32.gmra.mxu0 %v2462
    %v3615 = vpop.f32.mrf.mxu0
    %v3616 = vadd.f32 %v3503, %v3615
    %3617 = vmatmul.f32.gmra.mxu0 %v2464
    %v3618 = vpop.f32.mrf.mxu0
    %v3619 = vadd.f32 %v3506, %v3618
    %3620 = vmatmul.f32.gmra.mxu0 %v2466
    %v3621 = vpop.f32.mrf.mxu0
    %v3622 = vadd.f32 %v3509, %v3621
    %3623 = vmatmul.f32.gmra.mxu0 %v2468
    %v3624 = vpop.f32.mrf.mxu0
    %v3625 = vadd.f32 %v3512, %v3624
    %3626 = vmatmul.f32.gmra.mxu0 %v2470
    %v3627 = vpop.f32.mrf.mxu0
    %v3628 = vadd.f32 %v3515, %v3627
    %3629 = vmatmul.f32.gmra.mxu0 %v2472
    %v3630 = vpop.f32.mrf.mxu0
    %v3631 = vadd.f32 %v3518, %v3630
    %3632 = vmatmul.f32.gmra.mxu0 %v2474
    %v3633 = vpop.f32.mrf.mxu0
    %v3634 = vadd.f32 %v3521, %v3633
    %3635 = vmatmul.f32.gmra.mxu0 %v2476
    %v3636 = vpop.f32.mrf.mxu0
    %v3637 = vadd.f32 %v3524, %v3636
    %3638 = vmatmul.f32.gmra.mxu0 %v2478
    %v3639 = vpop.f32.mrf.mxu0
    %v3640 = vadd.f32 %v3527, %v3639
    %3641 = vmatmul.f32.gmra.mxu0 %v2480
    %v3642 = vpop.f32.mrf.mxu0
    %v3643 = vadd.f32 %v3530, %v3642
    %3644 = vmatmul.f32.gmra.mxu0 %v2482
    %v3645 = vpop.f32.mrf.mxu0
    %v3646 = vadd.f32 %v3533, %v3645
    %3647 = vmatmul.f32.gmra.mxu0 %v2484
    %v3648 = vpop.f32.mrf.mxu0
    %v3649 = vadd.f32 %v3536, %v3648
    %3650 = vmatmul.f32.gmra.mxu0 %v2486
    %v3651 = vpop.f32.mrf.mxu0
    %v3652 = vadd.f32 %v3539, %v3651
    %3653 = vmatmul.f32.gmra.mxu0 %v2488
    %v3654 = vpop.f32.mrf.mxu0
    %v3655 = vadd.f32 %v3542, %v3654
    %3656 = vmatmul.f32.gmra.mxu0 %v2490
    %v3657 = vpop.f32.mrf.mxu0
    %v3658 = vadd.f32 %v3545, %v3657
    %3659 = vmatmul.f32.gmra.mxu0 %v2492
    %v3660 = vpop.f32.mrf.mxu0
    %v3661 = vadd.f32 %v3548, %v3660
    %3662 = vmatmul.f32.gmra.mxu0 %v2494
    %v3663 = vpop.f32.mrf.mxu0
    %v3664 = vadd.f32 %v3551, %v3663
    %3665 = vmatmul.f32.gmra.mxu0 %v2496
    %v3666 = vpop.f32.mrf.mxu0
    %v3667 = vadd.f32 %v3554, %v3666
    %3668 = vmatmul.f32.gmra.mxu0 %v2498
    %v3669 = vpop.f32.mrf.mxu0
    %v3670 = vadd.f32 %v3557, %v3669
    %3671 = vmatmul.f32.gmra.mxu0 %v2500
    %v3672 = vpop.f32.mrf.mxu0
    %v3673 = vadd.f32 %v3560, %v3672
    %3674 = vmatmul.f32.gmra.mxu0 %v2502
    %v3675 = vpop.f32.mrf.mxu0
    %v3676 = vadd.f32 %v3563, %v3675
    %3677 = vmatmul.f32.gmra.mxu0 %v2504
    %v3678 = vpop.f32.mrf.mxu0
    %v3679 = vadd.f32 %v3566, %v3678
    %3680 = vmatmul.f32.gmra.mxu0 %v2506
    %v3681 = vpop.f32.mrf.mxu0
    %v3682 = vadd.f32 %v3569, %v3681
    %3683 = vmatmul.f32.gmra.mxu0 %v2508
    %v3684 = vpop.f32.mrf.mxu0
    %v3685 = vadd.f32 %v3572, %v3684
    %3686 = vdwg.mxu0
    %3687 = vmatpush.msra.mxu0 %v2633
    %3688 = vmatpush.msra.mxu0 %v2625
    %3689 = vmatpush.msra.mxu0 %v2617
    %3690 = vmatpush.msra.mxu0 %v2609
    %3691 = vmatpush.msra.mxu0 %v2601
    %3692 = vmatpush.msra.mxu0 %v2593
    %3693 = vmatpush.msra.mxu0 %v2585
    %3694 = vmatpush.msra.mxu0 %v2577
    %3695 = vmatpush.msra.mxu0 %v2569
    %3696 = vmatpush.msra.mxu0 %v2561
    %3697 = vmatpush.msra.mxu0 %v2553
    %3698 = vmatpush.msra.mxu0 %v2545
    %3699 = vmatpush.msra.mxu0 %v2537
    %3700 = vmatpush.msra.mxu0 %v2529
    %3701 = vmatpush.msra.mxu0 %v2521
    %3702 = vmatpush.msra.mxu0 %v2513
    %3703 = vmatmul.f32.gmra.mxu0 %v2445
    %v3704 = vpop.f32.mrf.mxu0
    %v3705 = vadd.f32 %v2771, %v3704
    %3706 = vmatmul.f32.gmra.mxu0 %v2447
    %v3707 = vpop.f32.mrf.mxu0
    %v3708 = vadd.f32 %v2771, %v3707
    %3709 = vmatmul.f32.gmra.mxu0 %v2449
    %v3710 = vpop.f32.mrf.mxu0
    %v3711 = vadd.f32 %v2771, %v3710
    %3712 = vmatmul.f32.gmra.mxu0 %v2451
    %v3713 = vpop.f32.mrf.mxu0
    %v3714 = vadd.f32 %v2771, %v3713
    %3715 = vmatmul.f32.gmra.mxu0 %v2453
    %v3716 = vpop.f32.mrf.mxu0
    %v3717 = vadd.f32 %v2771, %v3716
    %3718 = vmatmul.f32.gmra.mxu0 %v2455
    %v3719 = vpop.f32.mrf.mxu0
    %v3720 = vadd.f32 %v2771, %v3719
    %3721 = vmatmul.f32.gmra.mxu0 %v2457
    %v3722 = vpop.f32.mrf.mxu0
    %v3723 = vadd.f32 %v2771, %v3722
    %3724 = vmatmul.f32.gmra.mxu0 %v2459
    %v3725 = vpop.f32.mrf.mxu0
    %v3726 = vadd.f32 %v2771, %v3725
    %3727 = vmatmul.f32.gmra.mxu0 %v2461
    %v3728 = vpop.f32.mrf.mxu0
    %v3729 = vadd.f32 %v2771, %v3728
    %3730 = vmatmul.f32.gmra.mxu0 %v2463
    %v3731 = vpop.f32.mrf.mxu0
    %v3732 = vadd.f32 %v2771, %v3731
    %3733 = vmatmul.f32.gmra.mxu0 %v2465
    %v3734 = vpop.f32.mrf.mxu0
    %v3735 = vadd.f32 %v2771, %v3734
    %3736 = vmatmul.f32.gmra.mxu0 %v2467
    %v3737 = vpop.f32.mrf.mxu0
    %v3738 = vadd.f32 %v2771, %v3737
    %3739 = vmatmul.f32.gmra.mxu0 %v2469
    %v3740 = vpop.f32.mrf.mxu0
    %v3741 = vadd.f32 %v2771, %v3740
    %3742 = vmatmul.f32.gmra.mxu0 %v2471
    %v3743 = vpop.f32.mrf.mxu0
    %v3744 = vadd.f32 %v2771, %v3743
    %3745 = vmatmul.f32.gmra.mxu0 %v2473
    %v3746 = vpop.f32.mrf.mxu0
    %v3747 = vadd.f32 %v2771, %v3746
    %3748 = vmatmul.f32.gmra.mxu0 %v2475
    %v3749 = vpop.f32.mrf.mxu0
    %v3750 = vadd.f32 %v2771, %v3749
    %3751 = vmatmul.f32.gmra.mxu0 %v2477
    %v3752 = vpop.f32.mrf.mxu0
    %v3753 = vadd.f32 %v2771, %v3752
    %3754 = vmatmul.f32.gmra.mxu0 %v2479
    %v3755 = vpop.f32.mrf.mxu0
    %v3756 = vadd.f32 %v2771, %v3755
    %3757 = vmatmul.f32.gmra.mxu0 %v2481
    %v3758 = vpop.f32.mrf.mxu0
    %v3759 = vadd.f32 %v2771, %v3758
    %3760 = vmatmul.f32.gmra.mxu0 %v2483
    %v3761 = vpop.f32.mrf.mxu0
    %v3762 = vadd.f32 %v2771, %v3761
    %3763 = vmatmul.f32.gmra.mxu0 %v2485
    %v3764 = vpop.f32.mrf.mxu0
    %v3765 = vadd.f32 %v2771, %v3764
    %3766 = vmatmul.f32.gmra.mxu0 %v2487
    %v3767 = vpop.f32.mrf.mxu0
    %v3768 = vadd.f32 %v2771, %v3767
    %3769 = vmatmul.f32.gmra.mxu0 %v2489
    %v3770 = vpop.f32.mrf.mxu0
    %v3771 = vadd.f32 %v2771, %v3770
    %3772 = vmatmul.f32.gmra.mxu0 %v2491
    %v3773 = vpop.f32.mrf.mxu0
    %v3774 = vadd.f32 %v2771, %v3773
    %3775 = vmatmul.f32.gmra.mxu0 %v2493
    %v3776 = vpop.f32.mrf.mxu0
    %v3777 = vadd.f32 %v2771, %v3776
    %3778 = vmatmul.f32.gmra.mxu0 %v2495
    %v3779 = vpop.f32.mrf.mxu0
    %v3780 = vadd.f32 %v2771, %v3779
    %3781 = vmatmul.f32.gmra.mxu0 %v2497
    %v3782 = vpop.f32.mrf.mxu0
    %v3783 = vadd.f32 %v2771, %v3782
    %3784 = vmatmul.f32.gmra.mxu0 %v2499
    %v3785 = vpop.f32.mrf.mxu0
    %v3786 = vadd.f32 %v2771, %v3785
    %3787 = vmatmul.f32.gmra.mxu0 %v2501
    %v3788 = vpop.f32.mrf.mxu0
    %v3789 = vadd.f32 %v2771, %v3788
    %3790 = vmatmul.f32.gmra.mxu0 %v2503
    %v3791 = vpop.f32.mrf.mxu0
    %v3792 = vadd.f32 %v2771, %v3791
    %3793 = vmatmul.f32.gmra.mxu0 %v2505
    %v3794 = vpop.f32.mrf.mxu0
    %v3795 = vadd.f32 %v2771, %v3794
    %3796 = vmatmul.f32.gmra.mxu0 %v2507
    %v3797 = vpop.f32.mrf.mxu0
    %v3798 = vadd.f32 %v2771, %v3797
    %3799 = vdwg.mxu0
    %3800 = vmatpush.msra.mxu0 %v2761
    %3801 = vmatpush.msra.mxu0 %v2753
    %3802 = vmatpush.msra.mxu0 %v2745
    %3803 = vmatpush.msra.mxu0 %v2737
    %3804 = vmatpush.msra.mxu0 %v2729
    %3805 = vmatpush.msra.mxu0 %v2721
    %3806 = vmatpush.msra.mxu0 %v2713
    %3807 = vmatpush.msra.mxu0 %v2705
    %3808 = vmatpush.msra.mxu0 %v2697
    %3809 = vmatpush.msra.mxu0 %v2689
    %3810 = vmatpush.msra.mxu0 %v2681
    %3811 = vmatpush.msra.mxu0 %v2673
    %3812 = vmatpush.msra.mxu0 %v2665
    %3813 = vmatpush.msra.mxu0 %v2657
    %3814 = vmatpush.msra.mxu0 %v2649
    %3815 = vmatpush.msra.mxu0 %v2641
    %3816 = vmatmul.f32.gmra.mxu0 %v2446
    %v3817 = vpop.f32.mrf.mxu0
    %v3818 = vadd.f32 %v3705, %v3817
    %3819 = vmatmul.f32.gmra.mxu0 %v2448
    %v3820 = vpop.f32.mrf.mxu0
    %v3821 = vadd.f32 %v3708, %v3820
    %3822 = vmatmul.f32.gmra.mxu0 %v2450
    %v3823 = vpop.f32.mrf.mxu0
    %v3824 = vadd.f32 %v3711, %v3823
    %3825 = vmatmul.f32.gmra.mxu0 %v2452
    %v3826 = vpop.f32.mrf.mxu0
    %v3827 = vadd.f32 %v3714, %v3826
    %3828 = vmatmul.f32.gmra.mxu0 %v2454
    %v3829 = vpop.f32.mrf.mxu0
    %v3830 = vadd.f32 %v3717, %v3829
    %3831 = vmatmul.f32.gmra.mxu0 %v2456
    %v3832 = vpop.f32.mrf.mxu0
    %v3833 = vadd.f32 %v3720, %v3832
    %3834 = vmatmul.f32.gmra.mxu0 %v2458
    %v3835 = vpop.f32.mrf.mxu0
    %v3836 = vadd.f32 %v3723, %v3835
    %3837 = vmatmul.f32.gmra.mxu0 %v2460
    %v3838 = vpop.f32.mrf.mxu0
    %v3839 = vadd.f32 %v3726, %v3838
    %3840 = vmatmul.f32.gmra.mxu0 %v2462
    %v3841 = vpop.f32.mrf.mxu0
    %v3842 = vadd.f32 %v3729, %v3841
    %3843 = vmatmul.f32.gmra.mxu0 %v2464
    %v3844 = vpop.f32.mrf.mxu0
    %v3845 = vadd.f32 %v3732, %v3844
    %3846 = vmatmul.f32.gmra.mxu0 %v2466
    %v3847 = vpop.f32.mrf.mxu0
    %v3848 = vadd.f32 %v3735, %v3847
    %3849 = vmatmul.f32.gmra.mxu0 %v2468
    %v3850 = vpop.f32.mrf.mxu0
    %v3851 = vadd.f32 %v3738, %v3850
    %3852 = vmatmul.f32.gmra.mxu0 %v2470
    %v3853 = vpop.f32.mrf.mxu0
    %v3854 = vadd.f32 %v3741, %v3853
    %3855 = vmatmul.f32.gmra.mxu0 %v2472
    %v3856 = vpop.f32.mrf.mxu0
    %v3857 = vadd.f32 %v3744, %v3856
    %3858 = vmatmul.f32.gmra.mxu0 %v2474
    %v3859 = vpop.f32.mrf.mxu0
    %v3860 = vadd.f32 %v3747, %v3859
    %3861 = vmatmul.f32.gmra.mxu0 %v2476
    %v3862 = vpop.f32.mrf.mxu0
    %v3863 = vadd.f32 %v3750, %v3862
    %3864 = vmatmul.f32.gmra.mxu0 %v2478
    %v3865 = vpop.f32.mrf.mxu0
    %v3866 = vadd.f32 %v3753, %v3865
    %3867 = vmatmul.f32.gmra.mxu0 %v2480
    %v3868 = vpop.f32.mrf.mxu0
    %v3869 = vadd.f32 %v3756, %v3868
    %3870 = vmatmul.f32.gmra.mxu0 %v2482
    %v3871 = vpop.f32.mrf.mxu0
    %v3872 = vadd.f32 %v3759, %v3871
    %3873 = vmatmul.f32.gmra.mxu0 %v2484
    %v3874 = vpop.f32.mrf.mxu0
    %v3875 = vadd.f32 %v3762, %v3874
    %3876 = vmatmul.f32.gmra.mxu0 %v2486
    %v3877 = vpop.f32.mrf.mxu0
    %v3878 = vadd.f32 %v3765, %v3877
    %3879 = vmatmul.f32.gmra.mxu0 %v2488
    %v3880 = vpop.f32.mrf.mxu0
    %v3881 = vadd.f32 %v3768, %v3880
    %3882 = vmatmul.f32.gmra.mxu0 %v2490
    %v3883 = vpop.f32.mrf.mxu0
    %v3884 = vadd.f32 %v3771, %v3883
    %3885 = vmatmul.f32.gmra.mxu0 %v2492
    %v3886 = vpop.f32.mrf.mxu0
    %v3887 = vadd.f32 %v3774, %v3886
    %3888 = vmatmul.f32.gmra.mxu0 %v2494
    %v3889 = vpop.f32.mrf.mxu0
    %v3890 = vadd.f32 %v3777, %v3889
    %3891 = vmatmul.f32.gmra.mxu0 %v2496
    %v3892 = vpop.f32.mrf.mxu0
    %v3893 = vadd.f32 %v3780, %v3892
    %3894 = vmatmul.f32.gmra.mxu0 %v2498
    %v3895 = vpop.f32.mrf.mxu0
    %v3896 = vadd.f32 %v3783, %v3895
    %3897 = vmatmul.f32.gmra.mxu0 %v2500
    %v3898 = vpop.f32.mrf.mxu0
    %v3899 = vadd.f32 %v3786, %v3898
    %3900 = vmatmul.f32.gmra.mxu0 %v2502
    %v3901 = vpop.f32.mrf.mxu0
    %v3902 = vadd.f32 %v3789, %v3901
    %3903 = vmatmul.f32.gmra.mxu0 %v2504
    %v3904 = vpop.f32.mrf.mxu0
    %v3905 = vadd.f32 %v3792, %v3904
    %3906 = vmatmul.f32.gmra.mxu0 %v2506
    %v3907 = vpop.f32.mrf.mxu0
    %v3908 = vadd.f32 %v3795, %v3907
    %3909 = vmatmul.f32.gmra.mxu0 %v2508
    %v3910 = vpop.f32.mrf.mxu0
    %v3911 = vadd.f32 %v3798, %v3910
    %3912 = vdwg.mxu0
    %3913 = vmatpush.msra.mxu0 %v2634
    %3914 = vmatpush.msra.mxu0 %v2626
    %3915 = vmatpush.msra.mxu0 %v2618
    %3916 = vmatpush.msra.mxu0 %v2610
    %3917 = vmatpush.msra.mxu0 %v2602
    %3918 = vmatpush.msra.mxu0 %v2594
    %3919 = vmatpush.msra.mxu0 %v2586
    %3920 = vmatpush.msra.mxu0 %v2578
    %3921 = vmatpush.msra.mxu0 %v2570
    %3922 = vmatpush.msra.mxu0 %v2562
    %3923 = vmatpush.msra.mxu0 %v2554
    %3924 = vmatpush.msra.mxu0 %v2546
    %3925 = vmatpush.msra.mxu0 %v2538
    %3926 = vmatpush.msra.mxu0 %v2530
    %3927 = vmatpush.msra.mxu0 %v2522
    %3928 = vmatpush.msra.mxu0 %v2514
    %3929 = vmatmul.f32.gmra.mxu0 %v2445
    %v3930 = vpop.f32.mrf.mxu0
    %v3931 = vadd.f32 %v2772, %v3930
    %3932 = vmatmul.f32.gmra.mxu0 %v2447
    %v3933 = vpop.f32.mrf.mxu0
    %v3934 = vadd.f32 %v2772, %v3933
    %3935 = vmatmul.f32.gmra.mxu0 %v2449
    %v3936 = vpop.f32.mrf.mxu0
    %v3937 = vadd.f32 %v2772, %v3936
    %3938 = vmatmul.f32.gmra.mxu0 %v2451
    %v3939 = vpop.f32.mrf.mxu0
    %v3940 = vadd.f32 %v2772, %v3939
    %3941 = vmatmul.f32.gmra.mxu0 %v2453
    %v3942 = vpop.f32.mrf.mxu0
    %v3943 = vadd.f32 %v2772, %v3942
    %3944 = vmatmul.f32.gmra.mxu0 %v2455
    %v3945 = vpop.f32.mrf.mxu0
    %v3946 = vadd.f32 %v2772, %v3945
    %3947 = vmatmul.f32.gmra.mxu0 %v2457
    %v3948 = vpop.f32.mrf.mxu0
    %v3949 = vadd.f32 %v2772, %v3948
    %3950 = vmatmul.f32.gmra.mxu0 %v2459
    %v3951 = vpop.f32.mrf.mxu0
    %v3952 = vadd.f32 %v2772, %v3951
    %3953 = vmatmul.f32.gmra.mxu0 %v2461
    %v3954 = vpop.f32.mrf.mxu0
    %v3955 = vadd.f32 %v2772, %v3954
    %3956 = vmatmul.f32.gmra.mxu0 %v2463
    %v3957 = vpop.f32.mrf.mxu0
    %v3958 = vadd.f32 %v2772, %v3957
    %3959 = vmatmul.f32.gmra.mxu0 %v2465
    %v3960 = vpop.f32.mrf.mxu0
    %v3961 = vadd.f32 %v2772, %v3960
    %3962 = vmatmul.f32.gmra.mxu0 %v2467
    %v3963 = vpop.f32.mrf.mxu0
    %v3964 = vadd.f32 %v2772, %v3963
    %3965 = vmatmul.f32.gmra.mxu0 %v2469
    %v3966 = vpop.f32.mrf.mxu0
    %v3967 = vadd.f32 %v2772, %v3966
    %3968 = vmatmul.f32.gmra.mxu0 %v2471
    %v3969 = vpop.f32.mrf.mxu0
    %v3970 = vadd.f32 %v2772, %v3969
    %3971 = vmatmul.f32.gmra.mxu0 %v2473
    %v3972 = vpop.f32.mrf.mxu0
    %v3973 = vadd.f32 %v2772, %v3972
    %3974 = vmatmul.f32.gmra.mxu0 %v2475
    %v3975 = vpop.f32.mrf.mxu0
    %v3976 = vadd.f32 %v2772, %v3975
    %3977 = vmatmul.f32.gmra.mxu0 %v2477
    %v3978 = vpop.f32.mrf.mxu0
    %v3979 = vadd.f32 %v2772, %v3978
    %3980 = vmatmul.f32.gmra.mxu0 %v2479
    %v3981 = vpop.f32.mrf.mxu0
    %v3982 = vadd.f32 %v2772, %v3981
    %3983 = vmatmul.f32.gmra.mxu0 %v2481
    %v3984 = vpop.f32.mrf.mxu0
    %v3985 = vadd.f32 %v2772, %v3984
    %3986 = vmatmul.f32.gmra.mxu0 %v2483
    %v3987 = vpop.f32.mrf.mxu0
    %v3988 = vadd.f32 %v2772, %v3987
    %3989 = vmatmul.f32.gmra.mxu0 %v2485
    %v3990 = vpop.f32.mrf.mxu0
    %v3991 = vadd.f32 %v2772, %v3990
    %3992 = vmatmul.f32.gmra.mxu0 %v2487
    %v3993 = vpop.f32.mrf.mxu0
    %v3994 = vadd.f32 %v2772, %v3993
    %3995 = vmatmul.f32.gmra.mxu0 %v2489
    %v3996 = vpop.f32.mrf.mxu0
    %v3997 = vadd.f32 %v2772, %v3996
    %3998 = vmatmul.f32.gmra.mxu0 %v2491
    %v3999 = vpop.f32.mrf.mxu0
    %v4000 = vadd.f32 %v2772, %v3999
    %4001 = vmatmul.f32.gmra.mxu0 %v2493
    %v4002 = vpop.f32.mrf.mxu0
    %v4003 = vadd.f32 %v2772, %v4002
    %4004 = vmatmul.f32.gmra.mxu0 %v2495
    %v4005 = vpop.f32.mrf.mxu0
    %v4006 = vadd.f32 %v2772, %v4005
    %4007 = vmatmul.f32.gmra.mxu0 %v2497
    %v4008 = vpop.f32.mrf.mxu0
    %v4009 = vadd.f32 %v2772, %v4008
    %4010 = vmatmul.f32.gmra.mxu0 %v2499
    %v4011 = vpop.f32.mrf.mxu0
    %v4012 = vadd.f32 %v2772, %v4011
    %4013 = vmatmul.f32.gmra.mxu0 %v2501
    %v4014 = vpop.f32.mrf.mxu0
    %v4015 = vadd.f32 %v2772, %v4014
    %4016 = vmatmul.f32.gmra.mxu0 %v2503
    %v4017 = vpop.f32.mrf.mxu0
    %v4018 = vadd.f32 %v2772, %v4017
    %4019 = vmatmul.f32.gmra.mxu0 %v2505
    %v4020 = vpop.f32.mrf.mxu0
    %v4021 = vadd.f32 %v2772, %v4020
    %4022 = vmatmul.f32.gmra.mxu0 %v2507
    %v4023 = vpop.f32.mrf.mxu0
    %v4024 = vadd.f32 %v2772, %v4023
    %4025 = vdwg.mxu0
    %4026 = vmatpush.msra.mxu0 %v2762
    %4027 = vmatpush.msra.mxu0 %v2754
    %4028 = vmatpush.msra.mxu0 %v2746
    %4029 = vmatpush.msra.mxu0 %v2738
    %4030 = vmatpush.msra.mxu0 %v2730
    %4031 = vmatpush.msra.mxu0 %v2722
    %4032 = vmatpush.msra.mxu0 %v2714
    %4033 = vmatpush.msra.mxu0 %v2706
    %4034 = vmatpush.msra.mxu0 %v2698
    %4035 = vmatpush.msra.mxu0 %v2690
    %4036 = vmatpush.msra.mxu0 %v2682
    %4037 = vmatpush.msra.mxu0 %v2674
    %4038 = vmatpush.msra.mxu0 %v2666
    %4039 = vmatpush.msra.mxu0 %v2658
    %4040 = vmatpush.msra.mxu0 %v2650
    %4041 = vmatpush.msra.mxu0 %v2642
    %4042 = vmatmul.f32.gmra.mxu0 %v2446
    %v4043 = vpop.f32.mrf.mxu0
    %v4044 = vadd.f32 %v3931, %v4043
    %4045 = vmatmul.f32.gmra.mxu0 %v2448
    %v4046 = vpop.f32.mrf.mxu0
    %v4047 = vadd.f32 %v3934, %v4046
    %4048 = vmatmul.f32.gmra.mxu0 %v2450
    %v4049 = vpop.f32.mrf.mxu0
    %v4050 = vadd.f32 %v3937, %v4049
    %4051 = vmatmul.f32.gmra.mxu0 %v2452
    %v4052 = vpop.f32.mrf.mxu0
    %v4053 = vadd.f32 %v3940, %v4052
    %4054 = vmatmul.f32.gmra.mxu0 %v2454
    %v4055 = vpop.f32.mrf.mxu0
    %v4056 = vadd.f32 %v3943, %v4055
    %4057 = vmatmul.f32.gmra.mxu0 %v2456
    %v4058 = vpop.f32.mrf.mxu0
    %v4059 = vadd.f32 %v3946, %v4058
    %4060 = vmatmul.f32.gmra.mxu0 %v2458
    %v4061 = vpop.f32.mrf.mxu0
    %v4062 = vadd.f32 %v3949, %v4061
    %4063 = vmatmul.f32.gmra.mxu0 %v2460
    %v4064 = vpop.f32.mrf.mxu0
    %v4065 = vadd.f32 %v3952, %v4064
    %4066 = vmatmul.f32.gmra.mxu0 %v2462
    %v4067 = vpop.f32.mrf.mxu0
    %v4068 = vadd.f32 %v3955, %v4067
    %4069 = vmatmul.f32.gmra.mxu0 %v2464
    %v4070 = vpop.f32.mrf.mxu0
    %v4071 = vadd.f32 %v3958, %v4070
    %4072 = vmatmul.f32.gmra.mxu0 %v2466
    %v4073 = vpop.f32.mrf.mxu0
    %v4074 = vadd.f32 %v3961, %v4073
    %4075 = vmatmul.f32.gmra.mxu0 %v2468
    %v4076 = vpop.f32.mrf.mxu0
    %v4077 = vadd.f32 %v3964, %v4076
    %4078 = vmatmul.f32.gmra.mxu0 %v2470
    %v4079 = vpop.f32.mrf.mxu0
    %v4080 = vadd.f32 %v3967, %v4079
    %4081 = vmatmul.f32.gmra.mxu0 %v2472
    %v4082 = vpop.f32.mrf.mxu0
    %v4083 = vadd.f32 %v3970, %v4082
    %4084 = vmatmul.f32.gmra.mxu0 %v2474
    %v4085 = vpop.f32.mrf.mxu0
    %v4086 = vadd.f32 %v3973, %v4085
    %4087 = vmatmul.f32.gmra.mxu0 %v2476
    %v4088 = vpop.f32.mrf.mxu0
    %v4089 = vadd.f32 %v3976, %v4088
    %4090 = vmatmul.f32.gmra.mxu0 %v2478
    %v4091 = vpop.f32.mrf.mxu0
    %v4092 = vadd.f32 %v3979, %v4091
    %4093 = vmatmul.f32.gmra.mxu0 %v2480
    %v4094 = vpop.f32.mrf.mxu0
    %v4095 = vadd.f32 %v3982, %v4094
    %4096 = vmatmul.f32.gmra.mxu0 %v2482
    %v4097 = vpop.f32.mrf.mxu0
    %v4098 = vadd.f32 %v3985, %v4097
    %4099 = vmatmul.f32.gmra.mxu0 %v2484
    %v4100 = vpop.f32.mrf.mxu0
    %v4101 = vadd.f32 %v3988, %v4100
    %4102 = vmatmul.f32.gmra.mxu0 %v2486
    %v4103 = vpop.f32.mrf.mxu0
    %v4104 = vadd.f32 %v3991, %v4103
    %4105 = vmatmul.f32.gmra.mxu0 %v2488
    %v4106 = vpop.f32.mrf.mxu0
    %v4107 = vadd.f32 %v3994, %v4106
    %4108 = vmatmul.f32.gmra.mxu0 %v2490
    %v4109 = vpop.f32.mrf.mxu0
    %v4110 = vadd.f32 %v3997, %v4109
    %4111 = vmatmul.f32.gmra.mxu0 %v2492
    %v4112 = vpop.f32.mrf.mxu0
    %v4113 = vadd.f32 %v4000, %v4112
    %4114 = vmatmul.f32.gmra.mxu0 %v2494
    %v4115 = vpop.f32.mrf.mxu0
    %v4116 = vadd.f32 %v4003, %v4115
    %4117 = vmatmul.f32.gmra.mxu0 %v2496
    %v4118 = vpop.f32.mrf.mxu0
    %v4119 = vadd.f32 %v4006, %v4118
    %4120 = vmatmul.f32.gmra.mxu0 %v2498
    %v4121 = vpop.f32.mrf.mxu0
    %v4122 = vadd.f32 %v4009, %v4121
    %4123 = vmatmul.f32.gmra.mxu0 %v2500
    %v4124 = vpop.f32.mrf.mxu0
    %v4125 = vadd.f32 %v4012, %v4124
    %4126 = vmatmul.f32.gmra.mxu0 %v2502
    %v4127 = vpop.f32.mrf.mxu0
    %v4128 = vadd.f32 %v4015, %v4127
    %4129 = vmatmul.f32.gmra.mxu0 %v2504
    %v4130 = vpop.f32.mrf.mxu0
    %v4131 = vadd.f32 %v4018, %v4130
    %4132 = vmatmul.f32.gmra.mxu0 %v2506
    %v4133 = vpop.f32.mrf.mxu0
    %v4134 = vadd.f32 %v4021, %v4133
    %4135 = vmatmul.f32.gmra.mxu0 %v2508
    %v4136 = vpop.f32.mrf.mxu0
    %v4137 = vadd.f32 %v4024, %v4136
    %4138 = vdwg.mxu0
    %4139 = vmatpush.msra.mxu0 %v2635
    %4140 = vmatpush.msra.mxu0 %v2627
    %4141 = vmatpush.msra.mxu0 %v2619
    %4142 = vmatpush.msra.mxu0 %v2611
    %4143 = vmatpush.msra.mxu0 %v2603
    %4144 = vmatpush.msra.mxu0 %v2595
    %4145 = vmatpush.msra.mxu0 %v2587
    %4146 = vmatpush.msra.mxu0 %v2579
    %4147 = vmatpush.msra.mxu0 %v2571
    %4148 = vmatpush.msra.mxu0 %v2563
    %4149 = vmatpush.msra.mxu0 %v2555
    %4150 = vmatpush.msra.mxu0 %v2547
    %4151 = vmatpush.msra.mxu0 %v2539
    %4152 = vmatpush.msra.mxu0 %v2531
    %4153 = vmatpush.msra.mxu0 %v2523
    %4154 = vmatpush.msra.mxu0 %v2515
    %4155 = vmatmul.f32.gmra.mxu0 %v2445
    %v4156 = vpop.f32.mrf.mxu0
    %v4157 = vadd.f32 %v2773, %v4156
    %4158 = vmatmul.f32.gmra.mxu0 %v2447
    %v4159 = vpop.f32.mrf.mxu0
    %v4160 = vadd.f32 %v2773, %v4159
    %4161 = vmatmul.f32.gmra.mxu0 %v2449
    %v4162 = vpop.f32.mrf.mxu0
    %v4163 = vadd.f32 %v2773, %v4162
    %4164 = vmatmul.f32.gmra.mxu0 %v2451
    %v4165 = vpop.f32.mrf.mxu0
    %v4166 = vadd.f32 %v2773, %v4165
    %4167 = vmatmul.f32.gmra.mxu0 %v2453
    %v4168 = vpop.f32.mrf.mxu0
    %v4169 = vadd.f32 %v2773, %v4168
    %4170 = vmatmul.f32.gmra.mxu0 %v2455
    %v4171 = vpop.f32.mrf.mxu0
    %v4172 = vadd.f32 %v2773, %v4171
    %4173 = vmatmul.f32.gmra.mxu0 %v2457
    %v4174 = vpop.f32.mrf.mxu0
    %v4175 = vadd.f32 %v2773, %v4174
    %4176 = vmatmul.f32.gmra.mxu0 %v2459
    %v4177 = vpop.f32.mrf.mxu0
    %v4178 = vadd.f32 %v2773, %v4177
    %4179 = vmatmul.f32.gmra.mxu0 %v2461
    %v4180 = vpop.f32.mrf.mxu0
    %v4181 = vadd.f32 %v2773, %v4180
    %4182 = vmatmul.f32.gmra.mxu0 %v2463
    %v4183 = vpop.f32.mrf.mxu0
    %v4184 = vadd.f32 %v2773, %v4183
    %4185 = vmatmul.f32.gmra.mxu0 %v2465
    %v4186 = vpop.f32.mrf.mxu0
    %v4187 = vadd.f32 %v2773, %v4186
    %4188 = vmatmul.f32.gmra.mxu0 %v2467
    %v4189 = vpop.f32.mrf.mxu0
    %v4190 = vadd.f32 %v2773, %v4189
    %4191 = vmatmul.f32.gmra.mxu0 %v2469
    %v4192 = vpop.f32.mrf.mxu0
    %v4193 = vadd.f32 %v2773, %v4192
    %4194 = vmatmul.f32.gmra.mxu0 %v2471
    %v4195 = vpop.f32.mrf.mxu0
    %v4196 = vadd.f32 %v2773, %v4195
    %4197 = vmatmul.f32.gmra.mxu0 %v2473
    %v4198 = vpop.f32.mrf.mxu0
    %v4199 = vadd.f32 %v2773, %v4198
    %4200 = vmatmul.f32.gmra.mxu0 %v2475
    %v4201 = vpop.f32.mrf.mxu0
    %v4202 = vadd.f32 %v2773, %v4201
    %4203 = vmatmul.f32.gmra.mxu0 %v2477
    %v4204 = vpop.f32.mrf.mxu0
    %v4205 = vadd.f32 %v2773, %v4204
    %4206 = vmatmul.f32.gmra.mxu0 %v2479
    %v4207 = vpop.f32.mrf.mxu0
    %v4208 = vadd.f32 %v2773, %v4207
    %4209 = vmatmul.f32.gmra.mxu0 %v2481
    %v4210 = vpop.f32.mrf.mxu0
    %v4211 = vadd.f32 %v2773, %v4210
    %4212 = vmatmul.f32.gmra.mxu0 %v2483
    %v4213 = vpop.f32.mrf.mxu0
    %v4214 = vadd.f32 %v2773, %v4213
    %4215 = vmatmul.f32.gmra.mxu0 %v2485
    %v4216 = vpop.f32.mrf.mxu0
    %v4217 = vadd.f32 %v2773, %v4216
    %4218 = vmatmul.f32.gmra.mxu0 %v2487
    %v4219 = vpop.f32.mrf.mxu0
    %v4220 = vadd.f32 %v2773, %v4219
    %4221 = vmatmul.f32.gmra.mxu0 %v2489
    %v4222 = vpop.f32.mrf.mxu0
    %v4223 = vadd.f32 %v2773, %v4222
    %4224 = vmatmul.f32.gmra.mxu0 %v2491
    %v4225 = vpop.f32.mrf.mxu0
    %v4226 = vadd.f32 %v2773, %v4225
    %4227 = vmatmul.f32.gmra.mxu0 %v2493
    %v4228 = vpop.f32.mrf.mxu0
    %v4229 = vadd.f32 %v2773, %v4228
    %4230 = vmatmul.f32.gmra.mxu0 %v2495
    %v4231 = vpop.f32.mrf.mxu0
    %v4232 = vadd.f32 %v2773, %v4231
    %4233 = vmatmul.f32.gmra.mxu0 %v2497
    %v4234 = vpop.f32.mrf.mxu0
    %v4235 = vadd.f32 %v2773, %v4234
    %4236 = vmatmul.f32.gmra.mxu0 %v2499
    %v4237 = vpop.f32.mrf.mxu0
    %v4238 = vadd.f32 %v2773, %v4237
    %4239 = vmatmul.f32.gmra.mxu0 %v2501
    %v4240 = vpop.f32.mrf.mxu0
    %v4241 = vadd.f32 %v2773, %v4240
    %4242 = vmatmul.f32.gmra.mxu0 %v2503
    %v4243 = vpop.f32.mrf.mxu0
    %v4244 = vadd.f32 %v2773, %v4243
    %4245 = vmatmul.f32.gmra.mxu0 %v2505
    %v4246 = vpop.f32.mrf.mxu0
    %v4247 = vadd.f32 %v2773, %v4246
    %4248 = vmatmul.f32.gmra.mxu0 %v2507
    %v4249 = vpop.f32.mrf.mxu0
    %v4250 = vadd.f32 %v2773, %v4249
    %4251 = vdwg.mxu0
    %4252 = vmatpush.msra.mxu0 %v2763
    %4253 = vmatpush.msra.mxu0 %v2755
    %4254 = vmatpush.msra.mxu0 %v2747
    %4255 = vmatpush.msra.mxu0 %v2739
    %4256 = vmatpush.msra.mxu0 %v2731
    %4257 = vmatpush.msra.mxu0 %v2723
    %4258 = vmatpush.msra.mxu0 %v2715
    %4259 = vmatpush.msra.mxu0 %v2707
    %4260 = vmatpush.msra.mxu0 %v2699
    %4261 = vmatpush.msra.mxu0 %v2691
    %4262 = vmatpush.msra.mxu0 %v2683
    %4263 = vmatpush.msra.mxu0 %v2675
    %4264 = vmatpush.msra.mxu0 %v2667
    %4265 = vmatpush.msra.mxu0 %v2659
    %4266 = vmatpush.msra.mxu0 %v2651
    %4267 = vmatpush.msra.mxu0 %v2643
    %4268 = vmatmul.f32.gmra.mxu0 %v2446
    %v4269 = vpop.f32.mrf.mxu0
    %v4270 = vadd.f32 %v4157, %v4269
    %4271 = vmatmul.f32.gmra.mxu0 %v2448
    %v4272 = vpop.f32.mrf.mxu0
    %v4273 = vadd.f32 %v4160, %v4272
    %4274 = vmatmul.f32.gmra.mxu0 %v2450
    %v4275 = vpop.f32.mrf.mxu0
    %v4276 = vadd.f32 %v4163, %v4275
    %4277 = vmatmul.f32.gmra.mxu0 %v2452
    %v4278 = vpop.f32.mrf.mxu0
    %v4279 = vadd.f32 %v4166, %v4278
    %4280 = vmatmul.f32.gmra.mxu0 %v2454
    %v4281 = vpop.f32.mrf.mxu0
    %v4282 = vadd.f32 %v4169, %v4281
    %4283 = vmatmul.f32.gmra.mxu0 %v2456
    %v4284 = vpop.f32.mrf.mxu0
    %v4285 = vadd.f32 %v4172, %v4284
    %4286 = vmatmul.f32.gmra.mxu0 %v2458
    %v4287 = vpop.f32.mrf.mxu0
    %v4288 = vadd.f32 %v4175, %v4287
    %4289 = vmatmul.f32.gmra.mxu0 %v2460
    %v4290 = vpop.f32.mrf.mxu0
    %v4291 = vadd.f32 %v4178, %v4290
    %4292 = vmatmul.f32.gmra.mxu0 %v2462
    %v4293 = vpop.f32.mrf.mxu0
    %v4294 = vadd.f32 %v4181, %v4293
    %4295 = vmatmul.f32.gmra.mxu0 %v2464
    %v4296 = vpop.f32.mrf.mxu0
    %v4297 = vadd.f32 %v4184, %v4296
    %4298 = vmatmul.f32.gmra.mxu0 %v2466
    %v4299 = vpop.f32.mrf.mxu0
    %v4300 = vadd.f32 %v4187, %v4299
    %4301 = vmatmul.f32.gmra.mxu0 %v2468
    %v4302 = vpop.f32.mrf.mxu0
    %v4303 = vadd.f32 %v4190, %v4302
    %4304 = vmatmul.f32.gmra.mxu0 %v2470
    %v4305 = vpop.f32.mrf.mxu0
    %v4306 = vadd.f32 %v4193, %v4305
    %4307 = vmatmul.f32.gmra.mxu0 %v2472
    %v4308 = vpop.f32.mrf.mxu0
    %v4309 = vadd.f32 %v4196, %v4308
    %4310 = vmatmul.f32.gmra.mxu0 %v2474
    %v4311 = vpop.f32.mrf.mxu0
    %v4312 = vadd.f32 %v4199, %v4311
    %4313 = vmatmul.f32.gmra.mxu0 %v2476
    %v4314 = vpop.f32.mrf.mxu0
    %v4315 = vadd.f32 %v4202, %v4314
    %4316 = vmatmul.f32.gmra.mxu0 %v2478
    %v4317 = vpop.f32.mrf.mxu0
    %v4318 = vadd.f32 %v4205, %v4317
    %4319 = vmatmul.f32.gmra.mxu0 %v2480
    %v4320 = vpop.f32.mrf.mxu0
    %v4321 = vadd.f32 %v4208, %v4320
    %4322 = vmatmul.f32.gmra.mxu0 %v2482
    %v4323 = vpop.f32.mrf.mxu0
    %v4324 = vadd.f32 %v4211, %v4323
    %4325 = vmatmul.f32.gmra.mxu0 %v2484
    %v4326 = vpop.f32.mrf.mxu0
    %v4327 = vadd.f32 %v4214, %v4326
    %4328 = vmatmul.f32.gmra.mxu0 %v2486
    %v4329 = vpop.f32.mrf.mxu0
    %v4330 = vadd.f32 %v4217, %v4329
    %4331 = vmatmul.f32.gmra.mxu0 %v2488
    %v4332 = vpop.f32.mrf.mxu0
    %v4333 = vadd.f32 %v4220, %v4332
    %4334 = vmatmul.f32.gmra.mxu0 %v2490
    %v4335 = vpop.f32.mrf.mxu0
    %v4336 = vadd.f32 %v4223, %v4335
    %4337 = vmatmul.f32.gmra.mxu0 %v2492
    %v4338 = vpop.f32.mrf.mxu0
    %v4339 = vadd.f32 %v4226, %v4338
    %4340 = vmatmul.f32.gmra.mxu0 %v2494
    %v4341 = vpop.f32.mrf.mxu0
    %v4342 = vadd.f32 %v4229, %v4341
    %4343 = vmatmul.f32.gmra.mxu0 %v2496
    %v4344 = vpop.f32.mrf.mxu0
    %v4345 = vadd.f32 %v4232, %v4344
    %4346 = vmatmul.f32.gmra.mxu0 %v2498
    %v4347 = vpop.f32.mrf.mxu0
    %v4348 = vadd.f32 %v4235, %v4347
    %4349 = vmatmul.f32.gmra.mxu0 %v2500
    %v4350 = vpop.f32.mrf.mxu0
    %v4351 = vadd.f32 %v4238, %v4350
    %4352 = vmatmul.f32.gmra.mxu0 %v2502
    %v4353 = vpop.f32.mrf.mxu0
    %v4354 = vadd.f32 %v4241, %v4353
    %4355 = vmatmul.f32.gmra.mxu0 %v2504
    %v4356 = vpop.f32.mrf.mxu0
    %v4357 = vadd.f32 %v4244, %v4356
    %4358 = vmatmul.f32.gmra.mxu0 %v2506
    %v4359 = vpop.f32.mrf.mxu0
    %v4360 = vadd.f32 %v4247, %v4359
    %4361 = vmatmul.f32.gmra.mxu0 %v2508
    %v4362 = vpop.f32.mrf.mxu0
    %v4363 = vadd.f32 %v4250, %v4362
    %4364 = vdwg.mxu0
    %4365 = vmatpush.msra.mxu0 %v2636
    %4366 = vmatpush.msra.mxu0 %v2628
    %4367 = vmatpush.msra.mxu0 %v2620
    %4368 = vmatpush.msra.mxu0 %v2612
    %4369 = vmatpush.msra.mxu0 %v2604
    %4370 = vmatpush.msra.mxu0 %v2596
    %4371 = vmatpush.msra.mxu0 %v2588
    %4372 = vmatpush.msra.mxu0 %v2580
    %4373 = vmatpush.msra.mxu0 %v2572
    %4374 = vmatpush.msra.mxu0 %v2564
    %4375 = vmatpush.msra.mxu0 %v2556
    %4376 = vmatpush.msra.mxu0 %v2548
    %4377 = vmatpush.msra.mxu0 %v2540
    %4378 = vmatpush.msra.mxu0 %v2532
    %4379 = vmatpush.msra.mxu0 %v2524
    %4380 = vmatpush.msra.mxu0 %v2516
    %4381 = vmatmul.f32.gmra.mxu0 %v2445
    %v4382 = vpop.f32.mrf.mxu0
    %v4383 = vadd.f32 %v2774, %v4382
    %4384 = vmatmul.f32.gmra.mxu0 %v2447
    %v4385 = vpop.f32.mrf.mxu0
    %v4386 = vadd.f32 %v2774, %v4385
    %4387 = vmatmul.f32.gmra.mxu0 %v2449
    %v4388 = vpop.f32.mrf.mxu0
    %v4389 = vadd.f32 %v2774, %v4388
    %4390 = vmatmul.f32.gmra.mxu0 %v2451
    %v4391 = vpop.f32.mrf.mxu0
    %v4392 = vadd.f32 %v2774, %v4391
    %4393 = vmatmul.f32.gmra.mxu0 %v2453
    %v4394 = vpop.f32.mrf.mxu0
    %v4395 = vadd.f32 %v2774, %v4394
    %4396 = vmatmul.f32.gmra.mxu0 %v2455
    %v4397 = vpop.f32.mrf.mxu0
    %v4398 = vadd.f32 %v2774, %v4397
    %4399 = vmatmul.f32.gmra.mxu0 %v2457
    %v4400 = vpop.f32.mrf.mxu0
    %v4401 = vadd.f32 %v2774, %v4400
    %4402 = vmatmul.f32.gmra.mxu0 %v2459
    %v4403 = vpop.f32.mrf.mxu0
    %v4404 = vadd.f32 %v2774, %v4403
    %4405 = vmatmul.f32.gmra.mxu0 %v2461
    %v4406 = vpop.f32.mrf.mxu0
    %v4407 = vadd.f32 %v2774, %v4406
    %4408 = vmatmul.f32.gmra.mxu0 %v2463
    %v4409 = vpop.f32.mrf.mxu0
    %v4410 = vadd.f32 %v2774, %v4409
    %4411 = vmatmul.f32.gmra.mxu0 %v2465
    %v4412 = vpop.f32.mrf.mxu0
    %v4413 = vadd.f32 %v2774, %v4412
    %4414 = vmatmul.f32.gmra.mxu0 %v2467
    %v4415 = vpop.f32.mrf.mxu0
    %v4416 = vadd.f32 %v2774, %v4415
    %4417 = vmatmul.f32.gmra.mxu0 %v2469
    %v4418 = vpop.f32.mrf.mxu0
    %v4419 = vadd.f32 %v2774, %v4418
    %4420 = vmatmul.f32.gmra.mxu0 %v2471
    %v4421 = vpop.f32.mrf.mxu0
    %v4422 = vadd.f32 %v2774, %v4421
    %4423 = vmatmul.f32.gmra.mxu0 %v2473
    %v4424 = vpop.f32.mrf.mxu0
    %v4425 = vadd.f32 %v2774, %v4424
    %4426 = vmatmul.f32.gmra.mxu0 %v2475
    %v4427 = vpop.f32.mrf.mxu0
    %v4428 = vadd.f32 %v2774, %v4427
    %4429 = vmatmul.f32.gmra.mxu0 %v2477
    %v4430 = vpop.f32.mrf.mxu0
    %v4431 = vadd.f32 %v2774, %v4430
    %4432 = vmatmul.f32.gmra.mxu0 %v2479
    %v4433 = vpop.f32.mrf.mxu0
    %v4434 = vadd.f32 %v2774, %v4433
    %4435 = vmatmul.f32.gmra.mxu0 %v2481
    %v4436 = vpop.f32.mrf.mxu0
    %v4437 = vadd.f32 %v2774, %v4436
    %4438 = vmatmul.f32.gmra.mxu0 %v2483
    %v4439 = vpop.f32.mrf.mxu0
    %v4440 = vadd.f32 %v2774, %v4439
    %4441 = vmatmul.f32.gmra.mxu0 %v2485
    %v4442 = vpop.f32.mrf.mxu0
    %v4443 = vadd.f32 %v2774, %v4442
    %4444 = vmatmul.f32.gmra.mxu0 %v2487
    %v4445 = vpop.f32.mrf.mxu0
    %v4446 = vadd.f32 %v2774, %v4445
    %4447 = vmatmul.f32.gmra.mxu0 %v2489
    %v4448 = vpop.f32.mrf.mxu0
    %v4449 = vadd.f32 %v2774, %v4448
    %4450 = vmatmul.f32.gmra.mxu0 %v2491
    %v4451 = vpop.f32.mrf.mxu0
    %v4452 = vadd.f32 %v2774, %v4451
    %4453 = vmatmul.f32.gmra.mxu0 %v2493
    %v4454 = vpop.f32.mrf.mxu0
    %v4455 = vadd.f32 %v2774, %v4454
    %4456 = vmatmul.f32.gmra.mxu0 %v2495
    %v4457 = vpop.f32.mrf.mxu0
    %v4458 = vadd.f32 %v2774, %v4457
    %4459 = vmatmul.f32.gmra.mxu0 %v2497
    %v4460 = vpop.f32.mrf.mxu0
    %v4461 = vadd.f32 %v2774, %v4460
    %4462 = vmatmul.f32.gmra.mxu0 %v2499
    %v4463 = vpop.f32.mrf.mxu0
    %v4464 = vadd.f32 %v2774, %v4463
    %4465 = vmatmul.f32.gmra.mxu0 %v2501
    %v4466 = vpop.f32.mrf.mxu0
    %v4467 = vadd.f32 %v2774, %v4466
    %4468 = vmatmul.f32.gmra.mxu0 %v2503
    %v4469 = vpop.f32.mrf.mxu0
    %v4470 = vadd.f32 %v2774, %v4469
    %4471 = vmatmul.f32.gmra.mxu0 %v2505
    %v4472 = vpop.f32.mrf.mxu0
    %v4473 = vadd.f32 %v2774, %v4472
    %4474 = vmatmul.f32.gmra.mxu0 %v2507
    %v4475 = vpop.f32.mrf.mxu0
    %v4476 = vadd.f32 %v2774, %v4475
    %4477 = vdwg.mxu0
    %4478 = vmatpush.msra.mxu0 %v2764
    %4479 = vmatpush.msra.mxu0 %v2756
    %4480 = vmatpush.msra.mxu0 %v2748
    %4481 = vmatpush.msra.mxu0 %v2740
    %4482 = vmatpush.msra.mxu0 %v2732
    %4483 = vmatpush.msra.mxu0 %v2724
    %4484 = vmatpush.msra.mxu0 %v2716
    %4485 = vmatpush.msra.mxu0 %v2708
    %4486 = vmatpush.msra.mxu0 %v2700
    %4487 = vmatpush.msra.mxu0 %v2692
    %4488 = vmatpush.msra.mxu0 %v2684
    %4489 = vmatpush.msra.mxu0 %v2676
    %4490 = vmatpush.msra.mxu0 %v2668
    %4491 = vmatpush.msra.mxu0 %v2660
    %4492 = vmatpush.msra.mxu0 %v2652
    %4493 = vmatpush.msra.mxu0 %v2644
    %4494 = vmatmul.f32.gmra.mxu0 %v2446
    %v4495 = vpop.f32.mrf.mxu0
    %v4496 = vadd.f32 %v4383, %v4495
    %4497 = vmatmul.f32.gmra.mxu0 %v2448
    %v4498 = vpop.f32.mrf.mxu0
    %v4499 = vadd.f32 %v4386, %v4498
    %4500 = vmatmul.f32.gmra.mxu0 %v2450
    %v4501 = vpop.f32.mrf.mxu0
    %v4502 = vadd.f32 %v4389, %v4501
    %4503 = vmatmul.f32.gmra.mxu0 %v2452
    %v4504 = vpop.f32.mrf.mxu0
    %v4505 = vadd.f32 %v4392, %v4504
    %4506 = vmatmul.f32.gmra.mxu0 %v2454
    %v4507 = vpop.f32.mrf.mxu0
    %v4508 = vadd.f32 %v4395, %v4507
    %4509 = vmatmul.f32.gmra.mxu0 %v2456
    %v4510 = vpop.f32.mrf.mxu0
    %v4511 = vadd.f32 %v4398, %v4510
    %4512 = vmatmul.f32.gmra.mxu0 %v2458
    %v4513 = vpop.f32.mrf.mxu0
    %v4514 = vadd.f32 %v4401, %v4513
    %4515 = vmatmul.f32.gmra.mxu0 %v2460
    %v4516 = vpop.f32.mrf.mxu0
    %v4517 = vadd.f32 %v4404, %v4516
    %4518 = vmatmul.f32.gmra.mxu0 %v2462
    %v4519 = vpop.f32.mrf.mxu0
    %v4520 = vadd.f32 %v4407, %v4519
    %4521 = vmatmul.f32.gmra.mxu0 %v2464
    %v4522 = vpop.f32.mrf.mxu0
    %v4523 = vadd.f32 %v4410, %v4522
    %4524 = vmatmul.f32.gmra.mxu0 %v2466
    %v4525 = vpop.f32.mrf.mxu0
    %v4526 = vadd.f32 %v4413, %v4525
    %4527 = vmatmul.f32.gmra.mxu0 %v2468
    %v4528 = vpop.f32.mrf.mxu0
    %v4529 = vadd.f32 %v4416, %v4528
    %4530 = vmatmul.f32.gmra.mxu0 %v2470
    %v4531 = vpop.f32.mrf.mxu0
    %v4532 = vadd.f32 %v4419, %v4531
    %4533 = vmatmul.f32.gmra.mxu0 %v2472
    %v4534 = vpop.f32.mrf.mxu0
    %v4535 = vadd.f32 %v4422, %v4534
    %4536 = vmatmul.f32.gmra.mxu0 %v2474
    %v4537 = vpop.f32.mrf.mxu0
    %v4538 = vadd.f32 %v4425, %v4537
    %4539 = vmatmul.f32.gmra.mxu0 %v2476
    %v4540 = vpop.f32.mrf.mxu0
    %v4541 = vadd.f32 %v4428, %v4540
    %4542 = vmatmul.f32.gmra.mxu0 %v2478
    %v4543 = vpop.f32.mrf.mxu0
    %v4544 = vadd.f32 %v4431, %v4543
    %4545 = vmatmul.f32.gmra.mxu0 %v2480
    %v4546 = vpop.f32.mrf.mxu0
    %v4547 = vadd.f32 %v4434, %v4546
    %4548 = vmatmul.f32.gmra.mxu0 %v2482
    %v4549 = vpop.f32.mrf.mxu0
    %v4550 = vadd.f32 %v4437, %v4549
    %4551 = vmatmul.f32.gmra.mxu0 %v2484
    %v4552 = vpop.f32.mrf.mxu0
    %v4553 = vadd.f32 %v4440, %v4552
    %4554 = vmatmul.f32.gmra.mxu0 %v2486
    %v4555 = vpop.f32.mrf.mxu0
    %v4556 = vadd.f32 %v4443, %v4555
    %4557 = vmatmul.f32.gmra.mxu0 %v2488
    %v4558 = vpop.f32.mrf.mxu0
    %v4559 = vadd.f32 %v4446, %v4558
    %4560 = vmatmul.f32.gmra.mxu0 %v2490
    %v4561 = vpop.f32.mrf.mxu0
    %v4562 = vadd.f32 %v4449, %v4561
    %4563 = vmatmul.f32.gmra.mxu0 %v2492
    %v4564 = vpop.f32.mrf.mxu0
    %v4565 = vadd.f32 %v4452, %v4564
    %4566 = vmatmul.f32.gmra.mxu0 %v2494
    %v4567 = vpop.f32.mrf.mxu0
    %v4568 = vadd.f32 %v4455, %v4567
    %4569 = vmatmul.f32.gmra.mxu0 %v2496
    %v4570 = vpop.f32.mrf.mxu0
    %v4571 = vadd.f32 %v4458, %v4570
    %4572 = vmatmul.f32.gmra.mxu0 %v2498
    %v4573 = vpop.f32.mrf.mxu0
    %v4574 = vadd.f32 %v4461, %v4573
    %4575 = vmatmul.f32.gmra.mxu0 %v2500
    %v4576 = vpop.f32.mrf.mxu0
    %v4577 = vadd.f32 %v4464, %v4576
    %4578 = vmatmul.f32.gmra.mxu0 %v2502
    %v4579 = vpop.f32.mrf.mxu0
    %v4580 = vadd.f32 %v4467, %v4579
    %4581 = vmatmul.f32.gmra.mxu0 %v2504
    %v4582 = vpop.f32.mrf.mxu0
    %v4583 = vadd.f32 %v4470, %v4582
    %4584 = vmatmul.f32.gmra.mxu0 %v2506
    %v4585 = vpop.f32.mrf.mxu0
    %v4586 = vadd.f32 %v4473, %v4585
    %4587 = vmatmul.f32.gmra.mxu0 %v2508
    %v4588 = vpop.f32.mrf.mxu0
    %v4589 = vadd.f32 %v4476, %v4588
    %4590 = vdwg.mxu0
    %4591 = vst [vmem:[%s11] sm:$0xff] %v2914
    %4592 = vst [vmem:[%s11 + $0x8] sm:$0xff] %v3140
    %4593 = vst [vmem:[%s11 + $0x10] sm:$0xff] %v3366
    %4594 = vst [vmem:[%s11 + $0x18] sm:$0xff] %v3592
    %4595 = vst [vmem:[%s11 + $0x20] sm:$0xff] %v3818
    %4596 = vst [vmem:[%s11 + $0x28] sm:$0xff] %v4044
    %4597 = vst [vmem:[%s11 + $0x30] sm:$0xff] %v4270
    %4598 = vst [vmem:[%s11 + $0x38] sm:$0xff] %v4496
    %4599 = vst [vmem:[%s11 + $0x40] sm:$0xff] %v2917
    %4600 = vst [vmem:[%s11 + $0x48] sm:$0xff] %v3143
    %4601 = vst [vmem:[%s11 + $0x50] sm:$0xff] %v3369
    %4602 = vst [vmem:[%s11 + $0x58] sm:$0xff] %v3595
    %4603 = vst [vmem:[%s11 + $0x60] sm:$0xff] %v3821
    %4604 = vst [vmem:[%s11 + $0x68] sm:$0xff] %v4047
    %4605 = vst [vmem:[%s11 + $0x70] sm:$0xff] %v4273
    %4606 = vst [vmem:[%s11 + $0x78] sm:$0xff] %v4499
    %4607 = vst [vmem:[%s11 + $0x80] sm:$0xff] %v2920
    %4608 = vst [vmem:[%s11 + $0x88] sm:$0xff] %v3146
    %4609 = vst [vmem:[%s11 + $0x90] sm:$0xff] %v3372
    %4610 = vst [vmem:[%s11 + $0x98] sm:$0xff] %v3598
    %4611 = vst [vmem:[%s11 + $0xa0] sm:$0xff] %v3824
    %4612 = vst [vmem:[%s11 + $0xa8] sm:$0xff] %v4050
    %4613 = vst [vmem:[%s11 + $0xb0] sm:$0xff] %v4276
    %4614 = vst [vmem:[%s11 + $0xb8] sm:$0xff] %v4502
    %4615 = vst [vmem:[%s11 + $0xc0] sm:$0xff] %v2923
    %4616 = vst [vmem:[%s11 + $0xc8] sm:$0xff] %v3149
    %4617 = vst [vmem:[%s11 + $0xd0] sm:$0xff] %v3375
    %4618 = vst [vmem:[%s11 + $0xd8] sm:$0xff] %v3601
    %4619 = vst [vmem:[%s11 + $0xe0] sm:$0xff] %v3827
    %4620 = vst [vmem:[%s11 + $0xe8] sm:$0xff] %v4053
    %4621 = vst [vmem:[%s11 + $0xf0] sm:$0xff] %v4279
    %4622 = vst [vmem:[%s11 + $0xf8] sm:$0xff] %v4505
    %4623 = vst [vmem:[%s11 + $0x100] sm:$0xff] %v2926
    %4624 = vst [vmem:[%s11 + $0x108] sm:$0xff] %v3152
    %4625 = vst [vmem:[%s11 + $0x110] sm:$0xff] %v3378
    %4626 = vst [vmem:[%s11 + $0x118] sm:$0xff] %v3604
    %4627 = vst [vmem:[%s11 + $0x120] sm:$0xff] %v3830
    %4628 = vst [vmem:[%s11 + $0x128] sm:$0xff] %v4056
    %4629 = vst [vmem:[%s11 + $0x130] sm:$0xff] %v4282
    %4630 = vst [vmem:[%s11 + $0x138] sm:$0xff] %v4508
    %4631 = vst [vmem:[%s11 + $0x140] sm:$0xff] %v2929
    %4632 = vst [vmem:[%s11 + $0x148] sm:$0xff] %v3155
    %4633 = vst [vmem:[%s11 + $0x150] sm:$0xff] %v3381
    %4634 = vst [vmem:[%s11 + $0x158] sm:$0xff] %v3607
    %4635 = vst [vmem:[%s11 + $0x160] sm:$0xff] %v3833
    %4636 = vst [vmem:[%s11 + $0x168] sm:$0xff] %v4059
    %4637 = vst [vmem:[%s11 + $0x170] sm:$0xff] %v4285
    %4638 = vst [vmem:[%s11 + $0x178] sm:$0xff] %v4511
    %4639 = vst [vmem:[%s11 + $0x180] sm:$0xff] %v2932
    %4640 = vst [vmem:[%s11 + $0x188] sm:$0xff] %v3158
    %4641 = vst [vmem:[%s11 + $0x190] sm:$0xff] %v3384
    %4642 = vst [vmem:[%s11 + $0x198] sm:$0xff] %v3610
    %4643 = vst [vmem:[%s11 + $0x1a0] sm:$0xff] %v3836
    %4644 = vst [vmem:[%s11 + $0x1a8] sm:$0xff] %v4062
    %4645 = vst [vmem:[%s11 + $0x1b0] sm:$0xff] %v4288
    %4646 = vst [vmem:[%s11 + $0x1b8] sm:$0xff] %v4514
    %4647 = vst [vmem:[%s11 + $0x1c0] sm:$0xff] %v2935
    %4648 = vst [vmem:[%s11 + $0x1c8] sm:$0xff] %v3161
    %4649 = vst [vmem:[%s11 + $0x1d0] sm:$0xff] %v3387
    %4650 = vst [vmem:[%s11 + $0x1d8] sm:$0xff] %v3613
    %4651 = vst [vmem:[%s11 + $0x1e0] sm:$0xff] %v3839
    %4652 = vst [vmem:[%s11 + $0x1e8] sm:$0xff] %v4065
    %4653 = vst [vmem:[%s11 + $0x1f0] sm:$0xff] %v4291
    %4654 = vst [vmem:[%s11 + $0x1f8] sm:$0xff] %v4517
    %4655 = vst [vmem:[%s11 + $0x200] sm:$0xff] %v2938
    %4656 = vst [vmem:[%s11 + $0x208] sm:$0xff] %v3164
    %4657 = vst [vmem:[%s11 + $0x210] sm:$0xff] %v3390
    %4658 = vst [vmem:[%s11 + $0x218] sm:$0xff] %v3616
    %4659 = vst [vmem:[%s11 + $0x220] sm:$0xff] %v3842
    %4660 = vst [vmem:[%s11 + $0x228] sm:$0xff] %v4068
    %4661 = vst [vmem:[%s11 + $0x230] sm:$0xff] %v4294
    %4662 = vst [vmem:[%s11 + $0x238] sm:$0xff] %v4520
    %4663 = vst [vmem:[%s11 + $0x240] sm:$0xff] %v2941
    %4664 = vst [vmem:[%s11 + $0x248] sm:$0xff] %v3167
    %4665 = vst [vmem:[%s11 + $0x250] sm:$0xff] %v3393
    %4666 = vst [vmem:[%s11 + $0x258] sm:$0xff] %v3619
    %4667 = vst [vmem:[%s11 + $0x260] sm:$0xff] %v3845
    %4668 = vst [vmem:[%s11 + $0x268] sm:$0xff] %v4071
    %4669 = vst [vmem:[%s11 + $0x270] sm:$0xff] %v4297
    %4670 = vst [vmem:[%s11 + $0x278] sm:$0xff] %v4523
    %4671 = vst [vmem:[%s11 + $0x280] sm:$0xff] %v2944
    %4672 = vst [vmem:[%s11 + $0x288] sm:$0xff] %v3170
    %4673 = vst [vmem:[%s11 + $0x290] sm:$0xff] %v3396
    %4674 = vst [vmem:[%s11 + $0x298] sm:$0xff] %v3622
    %4675 = vst [vmem:[%s11 + $0x2a0] sm:$0xff] %v3848
    %4676 = vst [vmem:[%s11 + $0x2a8] sm:$0xff] %v4074
    %4677 = vst [vmem:[%s11 + $0x2b0] sm:$0xff] %v4300
    %4678 = vst [vmem:[%s11 + $0x2b8] sm:$0xff] %v4526
    %4679 = vst [vmem:[%s11 + $0x2c0] sm:$0xff] %v2947
    %4680 = vst [vmem:[%s11 + $0x2c8] sm:$0xff] %v3173
    %4681 = vst [vmem:[%s11 + $0x2d0] sm:$0xff] %v3399
    %4682 = vst [vmem:[%s11 + $0x2d8] sm:$0xff] %v3625
    %4683 = vst [vmem:[%s11 + $0x2e0] sm:$0xff] %v3851
    %4684 = vst [vmem:[%s11 + $0x2e8] sm:$0xff] %v4077
    %4685 = vst [vmem:[%s11 + $0x2f0] sm:$0xff] %v4303
    %4686 = vst [vmem:[%s11 + $0x2f8] sm:$0xff] %v4529
    %4687 = vst [vmem:[%s11 + $0x300] sm:$0xff] %v2950
    %4688 = vst [vmem:[%s11 + $0x308] sm:$0xff] %v3176
    %4689 = vst [vmem:[%s11 + $0x310] sm:$0xff] %v3402
    %4690 = vst [vmem:[%s11 + $0x318] sm:$0xff] %v3628
    %4691 = vst [vmem:[%s11 + $0x320] sm:$0xff] %v3854
    %4692 = vst [vmem:[%s11 + $0x328] sm:$0xff] %v4080
    %4693 = vst [vmem:[%s11 + $0x330] sm:$0xff] %v4306
    %4694 = vst [vmem:[%s11 + $0x338] sm:$0xff] %v4532
    %4695 = vst [vmem:[%s11 + $0x340] sm:$0xff] %v2953
    %4696 = vst [vmem:[%s11 + $0x348] sm:$0xff] %v3179
    %4697 = vst [vmem:[%s11 + $0x350] sm:$0xff] %v3405
    %4698 = vst [vmem:[%s11 + $0x358] sm:$0xff] %v3631
    %4699 = vst [vmem:[%s11 + $0x360] sm:$0xff] %v3857
    %4700 = vst [vmem:[%s11 + $0x368] sm:$0xff] %v4083
    %4701 = vst [vmem:[%s11 + $0x370] sm:$0xff] %v4309
    %4702 = vst [vmem:[%s11 + $0x378] sm:$0xff] %v4535
    %4703 = vst [vmem:[%s11 + $0x380] sm:$0xff] %v2956
    %4704 = vst [vmem:[%s11 + $0x388] sm:$0xff] %v3182
    %4705 = vst [vmem:[%s11 + $0x390] sm:$0xff] %v3408
    %4706 = vst [vmem:[%s11 + $0x398] sm:$0xff] %v3634
    %4707 = vst [vmem:[%s11 + $0x3a0] sm:$0xff] %v3860
    %4708 = vst [vmem:[%s11 + $0x3a8] sm:$0xff] %v4086
    %4709 = vst [vmem:[%s11 + $0x3b0] sm:$0xff] %v4312
    %4710 = vst [vmem:[%s11 + $0x3b8] sm:$0xff] %v4538
    %4711 = vst [vmem:[%s11 + $0x3c0] sm:$0xff] %v2959
    %4712 = vst [vmem:[%s11 + $0x3c8] sm:$0xff] %v3185
    %4713 = vst [vmem:[%s11 + $0x3d0] sm:$0xff] %v3411
    %4714 = vst [vmem:[%s11 + $0x3d8] sm:$0xff] %v3637
    %4715 = vst [vmem:[%s11 + $0x3e0] sm:$0xff] %v3863
    %4716 = vst [vmem:[%s11 + $0x3e8] sm:$0xff] %v4089
    %4717 = vst [vmem:[%s11 + $0x3f0] sm:$0xff] %v4315
    %4718 = vst [vmem:[%s11 + $0x3f8] sm:$0xff] %v4541
    %4719 = vst [vmem:[%s11 + $0x400] sm:$0xff] %v2962
    %4720 = vst [vmem:[%s11 + $0x408] sm:$0xff] %v3188
    %4721 = vst [vmem:[%s11 + $0x410] sm:$0xff] %v3414
    %4722 = vst [vmem:[%s11 + $0x418] sm:$0xff] %v3640
    %4723 = vst [vmem:[%s11 + $0x420] sm:$0xff] %v3866
    %4724 = vst [vmem:[%s11 + $0x428] sm:$0xff] %v4092
    %4725 = vst [vmem:[%s11 + $0x430] sm:$0xff] %v4318
    %4726 = vst [vmem:[%s11 + $0x438] sm:$0xff] %v4544
    %4727 = vst [vmem:[%s11 + $0x440] sm:$0xff] %v2965
    %4728 = vst [vmem:[%s11 + $0x448] sm:$0xff] %v3191
    %4729 = vst [vmem:[%s11 + $0x450] sm:$0xff] %v3417
    %4730 = vst [vmem:[%s11 + $0x458] sm:$0xff] %v3643
    %4731 = vst [vmem:[%s11 + $0x460] sm:$0xff] %v3869
    %4732 = vst [vmem:[%s11 + $0x468] sm:$0xff] %v4095
    %4733 = vst [vmem:[%s11 + $0x470] sm:$0xff] %v4321
    %4734 = vst [vmem:[%s11 + $0x478] sm:$0xff] %v4547
    %4735 = vst [vmem:[%s11 + $0x480] sm:$0xff] %v2968
    %4736 = vst [vmem:[%s11 + $0x488] sm:$0xff] %v3194
    %4737 = vst [vmem:[%s11 + $0x490] sm:$0xff] %v3420
    %4738 = vst [vmem:[%s11 + $0x498] sm:$0xff] %v3646
    %4739 = vst [vmem:[%s11 + $0x4a0] sm:$0xff] %v3872
    %4740 = vst [vmem:[%s11 + $0x4a8] sm:$0xff] %v4098
    %4741 = vst [vmem:[%s11 + $0x4b0] sm:$0xff] %v4324
    %4742 = vst [vmem:[%s11 + $0x4b8] sm:$0xff] %v4550
    %4743 = vst [vmem:[%s11 + $0x4c0] sm:$0xff] %v2971
    %4744 = vst [vmem:[%s11 + $0x4c8] sm:$0xff] %v3197
    %4745 = vst [vmem:[%s11 + $0x4d0] sm:$0xff] %v3423
    %4746 = vst [vmem:[%s11 + $0x4d8] sm:$0xff] %v3649
    %4747 = vst [vmem:[%s11 + $0x4e0] sm:$0xff] %v3875
    %4748 = vst [vmem:[%s11 + $0x4e8] sm:$0xff] %v4101
    %4749 = vst [vmem:[%s11 + $0x4f0] sm:$0xff] %v4327
    %4750 = vst [vmem:[%s11 + $0x4f8] sm:$0xff] %v4553
    %4751 = vst [vmem:[%s11 + $0x500] sm:$0xff] %v2974
    %4752 = vst [vmem:[%s11 + $0x508] sm:$0xff] %v3200
    %4753 = vst [vmem:[%s11 + $0x510] sm:$0xff] %v3426
    %4754 = vst [vmem:[%s11 + $0x518] sm:$0xff] %v3652
    %4755 = vst [vmem:[%s11 + $0x520] sm:$0xff] %v3878
    %4756 = vst [vmem:[%s11 + $0x528] sm:$0xff] %v4104
    %4757 = vst [vmem:[%s11 + $0x530] sm:$0xff] %v4330
    %4758 = vst [vmem:[%s11 + $0x538] sm:$0xff] %v4556
    %4759 = vst [vmem:[%s11 + $0x540] sm:$0xff] %v2977
    %4760 = vst [vmem:[%s11 + $0x548] sm:$0xff] %v3203
    %4761 = vst [vmem:[%s11 + $0x550] sm:$0xff] %v3429
    %4762 = vst [vmem:[%s11 + $0x558] sm:$0xff] %v3655
    %4763 = vst [vmem:[%s11 + $0x560] sm:$0xff] %v3881
    %4764 = vst [vmem:[%s11 + $0x568] sm:$0xff] %v4107
    %4765 = vst [vmem:[%s11 + $0x570] sm:$0xff] %v4333
    %4766 = vst [vmem:[%s11 + $0x578] sm:$0xff] %v4559
    %4767 = vst [vmem:[%s11 + $0x580] sm:$0xff] %v2980
    %4768 = vst [vmem:[%s11 + $0x588] sm:$0xff] %v3206
    %4769 = vst [vmem:[%s11 + $0x590] sm:$0xff] %v3432
    %4770 = vst [vmem:[%s11 + $0x598] sm:$0xff] %v3658
    %4771 = vst [vmem:[%s11 + $0x5a0] sm:$0xff] %v3884
    %4772 = vst [vmem:[%s11 + $0x5a8] sm:$0xff] %v4110
    %4773 = vst [vmem:[%s11 + $0x5b0] sm:$0xff] %v4336
    %4774 = vst [vmem:[%s11 + $0x5b8] sm:$0xff] %v4562
    %4775 = vst [vmem:[%s11 + $0x5c0] sm:$0xff] %v2983
    %4776 = vst [vmem:[%s11 + $0x5c8] sm:$0xff] %v3209
    %4777 = vst [vmem:[%s11 + $0x5d0] sm:$0xff] %v3435
    %4778 = vst [vmem:[%s11 + $0x5d8] sm:$0xff] %v3661
    %4779 = vst [vmem:[%s11 + $0x5e0] sm:$0xff] %v3887
    %4780 = vst [vmem:[%s11 + $0x5e8] sm:$0xff] %v4113
    %4781 = vst [vmem:[%s11 + $0x5f0] sm:$0xff] %v4339
    %4782 = vst [vmem:[%s11 + $0x5f8] sm:$0xff] %v4565
    %4783 = vst [vmem:[%s11 + $0x600] sm:$0xff] %v2986
    %4784 = vst [vmem:[%s11 + $0x608] sm:$0xff] %v3212
    %4785 = vst [vmem:[%s11 + $0x610] sm:$0xff] %v3438
    %4786 = vst [vmem:[%s11 + $0x618] sm:$0xff] %v3664
    %4787 = vst [vmem:[%s11 + $0x620] sm:$0xff] %v3890
    %4788 = vst [vmem:[%s11 + $0x628] sm:$0xff] %v4116
    %4789 = vst [vmem:[%s11 + $0x630] sm:$0xff] %v4342
    %4790 = vst [vmem:[%s11 + $0x638] sm:$0xff] %v4568
    %4791 = vst [vmem:[%s11 + $0x640] sm:$0xff] %v2989
    %4792 = vst [vmem:[%s11 + $0x648] sm:$0xff] %v3215
    %4793 = vst [vmem:[%s11 + $0x650] sm:$0xff] %v3441
    %4794 = vst [vmem:[%s11 + $0x658] sm:$0xff] %v3667
    %4795 = vst [vmem:[%s11 + $0x660] sm:$0xff] %v3893
    %4796 = vst [vmem:[%s11 + $0x668] sm:$0xff] %v4119
    %4797 = vst [vmem:[%s11 + $0x670] sm:$0xff] %v4345
    %4798 = vst [vmem:[%s11 + $0x678] sm:$0xff] %v4571
    %4799 = vst [vmem:[%s11 + $0x680] sm:$0xff] %v2992
    %4800 = vst [vmem:[%s11 + $0x688] sm:$0xff] %v3218
    %4801 = vst [vmem:[%s11 + $0x690] sm:$0xff] %v3444
    %4802 = vst [vmem:[%s11 + $0x698] sm:$0xff] %v3670
    %4803 = vst [vmem:[%s11 + $0x6a0] sm:$0xff] %v3896
    %4804 = vst [vmem:[%s11 + $0x6a8] sm:$0xff] %v4122
    %4805 = vst [vmem:[%s11 + $0x6b0] sm:$0xff] %v4348
    %4806 = vst [vmem:[%s11 + $0x6b8] sm:$0xff] %v4574
    %4807 = vst [vmem:[%s11 + $0x6c0] sm:$0xff] %v2995
    %4808 = vst [vmem:[%s11 + $0x6c8] sm:$0xff] %v3221
    %4809 = vst [vmem:[%s11 + $0x6d0] sm:$0xff] %v3447
    %4810 = vst [vmem:[%s11 + $0x6d8] sm:$0xff] %v3673
    %4811 = vst [vmem:[%s11 + $0x6e0] sm:$0xff] %v3899
    %4812 = vst [vmem:[%s11 + $0x6e8] sm:$0xff] %v4125
    %4813 = vst [vmem:[%s11 + $0x6f0] sm:$0xff] %v4351
    %4814 = vst [vmem:[%s11 + $0x6f8] sm:$0xff] %v4577
    %4815 = vst [vmem:[%s11 + $0x700] sm:$0xff] %v2998
    %4816 = vst [vmem:[%s11 + $0x708] sm:$0xff] %v3224
    %4817 = vst [vmem:[%s11 + $0x710] sm:$0xff] %v3450
    %4818 = vst [vmem:[%s11 + $0x718] sm:$0xff] %v3676
    %4819 = vst [vmem:[%s11 + $0x720] sm:$0xff] %v3902
    %4820 = vst [vmem:[%s11 + $0x728] sm:$0xff] %v4128
    %4821 = vst [vmem:[%s11 + $0x730] sm:$0xff] %v4354
    %4822 = vst [vmem:[%s11 + $0x738] sm:$0xff] %v4580
    %4823 = vst [vmem:[%s11 + $0x740] sm:$0xff] %v3001
    %4824 = vst [vmem:[%s11 + $0x748] sm:$0xff] %v3227
    %4825 = vst [vmem:[%s11 + $0x750] sm:$0xff] %v3453
    %4826 = vst [vmem:[%s11 + $0x758] sm:$0xff] %v3679
    %4827 = vst [vmem:[%s11 + $0x760] sm:$0xff] %v3905
    %4828 = vst [vmem:[%s11 + $0x768] sm:$0xff] %v4131
    %4829 = vst [vmem:[%s11 + $0x770] sm:$0xff] %v4357
    %4830 = vst [vmem:[%s11 + $0x778] sm:$0xff] %v4583
    %4831 = vst [vmem:[%s11 + $0x780] sm:$0xff] %v3004
    %4832 = vst [vmem:[%s11 + $0x788] sm:$0xff] %v3230
    %4833 = vst [vmem:[%s11 + $0x790] sm:$0xff] %v3456
    %4834 = vst [vmem:[%s11 + $0x798] sm:$0xff] %v3682
    %4835 = vst [vmem:[%s11 + $0x7a0] sm:$0xff] %v3908
    %4836 = vst [vmem:[%s11 + $0x7a8] sm:$0xff] %v4134
    %4837 = vst [vmem:[%s11 + $0x7b0] sm:$0xff] %v4360
    %4838 = vst [vmem:[%s11 + $0x7b8] sm:$0xff] %v4586
    %4839 = vst [vmem:[%s11 + $0x7c0] sm:$0xff] %v3007
    %4840 = vst [vmem:[%s11 + $0x7c8] sm:$0xff] %v3233
    %4841 = vst [vmem:[%s11 + $0x7d0] sm:$0xff] %v3459
    %4842 = vst [vmem:[%s11 + $0x7d8] sm:$0xff] %v3685
    %4843 = vst [vmem:[%s11 + $0x7e0] sm:$0xff] %v3911
    %4844 = vst [vmem:[%s11 + $0x7e8] sm:$0xff] %v4137
    %4845 = vst [vmem:[%s11 + $0x7f0] sm:$0xff] %v4363
    %4846 = vst [vmem:[%s11 + $0x7f8] sm:$0xff] %v4589
    // Predicated region
    $region62: #{_fused_forward.1} parent=1 // pred_check
      _
    $region63: #{_fused_forward.1} parent=1 // pred_check_branch
      %4848 = sbr.rel (0) target = $region65
    $region64: #{_fused_forward.1} parent=1 // pred_region
      _
    $region65: #{_fused_forward.1} parent=1 // pred_fallthru
      _
    // Predicated region
    $region66: #{_fused_forward.1} parent=1 // pred_check
      _
    $region67: #{_fused_forward.1} parent=1 // pred_check_branch
      %4850 = sbr.rel (0) target = $region69
    $region68: #{_fused_forward.1} parent=1 // pred_region
      _
    $region69: #{_fused_forward.1} parent=1 // pred_fallthru
      _
    %4851 = vsyncpa [#allocation3], 1
    %4852 = vsyncpa [#allocation5], 1
    %4853 = vsyncpa [#allocation8], 1

</llo_original>
